<compile_context>
chip_gen: v6e
topology: v6e:2x2x1
jax: 0.10.0
libtpu: 0.0.40
codegen_flags: <defaults>
</compile_context>

<pallas_src>
import functools

import jax
import jax.numpy as jnp
from jax import lax
from jax.experimental import pallas as pl
from jax.experimental.pallas import tpu as pltpu


def _fused_lstm_kernel(gx0_ref, h0_ref, whh0_ref, wih1_ref, whh1_ref, b1_ref,
                       out_ref, hn_ref, cn_ref):
    """Fused, layer-interleaved 2-layer LSTM over the whole sequence.

    gx0_ref : (T, B, 4H) f32   precomputed layer-0 input gates (X @ W_ih0^T + b0)
    h0_ref  : (2, B, H)  f32   initial hidden state per layer (c0 assumed zero)
    whh0_ref, wih1_ref, whh1_ref : (H, 4H)  (bf16 or f32)  transposed weights
    b1_ref  : (1, 4H) f32      layer-1 bias (b_ih1 + b_hh1)
    out_ref : (T, B, H) f32    sequence output (layer-1 hidden states)
    hn_ref, cn_ref : (2, B, H) f32  final states per layer
    """
    T, B, H4 = gx0_ref.shape
    H = H4 // 4
    cdt = whh0_ref.dtype  # matmul operand dtype (bf16 on v6e/v7x, f32 otherwise)

    # Hoist all weight / bias loads out of the recurrence.
    whh0 = whh0_ref[...]
    wih1 = wih1_ref[...]
    whh1 = whh1_ref[...]
    b1 = b1_ref[...]

    def cell(gates, c):
        # PyTorch gate order [i, f, g, o]; H is a multiple of 128 so each slice
        # is lane-aligned (no XLU traffic).  sigmoid/tanh run on the EUP.
        i_g = jax.nn.sigmoid(gates[:, 0 * H:1 * H])
        f_g = jax.nn.sigmoid(gates[:, 1 * H:2 * H])
        g_g = jnp.tanh(gates[:, 2 * H:3 * H])
        o_g = jax.nn.sigmoid(gates[:, 3 * H:4 * H])
        c_new = f_g * c + i_g * g_g
        h_new = o_g * jnp.tanh(c_new)
        return h_new, c_new

    def l0_step(t, h, c):
        # Layer 0: input gates were hoisted; only the recurrent matmul remains.
        gates = gx0_ref[t] + jnp.dot(h.astype(cdt), whh0,
                                     preferred_element_type=jnp.float32)
        return cell(gates, c)

    def l1_step(y0, h, c):
        # Layer 1: per-step input projection + recurrent matmul (independent,
        # back-to-back MXU pushes).
        gates = (b1
                 + jnp.dot(y0, wih1, preferred_element_type=jnp.float32)
                 + jnp.dot(h.astype(cdt), whh1,
                           preferred_element_type=jnp.float32))
        return cell(gates, c)

    # ---------------- Prologue: layer-0 step 0 ----------------
    h0_init = h0_ref[0]
    h0_c, c0_c = l0_step(0, h0_init, jnp.zeros_like(h0_init))

    h1_init = h0_ref[1]
    carry0 = (h0_c, c0_c, h1_init, jnp.zeros_like(h1_init), h0_c.astype(cdt))

    # ---------------- Skewed steady state ----------------
    # Iteration t: layer-0 step t and layer-1 step t-1 (data-independent inside
    # the body -> the LLO scheduler overlaps the two chains).
    def body(t, carry):
        h0, c0, h1, c1, y0_prev = carry
        h0n, c0n = l0_step(t, h0, c0)          # layer 0, time t
        h1n, c1n = l1_step(y0_prev, h1, c1)    # layer 1, time t-1
        out_ref[t - 1] = h1n
        return h0n, c0n, h1n, c1n, h0n.astype(cdt)

    h0_l, c0_l, h1_l, c1_l, y0_l = lax.fori_loop(1, T, body, carry0,
                                                 unroll=True)

    hn_ref[0] = h0_l
    cn_ref[0] = c0_l

    # ---------------- Epilogue: layer-1 step T-1 ----------------
    h1_f, c1_f = l1_step(y0_l, h1_l, c1_l)
    out_ref[T - 1] = h1_f
    hn_ref[1] = h1_f
    cn_ref[1] = c1_f


def _fused_lstm(gx0, h0, whh0_t, wih1_t, whh1_t, b1):
    T, B, H4 = gx0.shape
    H = H4 // 4
    L = h0.shape[0]  # must be 2 (kernel hard-codes 2 layers)

    return pl.pallas_call(
        _fused_lstm_kernel,
        out_shape=(jax.ShapeDtypeStruct((T, B, H), jnp.float32),
                   jax.ShapeDtypeStruct((L, B, H), jnp.float32),
                   jax.ShapeDtypeStruct((L, B, H), jnp.float32)),
        grid_spec=pltpu.PrefetchScalarGridSpec(
            num_scalar_prefetch=0,
            grid=(1,),  # single invocation; time loop runs inside the kernel
            in_specs=[pl.BlockSpec((T, B, H4), lambda i: (0, 0, 0)),
                      pl.BlockSpec((L, B, H), lambda i: (0, 0, 0)),
                      pl.BlockSpec((H, H4), lambda i: (0, 0)),
                      pl.BlockSpec((H, H4), lambda i: (0, 0)),
                      pl.BlockSpec((H, H4), lambda i: (0, 0)),
                      pl.BlockSpec((1, H4), lambda i: (0, 0))],
            out_specs=(pl.BlockSpec((T, B, H), lambda i: (0, 0, 0)),
                       pl.BlockSpec((L, B, H), lambda i: (0, 0, 0)),
                       pl.BlockSpec((L, B, H), lambda i: (0, 0, 0)))),
        compiler_params=pltpu.CompilerParams(
            dimension_semantics=("arbitrary",)),
    )(gx0, h0, whh0_t, wih1_t, whh1_t, b1)


@functools.partial(jax.jit, static_argnames=("use_bf16",))
def network_forward(x, h0, params, use_bf16=True):
    """Equivalent of Network.forward(input_var, h0) for the 2-layer nn.LSTM."""
    # TODO(synk): PyTorch's nn.LSTM expects the (h0, c0) tuple; the module passes
    # only h0, so we follow the obvious intent and use c0 = zeros.
    T, B, I = x.shape
    H = h0.shape[-1]
    cdt = jnp.bfloat16 if use_bf16 else jnp.float32

    (w_ih0, w_hh0, b_ih0, b_hh0), (w_ih1, w_hh1, b_ih1, b_hh1) = params

    # Hoisted layer-0 input projection: one (T*B, I) x (I, 4H) matmul with f32
    # accumulation (bias folded in).
    gx0 = (jnp.dot(x.reshape(T * B, I).astype(cdt), w_ih0.T.astype(cdt),
                   preferred_element_type=jnp.float32)
           + (b_ih0 + b_hh0)).reshape(T, B, 4 * H)

    out, h_n, c_n = _fused_lstm(
        gx0.astype(jnp.float32),
        h0.astype(jnp.float32),
        w_hh0.T.astype(cdt),
        w_ih1.T.astype(cdt),
        w_hh1.T.astype(cdt),
        (b_ih1 + b_hh1).reshape(1, 4 * H).astype(jnp.float32),
    )
    return out, (h_n, c_n)


def _lstm_reference(x, h0, params):
    """Pure-JAX reference (lax.scan) for correctness checking (c0 = 0)."""
    def layer(xs, h_init, c_init, w_ih, w_hh, b_ih, b_hh):
        H = h_init.shape[-1]

        def step(carry, xt):
            h, c = carry
            gates = xt @ w_ih.T + h @ w_hh.T + b_ih + b_hh
            i = jax.nn.sigmoid(gates[:, 0 * H:1 * H])
            f = jax.nn.sigmoid(gates[:, 1 * H:2 * H])
            g = jnp.tanh(gates[:, 2 * H:3 * H])
            o = jax.nn.sigmoid(gates[:, 3 * H:4 * H])
            c_new = f * c + i * g
            h_new = o * jnp.tanh(c_new)
            return (h_new, c_new), h_new

        (hT, cT), outs = jax.lax.scan(step, (h_init, c_init), xs)
        return outs, hT, cT

    out = x
    hs, cs = [], []
    for l in range(2):
        w_ih, w_hh, b_ih, b_hh = params[l]
        out, hT, cT = layer(out, h0[l], jnp.zeros_like(h0[l]),
                            w_ih, w_hh, b_ih, b_hh)
        hs.append(hT)
        cs.append(cT)
    return out, (jnp.stack(hs), jnp.stack(cs))


def init_params(key, input_size, hidden_size, num_layers=2, std=0.1):
    """nn.LSTM parameter shapes, normal(std=0.1) init like weight_init.normal_."""
    params = []
    for layer in range(num_layers):
        in_sz = input_size if layer == 0 else hidden_size
        key, k1, k2, k3, k4 = jax.random.split(key, 5)
        w_ih = std * jax.random.normal(k1, (4 * hidden_size, in_sz), jnp.float32)
        w_hh = std * jax.random.normal(k2, (4 * hidden_size, hidden_size), jnp.float32)
        b_ih = std * jax.random.normal(k3, (4 * hidden_size,), jnp.float32)
        b_hh = std * jax.random.normal(k4, (4 * hidden_size,), jnp.float32)
        params.append((w_ih, w_hh, b_ih, b_hh))
    return params


if __name__ == "__main__":
    # Small shapes consistent with the module (module uses T=32, B=50, I=128, H=256).
    T, B, INPUT, HIDDEN, LAYERS = 8, 8, 128, 128, 2

    key = jax.random.PRNGKey(0)
    key, kx, kh = jax.random.split(key, 3)
    x = jax.random.uniform(kx, (T, B, INPUT), jnp.float32)          # like torch.rand
    h0 = jax.random.normal(kh, (LAYERS, B, HIDDEN), jnp.float32)    # like torch.randn
    params = init_params(key, INPUT, HIDDEN, LAYERS)

    ref_out, (ref_h, ref_c) = _lstm_reference(x, h0, params)

    # f32 matmul operands: tight tolerance.
    out32, (h32, c32) = network_forward(x, h0, params, use_bf16=False)
    jax.block_until_ready((out32, h32, c32))
    assert out32.shape == (T, B, HIDDEN)
    assert h32.shape == (LAYERS, B, HIDDEN) and c32.shape == (LAYERS, B, HIDDEN)
    assert jnp.allclose(out32, ref_out, atol=1e-3, rtol=1e-3)
    assert jnp.allclose(h32, ref_h, atol=1e-3, rtol=1e-3)
    assert jnp.allclose(c32, ref_c, atol=1e-3, rtol=1e-3)

    # bf16 MXU operands (v6e/v7x fast path), f32 accumulation/state: looser tolerance.
    out16, (h16, c16) = network_forward(x, h0, params, use_bf16=True)
    jax.block_until_ready((out16, h16, c16))
    assert jnp.allclose(out16, ref_out, atol=2e-2, rtol=2e-2)
    assert jnp.allclose(h16, ref_h, atol=2e-2, rtol=2e-2)
    assert jnp.allclose(c16, ref_c, atol=2e-2, rtol=2e-2)

    print("KERNEL_OK")
</pallas_src>

<mosaic_0001>
module attributes {stable_mosaic.version = 11 : i64} {
  func.func @_fused_lstm_kernel(%arg0: i32, %arg1: memref<8x8x512xf32, #tpu.memory_space<vmem>>, %arg2: memref<2x8x128xf32, #tpu.memory_space<vmem>>, %arg3: memref<128x512xf32, #tpu.memory_space<vmem>>, %arg4: memref<128x512xf32, #tpu.memory_space<vmem>>, %arg5: memref<128x512xf32, #tpu.memory_space<vmem>>, %arg6: memref<1x512xf32, #tpu.memory_space<vmem>>, %arg7: memref<8x8x128xf32, #tpu.memory_space<vmem>>, %arg8: memref<2x8x128xf32, #tpu.memory_space<vmem>>, %arg9: memref<2x8x128xf32, #tpu.memory_space<vmem>>) attributes {dimension_semantics = [#tpu.dimension_semantics<arbitrary>], iteration_bounds = array<i64: 1>, scalar_prefetch = 0 : i64, scratch_operands = 0 : i64, tpu.core_type = #tpu.core_type<tc>, window_params = [{pipeline_mode = #tpu.pipeline_mode<synchronous>, transform_indices = @transform_0, window_bounds = array<i64: 8, 8, 512>}, {pipeline_mode = #tpu.pipeline_mode<synchronous>, transform_indices = @transform_1, window_bounds = array<i64: 2, 8, 128>}, {pipeline_mode = #tpu.pipeline_mode<synchronous>, transform_indices = @transform_2, window_bounds = array<i64: 128, 512>}, {pipeline_mode = #tpu.pipeline_mode<synchronous>, transform_indices = @transform_3, window_bounds = array<i64: 128, 512>}, {pipeline_mode = #tpu.pipeline_mode<synchronous>, transform_indices = @transform_4, window_bounds = array<i64: 128, 512>}, {pipeline_mode = #tpu.pipeline_mode<synchronous>, transform_indices = @transform_5, window_bounds = array<i64: 1, 512>}, {pipeline_mode = #tpu.pipeline_mode<synchronous>, transform_indices = @transform_6, window_bounds = array<i64: 8, 8, 128>}, {pipeline_mode = #tpu.pipeline_mode<synchronous>, transform_indices = @transform_7, window_bounds = array<i64: 2, 8, 128>}, {pipeline_mode = #tpu.pipeline_mode<synchronous>, transform_indices = @transform_8, window_bounds = array<i64: 2, 8, 128>}]} {
    %c0 = arith.constant 0 : index
    %c0_0 = arith.constant 0 : index
    %0 = vector.load %arg3[%c0, %c0_0] : memref<128x512xf32, #tpu.memory_space<vmem>>, vector<128x512xf32>
    %c0_1 = arith.constant 0 : index
    %c0_2 = arith.constant 0 : index
    %1 = vector.load %arg4[%c0_1, %c0_2] : memref<128x512xf32, #tpu.memory_space<vmem>>, vector<128x512xf32>
    %c0_3 = arith.constant 0 : index
    %c0_4 = arith.constant 0 : index
    %2 = vector.load %arg5[%c0_3, %c0_4] : memref<128x512xf32, #tpu.memory_space<vmem>>, vector<128x512xf32>
    %c0_5 = arith.constant 0 : index
    %c0_6 = arith.constant 0 : index
    %3 = vector.load %arg6[%c0_5, %c0_6] : memref<1x512xf32, #tpu.memory_space<vmem>>, vector<1x512xf32>
    %c0_7 = arith.constant 0 : index
    %c0_8 = arith.constant 0 : index
    %c0_9 = arith.constant 0 : index
    %4 = vector.load %arg2[%c0_7, %c0_8, %c0_9] : memref<2x8x128xf32, #tpu.memory_space<vmem>>, vector<1x8x128xf32>
    %5 = vector.shape_cast %4 : vector<1x8x128xf32> to vector<8x128xf32>
    %cst = arith.constant 0.000000e+00 : f32
    %6 = vector.broadcast %cst : f32 to vector<8x128xf32>
    %c0_10 = arith.constant 0 : index
    %c0_11 = arith.constant 0 : index
    %c0_12 = arith.constant 0 : index
    %7 = vector.load %arg1[%c0_10, %c0_11, %c0_12] : memref<8x8x512xf32, #tpu.memory_space<vmem>>, vector<1x8x512xf32>
    %8 = vector.shape_cast %7 : vector<1x8x512xf32> to vector<8x512xf32>
    %cst_13 = arith.constant dense<0.000000e+00> : vector<8x512xf32>
    %9 = tpu.matmul %5, %0, %cst_13 {dimension_numbers = #tpu.dot_dimension_numbers<[1], [0], [0], [1], [0, 0, 1, 1], [], []>} : vector<8x128xf32>, vector<128x512xf32>, vector<8x512xf32> -> vector<8x512xf32>
    %10 = arith.addf %8, %9 : vector<8x512xf32>
    %11 = vector.extract_strided_slice %10 {offsets = [0, 0], sizes = [8, 128], strides = [1, 1]} : vector<8x512xf32> to vector<8x128xf32>
    %12 = arith.negf %11 : vector<8x128xf32>
    %13 = math.exp %12 : vector<8x128xf32>
    %cst_14 = arith.constant 1.000000e+00 : f32
    %14 = vector.broadcast %cst_14 : f32 to vector<8x128xf32>
    %15 = arith.addf %14, %13 : vector<8x128xf32>
    %16 = arith.divf %14, %15 : vector<8x128xf32>
    %17 = vector.extract_strided_slice %10 {offsets = [0, 128], sizes = [8, 128], strides = [1, 1]} : vector<8x512xf32> to vector<8x128xf32>
    %18 = arith.negf %17 : vector<8x128xf32>
    %19 = math.exp %18 : vector<8x128xf32>
    %cst_15 = arith.constant 1.000000e+00 : f32
    %20 = vector.broadcast %cst_15 : f32 to vector<8x128xf32>
    %21 = arith.addf %20, %19 : vector<8x128xf32>
    %22 = arith.divf %20, %21 : vector<8x128xf32>
    %23 = vector.extract_strided_slice %10 {offsets = [0, 256], sizes = [8, 128], strides = [1, 1]} : vector<8x512xf32> to vector<8x128xf32>
    %24 = math.tanh %23 : vector<8x128xf32>
    %25 = vector.extract_strided_slice %10 {offsets = [0, 384], sizes = [8, 128], strides = [1, 1]} : vector<8x512xf32> to vector<8x128xf32>
    %26 = arith.negf %25 : vector<8x128xf32>
    %27 = math.exp %26 : vector<8x128xf32>
    %cst_16 = arith.constant 1.000000e+00 : f32
    %28 = vector.broadcast %cst_16 : f32 to vector<8x128xf32>
    %29 = arith.addf %28, %27 : vector<8x128xf32>
    %30 = arith.divf %28, %29 : vector<8x128xf32>
    %31 = arith.mulf %22, %6 : vector<8x128xf32>
    %32 = arith.mulf %16, %24 : vector<8x128xf32>
    %33 = arith.addf %31, %32 : vector<8x128xf32>
    %34 = math.tanh %33 : vector<8x128xf32>
    %35 = arith.mulf %30, %34 : vector<8x128xf32>
    %c1 = arith.constant 1 : index
    %c0_17 = arith.constant 0 : index
    %c0_18 = arith.constant 0 : index
    %36 = vector.load %arg2[%c1, %c0_17, %c0_18] : memref<2x8x128xf32, #tpu.memory_space<vmem>>, vector<1x8x128xf32>
    %37 = vector.shape_cast %36 : vector<1x8x128xf32> to vector<8x128xf32>
    %cst_19 = arith.constant 0.000000e+00 : f32
    %38 = vector.broadcast %cst_19 : f32 to vector<8x128xf32>
    %c1_i32 = arith.constant 1 : i32
    %39 = arith.index_cast %c1_i32 : i32 to index
    %c0_20 = arith.constant 0 : index
    %c0_21 = arith.constant 0 : index
    %40 = vector.load %arg1[%39, %c0_20, %c0_21] : memref<8x8x512xf32, #tpu.memory_space<vmem>>, vector<1x8x512xf32>
    %41 = vector.shape_cast %40 : vector<1x8x512xf32> to vector<8x512xf32>
    %cst_22 = arith.constant dense<0.000000e+00> : vector<8x512xf32>
    %42 = tpu.matmul %35, %0, %cst_22 {dimension_numbers = #tpu.dot_dimension_numbers<[1], [0], [0], [1], [0, 0, 1, 1], [], []>} : vector<8x128xf32>, vector<128x512xf32>, vector<8x512xf32> -> vector<8x512xf32>
    %43 = arith.addf %41, %42 : vector<8x512xf32>
    %44 = vector.extract_strided_slice %43 {offsets = [0, 0], sizes = [8, 128], strides = [1, 1]} : vector<8x512xf32> to vector<8x128xf32>
    %45 = arith.negf %44 : vector<8x128xf32>
    %46 = math.exp %45 : vector<8x128xf32>
    %cst_23 = arith.constant 1.000000e+00 : f32
    %47 = vector.broadcast %cst_23 : f32 to vector<8x128xf32>
    %48 = arith.addf %47, %46 : vector<8x128xf32>
    %49 = arith.divf %47, %48 : vector<8x128xf32>
    %50 = vector.extract_strided_slice %43 {offsets = [0, 128], sizes = [8, 128], strides = [1, 1]} : vector<8x512xf32> to vector<8x128xf32>
    %51 = arith.negf %50 : vector<8x128xf32>
    %52 = math.exp %51 : vector<8x128xf32>
    %cst_24 = arith.constant 1.000000e+00 : f32
    %53 = vector.broadcast %cst_24 : f32 to vector<8x128xf32>
    %54 = arith.addf %53, %52 : vector<8x128xf32>
    %55 = arith.divf %53, %54 : vector<8x128xf32>
    %56 = vector.extract_strided_slice %43 {offsets = [0, 256], sizes = [8, 128], strides = [1, 1]} : vector<8x512xf32> to vector<8x128xf32>
    %57 = math.tanh %56 : vector<8x128xf32>
    %58 = vector.extract_strided_slice %43 {offsets = [0, 384], sizes = [8, 128], strides = [1, 1]} : vector<8x512xf32> to vector<8x128xf32>
    %59 = arith.negf %58 : vector<8x128xf32>
    %60 = math.exp %59 : vector<8x128xf32>
    %cst_25 = arith.constant 1.000000e+00 : f32
    %61 = vector.broadcast %cst_25 : f32 to vector<8x128xf32>
    %62 = arith.addf %61, %60 : vector<8x128xf32>
    %63 = arith.divf %61, %62 : vector<8x128xf32>
    %64 = arith.mulf %55, %33 : vector<8x128xf32>
    %65 = arith.mulf %49, %57 : vector<8x128xf32>
    %66 = arith.addf %64, %65 : vector<8x128xf32>
    %67 = math.tanh %66 : vector<8x128xf32>
    %68 = arith.mulf %63, %67 : vector<8x128xf32>
    %cst_26 = arith.constant dense<0.000000e+00> : vector<8x512xf32>
    %69 = tpu.matmul %35, %1, %cst_26 {dimension_numbers = #tpu.dot_dimension_numbers<[1], [0], [0], [1], [0, 0, 1, 1], [], []>} : vector<8x128xf32>, vector<128x512xf32>, vector<8x512xf32> -> vector<8x512xf32>
    %70 = vector.broadcast %3 : vector<1x512xf32> to vector<8x512xf32>
    %71 = arith.addf %70, %69 : vector<8x512xf32>
    %cst_27 = arith.constant dense<0.000000e+00> : vector<8x512xf32>
    %72 = tpu.matmul %37, %2, %cst_27 {dimension_numbers = #tpu.dot_dimension_numbers<[1], [0], [0], [1], [0, 0, 1, 1], [], []>} : vector<8x128xf32>, vector<128x512xf32>, vector<8x512xf32> -> vector<8x512xf32>
    %73 = arith.addf %71, %72 : vector<8x512xf32>
    %74 = vector.extract_strided_slice %73 {offsets = [0, 0], sizes = [8, 128], strides = [1, 1]} : vector<8x512xf32> to vector<8x128xf32>
    %75 = arith.negf %74 : vector<8x128xf32>
    %76 = math.exp %75 : vector<8x128xf32>
    %cst_28 = arith.constant 1.000000e+00 : f32
    %77 = vector.broadcast %cst_28 : f32 to vector<8x128xf32>
    %78 = arith.addf %77, %76 : vector<8x128xf32>
    %79 = arith.divf %77, %78 : vector<8x128xf32>
    %80 = vector.extract_strided_slice %73 {offsets = [0, 128], sizes = [8, 128], strides = [1, 1]} : vector<8x512xf32> to vector<8x128xf32>
    %81 = arith.negf %80 : vector<8x128xf32>
    %82 = math.exp %81 : vector<8x128xf32>
    %cst_29 = arith.constant 1.000000e+00 : f32
    %83 = vector.broadcast %cst_29 : f32 to vector<8x128xf32>
    %84 = arith.addf %83, %82 : vector<8x128xf32>
    %85 = arith.divf %83, %84 : vector<8x128xf32>
    %86 = vector.extract_strided_slice %73 {offsets = [0, 256], sizes = [8, 128], strides = [1, 1]} : vector<8x512xf32> to vector<8x128xf32>
    %87 = math.tanh %86 : vector<8x128xf32>
    %88 = vector.extract_strided_slice %73 {offsets = [0, 384], sizes = [8, 128], strides = [1, 1]} : vector<8x512xf32> to vector<8x128xf32>
    %89 = arith.negf %88 : vector<8x128xf32>
    %90 = math.exp %89 : vector<8x128xf32>
    %cst_30 = arith.constant 1.000000e+00 : f32
    %91 = vector.broadcast %cst_30 : f32 to vector<8x128xf32>
    %92 = arith.addf %91, %90 : vector<8x128xf32>
    %93 = arith.divf %91, %92 : vector<8x128xf32>
    %94 = arith.mulf %85, %38 : vector<8x128xf32>
    %95 = arith.mulf %79, %87 : vector<8x128xf32>
    %96 = arith.addf %94, %95 : vector<8x128xf32>
    %97 = math.tanh %96 : vector<8x128xf32>
    %98 = arith.mulf %93, %97 : vector<8x128xf32>
    %c1_i32_31 = arith.constant 1 : i32
    %99 = arith.subi %c1_i32, %c1_i32_31 : i32
    %100 = arith.index_cast %99 : i32 to index
    %c0_32 = arith.constant 0 : index
    %c0_33 = arith.constant 0 : index
    %101 = vector.load %arg7[%100, %c0_32, %c0_33] : memref<8x8x128xf32, #tpu.memory_space<vmem>>, vector<1x8x128xf32>
    %102 = vector.shape_cast %101 : vector<1x8x128xf32> to vector<8x128xf32>
    %103 = vector.shape_cast %98 : vector<8x128xf32> to vector<1x8x128xf32>
    tpu.vector_store %arg7[%100, %c0_32, %c0_33], %103 {strides = array<i32>} : memref<8x8x128xf32, #tpu.memory_space<vmem>>, vector<1x8x128xf32>,
    %c2_i32 = arith.constant 2 : i32
    %104 = arith.index_cast %c2_i32 : i32 to index
    %c0_34 = arith.constant 0 : index
    %c0_35 = arith.constant 0 : index
    %105 = vector.load %arg1[%104, %c0_34, %c0_35] : memref<8x8x512xf32, #tpu.memory_space<vmem>>, vector<1x8x512xf32>
    %106 = vector.shape_cast %105 : vector<1x8x512xf32> to vector<8x512xf32>
    %cst_36 = arith.constant dense<0.000000e+00> : vector<8x512xf32>
    %107 = tpu.matmul %68, %0, %cst_36 {dimension_numbers = #tpu.dot_dimension_numbers<[1], [0], [0], [1], [0, 0, 1, 1], [], []>} : vector<8x128xf32>, vector<128x512xf32>, vector<8x512xf32> -> vector<8x512xf32>
    %108 = arith.addf %106, %107 : vector<8x512xf32>
    %109 = vector.extract_strided_slice %108 {offsets = [0, 0], sizes = [8, 128], strides = [1, 1]} : vector<8x512xf32> to vector<8x128xf32>
    %110 = arith.negf %109 : vector<8x128xf32>
    %111 = math.exp %110 : vector<8x128xf32>
    %cst_37 = arith.constant 1.000000e+00 : f32
    %112 = vector.broadcast %cst_37 : f32 to vector<8x128xf32>
    %113 = arith.addf %112, %111 : vector<8x128xf32>
    %114 = arith.divf %112, %113 : vector<8x128xf32>
    %115 = vector.extract_strided_slice %108 {offsets = [0, 128], sizes = [8, 128], strides = [1, 1]} : vector<8x512xf32> to vector<8x128xf32>
    %116 = arith.negf %115 : vector<8x128xf32>
    %117 = math.exp %116 : vector<8x128xf32>
    %cst_38 = arith.constant 1.000000e+00 : f32
    %118 = vector.broadcast %cst_38 : f32 to vector<8x128xf32>
    %119 = arith.addf %118, %117 : vector<8x128xf32>
    %120 = arith.divf %118, %119 : vector<8x128xf32>
    %121 = vector.extract_strided_slice %108 {offsets = [0, 256], sizes = [8, 128], strides = [1, 1]} : vector<8x512xf32> to vector<8x128xf32>
    %122 = math.tanh %121 : vector<8x128xf32>
    %123 = vector.extract_strided_slice %108 {offsets = [0, 384], sizes = [8, 128], strides = [1, 1]} : vector<8x512xf32> to vector<8x128xf32>
    %124 = arith.negf %123 : vector<8x128xf32>
    %125 = math.exp %124 : vector<8x128xf32>
    %cst_39 = arith.constant 1.000000e+00 : f32
    %126 = vector.broadcast %cst_39 : f32 to vector<8x128xf32>
    %127 = arith.addf %126, %125 : vector<8x128xf32>
    %128 = arith.divf %126, %127 : vector<8x128xf32>
    %129 = arith.mulf %120, %66 : vector<8x128xf32>
    %130 = arith.mulf %114, %122 : vector<8x128xf32>
    %131 = arith.addf %129, %130 : vector<8x128xf32>
    %132 = math.tanh %131 : vector<8x128xf32>
    %133 = arith.mulf %128, %132 : vector<8x128xf32>
    %cst_40 = arith.constant dense<0.000000e+00> : vector<8x512xf32>
    %134 = tpu.matmul %68, %1, %cst_40 {dimension_numbers = #tpu.dot_dimension_numbers<[1], [0], [0], [1], [0, 0, 1, 1], [], []>} : vector<8x128xf32>, vector<128x512xf32>, vector<8x512xf32> -> vector<8x512xf32>
    %135 = vector.broadcast %3 : vector<1x512xf32> to vector<8x512xf32>
    %136 = arith.addf %135, %134 : vector<8x512xf32>
    %cst_41 = arith.constant dense<0.000000e+00> : vector<8x512xf32>
    %137 = tpu.matmul %98, %2, %cst_41 {dimension_numbers = #tpu.dot_dimension_numbers<[1], [0], [0], [1], [0, 0, 1, 1], [], []>} : vector<8x128xf32>, vector<128x512xf32>, vector<8x512xf32> -> vector<8x512xf32>
    %138 = arith.addf %136, %137 : vector<8x512xf32>
    %139 = vector.extract_strided_slice %138 {offsets = [0, 0], sizes = [8, 128], strides = [1, 1]} : vector<8x512xf32> to vector<8x128xf32>
    %140 = arith.negf %139 : vector<8x128xf32>
    %141 = math.exp %140 : vector<8x128xf32>
    %cst_42 = arith.constant 1.000000e+00 : f32
    %142 = vector.broadcast %cst_42 : f32 to vector<8x128xf32>
    %143 = arith.addf %142, %141 : vector<8x128xf32>
    %144 = arith.divf %142, %143 : vector<8x128xf32>
    %145 = vector.extract_strided_slice %138 {offsets = [0, 128], sizes = [8, 128], strides = [1, 1]} : vector<8x512xf32> to vector<8x128xf32>
    %146 = arith.negf %145 : vector<8x128xf32>
    %147 = math.exp %146 : vector<8x128xf32>
    %cst_43 = arith.constant 1.000000e+00 : f32
    %148 = vector.broadcast %cst_43 : f32 to vector<8x128xf32>
    %149 = arith.addf %148, %147 : vector<8x128xf32>
    %150 = arith.divf %148, %149 : vector<8x128xf32>
    %151 = vector.extract_strided_slice %138 {offsets = [0, 256], sizes = [8, 128], strides = [1, 1]} : vector<8x512xf32> to vector<8x128xf32>
    %152 = math.tanh %151 : vector<8x128xf32>
    %153 = vector.extract_strided_slice %138 {offsets = [0, 384], sizes = [8, 128], strides = [1, 1]} : vector<8x512xf32> to vector<8x128xf32>
    %154 = arith.negf %153 : vector<8x128xf32>
    %155 = math.exp %154 : vector<8x128xf32>
    %cst_44 = arith.constant 1.000000e+00 : f32
    %156 = vector.broadcast %cst_44 : f32 to vector<8x128xf32>
    %157 = arith.addf %156, %155 : vector<8x128xf32>
    %158 = arith.divf %156, %157 : vector<8x128xf32>
    %159 = arith.mulf %150, %96 : vector<8x128xf32>
    %160 = arith.mulf %144, %152 : vector<8x128xf32>
    %161 = arith.addf %159, %160 : vector<8x128xf32>
    %162 = math.tanh %161 : vector<8x128xf32>
    %163 = arith.mulf %158, %162 : vector<8x128xf32>
    %c1_i32_45 = arith.constant 1 : i32
    %164 = arith.subi %c2_i32, %c1_i32_45 : i32
    %165 = arith.index_cast %164 : i32 to index
    %c0_46 = arith.constant 0 : index
    %c0_47 = arith.constant 0 : index
    %166 = vector.load %arg7[%165, %c0_46, %c0_47] : memref<8x8x128xf32, #tpu.memory_space<vmem>>, vector<1x8x128xf32>
    %167 = vector.shape_cast %166 : vector<1x8x128xf32> to vector<8x128xf32>
    %168 = vector.shape_cast %163 : vector<8x128xf32> to vector<1x8x128xf32>
    tpu.vector_store %arg7[%165, %c0_46, %c0_47], %168 {strides = array<i32>} : memref<8x8x128xf32, #tpu.memory_space<vmem>>, vector<1x8x128xf32>,
    %c3_i32 = arith.constant 3 : i32
    %169 = arith.index_cast %c3_i32 : i32 to index
    %c0_48 = arith.constant 0 : index
    %c0_49 = arith.constant 0 : index
    %170 = vector.load %arg1[%169, %c0_48, %c0_49] : memref<8x8x512xf32, #tpu.memory_space<vmem>>, vector<1x8x512xf32>
    %171 = vector.shape_cast %170 : vector<1x8x512xf32> to vector<8x512xf32>
    %cst_50 = arith.constant dense<0.000000e+00> : vector<8x512xf32>
    %172 = tpu.matmul %133, %0, %cst_50 {dimension_numbers = #tpu.dot_dimension_numbers<[1], [0], [0], [1], [0, 0, 1, 1], [], []>} : vector<8x128xf32>, vector<128x512xf32>, vector<8x512xf32> -> vector<8x512xf32>
    %173 = arith.addf %171, %172 : vector<8x512xf32>
    %174 = vector.extract_strided_slice %173 {offsets = [0, 0], sizes = [8, 128], strides = [1, 1]} : vector<8x512xf32> to vector<8x128xf32>
    %175 = arith.negf %174 : vector<8x128xf32>
    %176 = math.exp %175 : vector<8x128xf32>
    %cst_51 = arith.constant 1.000000e+00 : f32
    %177 = vector.broadcast %cst_51 : f32 to vector<8x128xf32>
    %178 = arith.addf %177, %176 : vector<8x128xf32>
    %179 = arith.divf %177, %178 : vector<8x128xf32>
    %180 = vector.extract_strided_slice %173 {offsets = [0, 128], sizes = [8, 128], strides = [1, 1]} : vector<8x512xf32> to vector<8x128xf32>
    %181 = arith.negf %180 : vector<8x128xf32>
    %182 = math.exp %181 : vector<8x128xf32>
    %cst_52 = arith.constant 1.000000e+00 : f32
    %183 = vector.broadcast %cst_52 : f32 to vector<8x128xf32>
    %184 = arith.addf %183, %182 : vector<8x128xf32>
    %185 = arith.divf %183, %184 : vector<8x128xf32>
    %186 = vector.extract_strided_slice %173 {offsets = [0, 256], sizes = [8, 128], strides = [1, 1]} : vector<8x512xf32> to vector<8x128xf32>
    %187 = math.tanh %186 : vector<8x128xf32>
    %188 = vector.extract_strided_slice %173 {offsets = [0, 384], sizes = [8, 128], strides = [1, 1]} : vector<8x512xf32> to vector<8x128xf32>
    %189 = arith.negf %188 : vector<8x128xf32>
    %190 = math.exp %189 : vector<8x128xf32>
    %cst_53 = arith.constant 1.000000e+00 : f32
    %191 = vector.broadcast %cst_53 : f32 to vector<8x128xf32>
    %192 = arith.addf %191, %190 : vector<8x128xf32>
    %193 = arith.divf %191, %192 : vector<8x128xf32>
    %194 = arith.mulf %185, %131 : vector<8x128xf32>
    %195 = arith.mulf %179, %187 : vector<8x128xf32>
    %196 = arith.addf %194, %195 : vector<8x128xf32>
    %197 = math.tanh %196 : vector<8x128xf32>
    %198 = arith.mulf %193, %197 : vector<8x128xf32>
    %cst_54 = arith.constant dense<0.000000e+00> : vector<8x512xf32>
    %199 = tpu.matmul %133, %1, %cst_54 {dimension_numbers = #tpu.dot_dimension_numbers<[1], [0], [0], [1], [0, 0, 1, 1], [], []>} : vector<8x128xf32>, vector<128x512xf32>, vector<8x512xf32> -> vector<8x512xf32>
    %200 = vector.broadcast %3 : vector<1x512xf32> to vector<8x512xf32>
    %201 = arith.addf %200, %199 : vector<8x512xf32>
    %cst_55 = arith.constant dense<0.000000e+00> : vector<8x512xf32>
    %202 = tpu.matmul %163, %2, %cst_55 {dimension_numbers = #tpu.dot_dimension_numbers<[1], [0], [0], [1], [0, 0, 1, 1], [], []>} : vector<8x128xf32>, vector<128x512xf32>, vector<8x512xf32> -> vector<8x512xf32>
    %203 = arith.addf %201, %202 : vector<8x512xf32>
    %204 = vector.extract_strided_slice %203 {offsets = [0, 0], sizes = [8, 128], strides = [1, 1]} : vector<8x512xf32> to vector<8x128xf32>
    %205 = arith.negf %204 : vector<8x128xf32>
    %206 = math.exp %205 : vector<8x128xf32>
    %cst_56 = arith.constant 1.000000e+00 : f32
    %207 = vector.broadcast %cst_56 : f32 to vector<8x128xf32>
    %208 = arith.addf %207, %206 : vector<8x128xf32>
    %209 = arith.divf %207, %208 : vector<8x128xf32>
    %210 = vector.extract_strided_slice %203 {offsets = [0, 128], sizes = [8, 128], strides = [1, 1]} : vector<8x512xf32> to vector<8x128xf32>
    %211 = arith.negf %210 : vector<8x128xf32>
    %212 = math.exp %211 : vector<8x128xf32>
    %cst_57 = arith.constant 1.000000e+00 : f32
    %213 = vector.broadcast %cst_57 : f32 to vector<8x128xf32>
    %214 = arith.addf %213, %212 : vector<8x128xf32>
    %215 = arith.divf %213, %214 : vector<8x128xf32>
    %216 = vector.extract_strided_slice %203 {offsets = [0, 256], sizes = [8, 128], strides = [1, 1]} : vector<8x512xf32> to vector<8x128xf32>
    %217 = math.tanh %216 : vector<8x128xf32>
    %218 = vector.extract_strided_slice %203 {offsets = [0, 384], sizes = [8, 128], strides = [1, 1]} : vector<8x512xf32> to vector<8x128xf32>
    %219 = arith.negf %218 : vector<8x128xf32>
    %220 = math.exp %219 : vector<8x128xf32>
    %cst_58 = arith.constant 1.000000e+00 : f32
    %221 = vector.broadcast %cst_58 : f32 to vector<8x128xf32>
    %222 = arith.addf %221, %220 : vector<8x128xf32>
    %223 = arith.divf %221, %222 : vector<8x128xf32>
    %224 = arith.mulf %215, %161 : vector<8x128xf32>
    %225 = arith.mulf %209, %217 : vector<8x128xf32>
    %226 = arith.addf %224, %225 : vector<8x128xf32>
    %227 = math.tanh %226 : vector<8x128xf32>
    %228 = arith.mulf %223, %227 : vector<8x128xf32>
    %c1_i32_59 = arith.constant 1 : i32
    %229 = arith.subi %c3_i32, %c1_i32_59 : i32
    %230 = arith.index_cast %229 : i32 to index
    %c0_60 = arith.constant 0 : index
    %c0_61 = arith.constant 0 : index
    %231 = vector.load %arg7[%230, %c0_60, %c0_61] : memref<8x8x128xf32, #tpu.memory_space<vmem>>, vector<1x8x128xf32>
    %232 = vector.shape_cast %231 : vector<1x8x128xf32> to vector<8x128xf32>
    %233 = vector.shape_cast %228 : vector<8x128xf32> to vector<1x8x128xf32>
    tpu.vector_store %arg7[%230, %c0_60, %c0_61], %233 {strides = array<i32>} : memref<8x8x128xf32, #tpu.memory_space<vmem>>, vector<1x8x128xf32>,
    %c4_i32 = arith.constant 4 : i32
    %234 = arith.index_cast %c4_i32 : i32 to index
    %c0_62 = arith.constant 0 : index
    %c0_63 = arith.constant 0 : index
    %235 = vector.load %arg1[%234, %c0_62, %c0_63] : memref<8x8x512xf32, #tpu.memory_space<vmem>>, vector<1x8x512xf32>
    %236 = vector.shape_cast %235 : vector<1x8x512xf32> to vector<8x512xf32>
    %cst_64 = arith.constant dense<0.000000e+00> : vector<8x512xf32>
    %237 = tpu.matmul %198, %0, %cst_64 {dimension_numbers = #tpu.dot_dimension_numbers<[1], [0], [0], [1], [0, 0, 1, 1], [], []>} : vector<8x128xf32>, vector<128x512xf32>, vector<8x512xf32> -> vector<8x512xf32>
    %238 = arith.addf %236, %237 : vector<8x512xf32>
    %239 = vector.extract_strided_slice %238 {offsets = [0, 0], sizes = [8, 128], strides = [1, 1]} : vector<8x512xf32> to vector<8x128xf32>
    %240 = arith.negf %239 : vector<8x128xf32>
    %241 = math.exp %240 : vector<8x128xf32>
    %cst_65 = arith.constant 1.000000e+00 : f32
    %242 = vector.broadcast %cst_65 : f32 to vector<8x128xf32>
    %243 = arith.addf %242, %241 : vector<8x128xf32>
    %244 = arith.divf %242, %243 : vector<8x128xf32>
    %245 = vector.extract_strided_slice %238 {offsets = [0, 128], sizes = [8, 128], strides = [1, 1]} : vector<8x512xf32> to vector<8x128xf32>
    %246 = arith.negf %245 : vector<8x128xf32>
    %247 = math.exp %246 : vector<8x128xf32>
    %cst_66 = arith.constant 1.000000e+00 : f32
    %248 = vector.broadcast %cst_66 : f32 to vector<8x128xf32>
    %249 = arith.addf %248, %247 : vector<8x128xf32>
    %250 = arith.divf %248, %249 : vector<8x128xf32>
    %251 = vector.extract_strided_slice %238 {offsets = [0, 256], sizes = [8, 128], strides = [1, 1]} : vector<8x512xf32> to vector<8x128xf32>
    %252 = math.tanh %251 : vector<8x128xf32>
    %253 = vector.extract_strided_slice %238 {offsets = [0, 384], sizes = [8, 128], strides = [1, 1]} : vector<8x512xf32> to vector<8x128xf32>
    %254 = arith.negf %253 : vector<8x128xf32>
    %255 = math.exp %254 : vector<8x128xf32>
    %cst_67 = arith.constant 1.000000e+00 : f32
    %256 = vector.broadcast %cst_67 : f32 to vector<8x128xf32>
    %257 = arith.addf %256, %255 : vector<8x128xf32>
    %258 = arith.divf %256, %257 : vector<8x128xf32>
    %259 = arith.mulf %250, %196 : vector<8x128xf32>
    %260 = arith.mulf %244, %252 : vector<8x128xf32>
    %261 = arith.addf %259, %260 : vector<8x128xf32>
    %262 = math.tanh %261 : vector<8x128xf32>
    %263 = arith.mulf %258, %262 : vector<8x128xf32>
    %cst_68 = arith.constant dense<0.000000e+00> : vector<8x512xf32>
    %264 = tpu.matmul %198, %1, %cst_68 {dimension_numbers = #tpu.dot_dimension_numbers<[1], [0], [0], [1], [0, 0, 1, 1], [], []>} : vector<8x128xf32>, vector<128x512xf32>, vector<8x512xf32> -> vector<8x512xf32>
    %265 = vector.broadcast %3 : vector<1x512xf32> to vector<8x512xf32>
    %266 = arith.addf %265, %264 : vector<8x512xf32>
    %cst_69 = arith.constant dense<0.000000e+00> : vector<8x512xf32>
    %267 = tpu.matmul %228, %2, %cst_69 {dimension_numbers = #tpu.dot_dimension_numbers<[1], [0], [0], [1], [0, 0, 1, 1], [], []>} : vector<8x128xf32>, vector<128x512xf32>, vector<8x512xf32> -> vector<8x512xf32>
    %268 = arith.addf %266, %267 : vector<8x512xf32>
    %269 = vector.extract_strided_slice %268 {offsets = [0, 0], sizes = [8, 128], strides = [1, 1]} : vector<8x512xf32> to vector<8x128xf32>
    %270 = arith.negf %269 : vector<8x128xf32>
    %271 = math.exp %270 : vector<8x128xf32>
    %cst_70 = arith.constant 1.000000e+00 : f32
    %272 = vector.broadcast %cst_70 : f32 to vector<8x128xf32>
    %273 = arith.addf %272, %271 : vector<8x128xf32>
    %274 = arith.divf %272, %273 : vector<8x128xf32>
    %275 = vector.extract_strided_slice %268 {offsets = [0, 128], sizes = [8, 128], strides = [1, 1]} : vector<8x512xf32> to vector<8x128xf32>
    %276 = arith.negf %275 : vector<8x128xf32>
    %277 = math.exp %276 : vector<8x128xf32>
    %cst_71 = arith.constant 1.000000e+00 : f32
    %278 = vector.broadcast %cst_71 : f32 to vector<8x128xf32>
    %279 = arith.addf %278, %277 : vector<8x128xf32>
    %280 = arith.divf %278, %279 : vector<8x128xf32>
    %281 = vector.extract_strided_slice %268 {offsets = [0, 256], sizes = [8, 128], strides = [1, 1]} : vector<8x512xf32> to vector<8x128xf32>
    %282 = math.tanh %281 : vector<8x128xf32>
    %283 = vector.extract_strided_slice %268 {offsets = [0, 384], sizes = [8, 128], strides = [1, 1]} : vector<8x512xf32> to vector<8x128xf32>
    %284 = arith.negf %283 : vector<8x128xf32>
    %285 = math.exp %284 : vector<8x128xf32>
    %cst_72 = arith.constant 1.000000e+00 : f32
    %286 = vector.broadcast %cst_72 : f32 to vector<8x128xf32>
    %287 = arith.addf %286, %285 : vector<8x128xf32>
    %288 = arith.divf %286, %287 : vector<8x128xf32>
    %289 = arith.mulf %280, %226 : vector<8x128xf32>
    %290 = arith.mulf %274, %282 : vector<8x128xf32>
    %291 = arith.addf %289, %290 : vector<8x128xf32>
    %292 = math.tanh %291 : vector<8x128xf32>
    %293 = arith.mulf %288, %292 : vector<8x128xf32>
    %c1_i32_73 = arith.constant 1 : i32
    %294 = arith.subi %c4_i32, %c1_i32_73 : i32
    %295 = arith.index_cast %294 : i32 to index
    %c0_74 = arith.constant 0 : index
    %c0_75 = arith.constant 0 : index
    %296 = vector.load %arg7[%295, %c0_74, %c0_75] : memref<8x8x128xf32, #tpu.memory_space<vmem>>, vector<1x8x128xf32>
    %297 = vector.shape_cast %296 : vector<1x8x128xf32> to vector<8x128xf32>
    %298 = vector.shape_cast %293 : vector<8x128xf32> to vector<1x8x128xf32>
    tpu.vector_store %arg7[%295, %c0_74, %c0_75], %298 {strides = array<i32>} : memref<8x8x128xf32, #tpu.memory_space<vmem>>, vector<1x8x128xf32>,
    %c5_i32 = arith.constant 5 : i32
    %299 = arith.index_cast %c5_i32 : i32 to index
    %c0_76 = arith.constant 0 : index
    %c0_77 = arith.constant 0 : index
    %300 = vector.load %arg1[%299, %c0_76, %c0_77] : memref<8x8x512xf32, #tpu.memory_space<vmem>>, vector<1x8x512xf32>
    %301 = vector.shape_cast %300 : vector<1x8x512xf32> to vector<8x512xf32>
    %cst_78 = arith.constant dense<0.000000e+00> : vector<8x512xf32>
    %302 = tpu.matmul %263, %0, %cst_78 {dimension_numbers = #tpu.dot_dimension_numbers<[1], [0], [0], [1], [0, 0, 1, 1], [], []>} : vector<8x128xf32>, vector<128x512xf32>, vector<8x512xf32> -> vector<8x512xf32>
    %303 = arith.addf %301, %302 : vector<8x512xf32>
    %304 = vector.extract_strided_slice %303 {offsets = [0, 0], sizes = [8, 128], strides = [1, 1]} : vector<8x512xf32> to vector<8x128xf32>
    %305 = arith.negf %304 : vector<8x128xf32>
    %306 = math.exp %305 : vector<8x128xf32>
    %cst_79 = arith.constant 1.000000e+00 : f32
    %307 = vector.broadcast %cst_79 : f32 to vector<8x128xf32>
    %308 = arith.addf %307, %306 : vector<8x128xf32>
    %309 = arith.divf %307, %308 : vector<8x128xf32>
    %310 = vector.extract_strided_slice %303 {offsets = [0, 128], sizes = [8, 128], strides = [1, 1]} : vector<8x512xf32> to vector<8x128xf32>
    %311 = arith.negf %310 : vector<8x128xf32>
    %312 = math.exp %311 : vector<8x128xf32>
    %cst_80 = arith.constant 1.000000e+00 : f32
    %313 = vector.broadcast %cst_80 : f32 to vector<8x128xf32>
    %314 = arith.addf %313, %312 : vector<8x128xf32>
    %315 = arith.divf %313, %314 : vector<8x128xf32>
    %316 = vector.extract_strided_slice %303 {offsets = [0, 256], sizes = [8, 128], strides = [1, 1]} : vector<8x512xf32> to vector<8x128xf32>
    %317 = math.tanh %316 : vector<8x128xf32>
    %318 = vector.extract_strided_slice %303 {offsets = [0, 384], sizes = [8, 128], strides = [1, 1]} : vector<8x512xf32> to vector<8x128xf32>
    %319 = arith.negf %318 : vector<8x128xf32>
    %320 = math.exp %319 : vector<8x128xf32>
    %cst_81 = arith.constant 1.000000e+00 : f32
    %321 = vector.broadcast %cst_81 : f32 to vector<8x128xf32>
    %322 = arith.addf %321, %320 : vector<8x128xf32>
    %323 = arith.divf %321, %322 : vector<8x128xf32>
    %324 = arith.mulf %315, %261 : vector<8x128xf32>
    %325 = arith.mulf %309, %317 : vector<8x128xf32>
    %326 = arith.addf %324, %325 : vector<8x128xf32>
    %327 = math.tanh %326 : vector<8x128xf32>
    %328 = arith.mulf %323, %327 : vector<8x128xf32>
    %cst_82 = arith.constant dense<0.000000e+00> : vector<8x512xf32>
    %329 = tpu.matmul %263, %1, %cst_82 {dimension_numbers = #tpu.dot_dimension_numbers<[1], [0], [0], [1], [0, 0, 1, 1], [], []>} : vector<8x128xf32>, vector<128x512xf32>, vector<8x512xf32> -> vector<8x512xf32>
    %330 = vector.broadcast %3 : vector<1x512xf32> to vector<8x512xf32>
    %331 = arith.addf %330, %329 : vector<8x512xf32>
    %cst_83 = arith.constant dense<0.000000e+00> : vector<8x512xf32>
    %332 = tpu.matmul %293, %2, %cst_83 {dimension_numbers = #tpu.dot_dimension_numbers<[1], [0], [0], [1], [0, 0, 1, 1], [], []>} : vector<8x128xf32>, vector<128x512xf32>, vector<8x512xf32> -> vector<8x512xf32>
    %333 = arith.addf %331, %332 : vector<8x512xf32>
    %334 = vector.extract_strided_slice %333 {offsets = [0, 0], sizes = [8, 128], strides = [1, 1]} : vector<8x512xf32> to vector<8x128xf32>
    %335 = arith.negf %334 : vector<8x128xf32>
    %336 = math.exp %335 : vector<8x128xf32>
    %cst_84 = arith.constant 1.000000e+00 : f32
    %337 = vector.broadcast %cst_84 : f32 to vector<8x128xf32>
    %338 = arith.addf %337, %336 : vector<8x128xf32>
    %339 = arith.divf %337, %338 : vector<8x128xf32>
    %340 = vector.extract_strided_slice %333 {offsets = [0, 128], sizes = [8, 128], strides = [1, 1]} : vector<8x512xf32> to vector<8x128xf32>
    %341 = arith.negf %340 : vector<8x128xf32>
    %342 = math.exp %341 : vector<8x128xf32>
    %cst_85 = arith.constant 1.000000e+00 : f32
    %343 = vector.broadcast %cst_85 : f32 to vector<8x128xf32>
    %344 = arith.addf %343, %342 : vector<8x128xf32>
    %345 = arith.divf %343, %344 : vector<8x128xf32>
    %346 = vector.extract_strided_slice %333 {offsets = [0, 256], sizes = [8, 128], strides = [1, 1]} : vector<8x512xf32> to vector<8x128xf32>
    %347 = math.tanh %346 : vector<8x128xf32>
    %348 = vector.extract_strided_slice %333 {offsets = [0, 384], sizes = [8, 128], strides = [1, 1]} : vector<8x512xf32> to vector<8x128xf32>
    %349 = arith.negf %348 : vector<8x128xf32>
    %350 = math.exp %349 : vector<8x128xf32>
    %cst_86 = arith.constant 1.000000e+00 : f32
    %351 = vector.broadcast %cst_86 : f32 to vector<8x128xf32>
    %352 = arith.addf %351, %350 : vector<8x128xf32>
    %353 = arith.divf %351, %352 : vector<8x128xf32>
    %354 = arith.mulf %345, %291 : vector<8x128xf32>
    %355 = arith.mulf %339, %347 : vector<8x128xf32>
    %356 = arith.addf %354, %355 : vector<8x128xf32>
    %357 = math.tanh %356 : vector<8x128xf32>
    %358 = arith.mulf %353, %357 : vector<8x128xf32>
    %c1_i32_87 = arith.constant 1 : i32
    %359 = arith.subi %c5_i32, %c1_i32_87 : i32
    %360 = arith.index_cast %359 : i32 to index
    %c0_88 = arith.constant 0 : index
    %c0_89 = arith.constant 0 : index
    %361 = vector.load %arg7[%360, %c0_88, %c0_89] : memref<8x8x128xf32, #tpu.memory_space<vmem>>, vector<1x8x128xf32>
    %362 = vector.shape_cast %361 : vector<1x8x128xf32> to vector<8x128xf32>
    %363 = vector.shape_cast %358 : vector<8x128xf32> to vector<1x8x128xf32>
    tpu.vector_store %arg7[%360, %c0_88, %c0_89], %363 {strides = array<i32>} : memref<8x8x128xf32, #tpu.memory_space<vmem>>, vector<1x8x128xf32>,
    %c6_i32 = arith.constant 6 : i32
    %364 = arith.index_cast %c6_i32 : i32 to index
    %c0_90 = arith.constant 0 : index
    %c0_91 = arith.constant 0 : index
    %365 = vector.load %arg1[%364, %c0_90, %c0_91] : memref<8x8x512xf32, #tpu.memory_space<vmem>>, vector<1x8x512xf32>
    %366 = vector.shape_cast %365 : vector<1x8x512xf32> to vector<8x512xf32>
    %cst_92 = arith.constant dense<0.000000e+00> : vector<8x512xf32>
    %367 = tpu.matmul %328, %0, %cst_92 {dimension_numbers = #tpu.dot_dimension_numbers<[1], [0], [0], [1], [0, 0, 1, 1], [], []>} : vector<8x128xf32>, vector<128x512xf32>, vector<8x512xf32> -> vector<8x512xf32>
    %368 = arith.addf %366, %367 : vector<8x512xf32>
    %369 = vector.extract_strided_slice %368 {offsets = [0, 0], sizes = [8, 128], strides = [1, 1]} : vector<8x512xf32> to vector<8x128xf32>
    %370 = arith.negf %369 : vector<8x128xf32>
    %371 = math.exp %370 : vector<8x128xf32>
    %cst_93 = arith.constant 1.000000e+00 : f32
    %372 = vector.broadcast %cst_93 : f32 to vector<8x128xf32>
    %373 = arith.addf %372, %371 : vector<8x128xf32>
    %374 = arith.divf %372, %373 : vector<8x128xf32>
    %375 = vector.extract_strided_slice %368 {offsets = [0, 128], sizes = [8, 128], strides = [1, 1]} : vector<8x512xf32> to vector<8x128xf32>
    %376 = arith.negf %375 : vector<8x128xf32>
    %377 = math.exp %376 : vector<8x128xf32>
    %cst_94 = arith.constant 1.000000e+00 : f32
    %378 = vector.broadcast %cst_94 : f32 to vector<8x128xf32>
    %379 = arith.addf %378, %377 : vector<8x128xf32>
    %380 = arith.divf %378, %379 : vector<8x128xf32>
    %381 = vector.extract_strided_slice %368 {offsets = [0, 256], sizes = [8, 128], strides = [1, 1]} : vector<8x512xf32> to vector<8x128xf32>
    %382 = math.tanh %381 : vector<8x128xf32>
    %383 = vector.extract_strided_slice %368 {offsets = [0, 384], sizes = [8, 128], strides = [1, 1]} : vector<8x512xf32> to vector<8x128xf32>
    %384 = arith.negf %383 : vector<8x128xf32>
    %385 = math.exp %384 : vector<8x128xf32>
    %cst_95 = arith.constant 1.000000e+00 : f32
    %386 = vector.broadcast %cst_95 : f32 to vector<8x128xf32>
    %387 = arith.addf %386, %385 : vector<8x128xf32>
    %388 = arith.divf %386, %387 : vector<8x128xf32>
    %389 = arith.mulf %380, %326 : vector<8x128xf32>
    %390 = arith.mulf %374, %382 : vector<8x128xf32>
    %391 = arith.addf %389, %390 : vector<8x128xf32>
    %392 = math.tanh %391 : vector<8x128xf32>
    %393 = arith.mulf %388, %392 : vector<8x128xf32>
    %cst_96 = arith.constant dense<0.000000e+00> : vector<8x512xf32>
    %394 = tpu.matmul %328, %1, %cst_96 {dimension_numbers = #tpu.dot_dimension_numbers<[1], [0], [0], [1], [0, 0, 1, 1], [], []>} : vector<8x128xf32>, vector<128x512xf32>, vector<8x512xf32> -> vector<8x512xf32>
    %395 = vector.broadcast %3 : vector<1x512xf32> to vector<8x512xf32>
    %396 = arith.addf %395, %394 : vector<8x512xf32>
    %cst_97 = arith.constant dense<0.000000e+00> : vector<8x512xf32>
    %397 = tpu.matmul %358, %2, %cst_97 {dimension_numbers = #tpu.dot_dimension_numbers<[1], [0], [0], [1], [0, 0, 1, 1], [], []>} : vector<8x128xf32>, vector<128x512xf32>, vector<8x512xf32> -> vector<8x512xf32>
    %398 = arith.addf %396, %397 : vector<8x512xf32>
    %399 = vector.extract_strided_slice %398 {offsets = [0, 0], sizes = [8, 128], strides = [1, 1]} : vector<8x512xf32> to vector<8x128xf32>
    %400 = arith.negf %399 : vector<8x128xf32>
    %401 = math.exp %400 : vector<8x128xf32>
    %cst_98 = arith.constant 1.000000e+00 : f32
    %402 = vector.broadcast %cst_98 : f32 to vector<8x128xf32>
    %403 = arith.addf %402, %401 : vector<8x128xf32>
    %404 = arith.divf %402, %403 : vector<8x128xf32>
    %405 = vector.extract_strided_slice %398 {offsets = [0, 128], sizes = [8, 128], strides = [1, 1]} : vector<8x512xf32> to vector<8x128xf32>
    %406 = arith.negf %405 : vector<8x128xf32>
    %407 = math.exp %406 : vector<8x128xf32>
    %cst_99 = arith.constant 1.000000e+00 : f32
    %408 = vector.broadcast %cst_99 : f32 to vector<8x128xf32>
    %409 = arith.addf %408, %407 : vector<8x128xf32>
    %410 = arith.divf %408, %409 : vector<8x128xf32>
    %411 = vector.extract_strided_slice %398 {offsets = [0, 256], sizes = [8, 128], strides = [1, 1]} : vector<8x512xf32> to vector<8x128xf32>
    %412 = math.tanh %411 : vector<8x128xf32>
    %413 = vector.extract_strided_slice %398 {offsets = [0, 384], sizes = [8, 128], strides = [1, 1]} : vector<8x512xf32> to vector<8x128xf32>
    %414 = arith.negf %413 : vector<8x128xf32>
    %415 = math.exp %414 : vector<8x128xf32>
    %cst_100 = arith.constant 1.000000e+00 : f32
    %416 = vector.broadcast %cst_100 : f32 to vector<8x128xf32>
    %417 = arith.addf %416, %415 : vector<8x128xf32>
    %418 = arith.divf %416, %417 : vector<8x128xf32>
    %419 = arith.mulf %410, %356 : vector<8x128xf32>
    %420 = arith.mulf %404, %412 : vector<8x128xf32>
    %421 = arith.addf %419, %420 : vector<8x128xf32>
    %422 = math.tanh %421 : vector<8x128xf32>
    %423 = arith.mulf %418, %422 : vector<8x128xf32>
    %c1_i32_101 = arith.constant 1 : i32
    %424 = arith.subi %c6_i32, %c1_i32_101 : i32
    %425 = arith.index_cast %424 : i32 to index
    %c0_102 = arith.constant 0 : index
    %c0_103 = arith.constant 0 : index
    %426 = vector.load %arg7[%425, %c0_102, %c0_103] : memref<8x8x128xf32, #tpu.memory_space<vmem>>, vector<1x8x128xf32>
    %427 = vector.shape_cast %426 : vector<1x8x128xf32> to vector<8x128xf32>
    %428 = vector.shape_cast %423 : vector<8x128xf32> to vector<1x8x128xf32>
    tpu.vector_store %arg7[%425, %c0_102, %c0_103], %428 {strides = array<i32>} : memref<8x8x128xf32, #tpu.memory_space<vmem>>, vector<1x8x128xf32>,
    %c7_i32 = arith.constant 7 : i32
    %429 = arith.index_cast %c7_i32 : i32 to index
    %c0_104 = arith.constant 0 : index
    %c0_105 = arith.constant 0 : index
    %430 = vector.load %arg1[%429, %c0_104, %c0_105] : memref<8x8x512xf32, #tpu.memory_space<vmem>>, vector<1x8x512xf32>
    %431 = vector.shape_cast %430 : vector<1x8x512xf32> to vector<8x512xf32>
    %cst_106 = arith.constant dense<0.000000e+00> : vector<8x512xf32>
    %432 = tpu.matmul %393, %0, %cst_106 {dimension_numbers = #tpu.dot_dimension_numbers<[1], [0], [0], [1], [0, 0, 1, 1], [], []>} : vector<8x128xf32>, vector<128x512xf32>, vector<8x512xf32> -> vector<8x512xf32>
    %433 = arith.addf %431, %432 : vector<8x512xf32>
    %434 = vector.extract_strided_slice %433 {offsets = [0, 0], sizes = [8, 128], strides = [1, 1]} : vector<8x512xf32> to vector<8x128xf32>
    %435 = arith.negf %434 : vector<8x128xf32>
    %436 = math.exp %435 : vector<8x128xf32>
    %cst_107 = arith.constant 1.000000e+00 : f32
    %437 = vector.broadcast %cst_107 : f32 to vector<8x128xf32>
    %438 = arith.addf %437, %436 : vector<8x128xf32>
    %439 = arith.divf %437, %438 : vector<8x128xf32>
    %440 = vector.extract_strided_slice %433 {offsets = [0, 128], sizes = [8, 128], strides = [1, 1]} : vector<8x512xf32> to vector<8x128xf32>
    %441 = arith.negf %440 : vector<8x128xf32>
    %442 = math.exp %441 : vector<8x128xf32>
    %cst_108 = arith.constant 1.000000e+00 : f32
    %443 = vector.broadcast %cst_108 : f32 to vector<8x128xf32>
    %444 = arith.addf %443, %442 : vector<8x128xf32>
    %445 = arith.divf %443, %444 : vector<8x128xf32>
    %446 = vector.extract_strided_slice %433 {offsets = [0, 256], sizes = [8, 128], strides = [1, 1]} : vector<8x512xf32> to vector<8x128xf32>
    %447 = math.tanh %446 : vector<8x128xf32>
    %448 = vector.extract_strided_slice %433 {offsets = [0, 384], sizes = [8, 128], strides = [1, 1]} : vector<8x512xf32> to vector<8x128xf32>
    %449 = arith.negf %448 : vector<8x128xf32>
    %450 = math.exp %449 : vector<8x128xf32>
    %cst_109 = arith.constant 1.000000e+00 : f32
    %451 = vector.broadcast %cst_109 : f32 to vector<8x128xf32>
    %452 = arith.addf %451, %450 : vector<8x128xf32>
    %453 = arith.divf %451, %452 : vector<8x128xf32>
    %454 = arith.mulf %445, %391 : vector<8x128xf32>
    %455 = arith.mulf %439, %447 : vector<8x128xf32>
    %456 = arith.addf %454, %455 : vector<8x128xf32>
    %457 = math.tanh %456 : vector<8x128xf32>
    %458 = arith.mulf %453, %457 : vector<8x128xf32>
    %cst_110 = arith.constant dense<0.000000e+00> : vector<8x512xf32>
    %459 = tpu.matmul %393, %1, %cst_110 {dimension_numbers = #tpu.dot_dimension_numbers<[1], [0], [0], [1], [0, 0, 1, 1], [], []>} : vector<8x128xf32>, vector<128x512xf32>, vector<8x512xf32> -> vector<8x512xf32>
    %460 = vector.broadcast %3 : vector<1x512xf32> to vector<8x512xf32>
    %461 = arith.addf %460, %459 : vector<8x512xf32>
    %cst_111 = arith.constant dense<0.000000e+00> : vector<8x512xf32>
    %462 = tpu.matmul %423, %2, %cst_111 {dimension_numbers = #tpu.dot_dimension_numbers<[1], [0], [0], [1], [0, 0, 1, 1], [], []>} : vector<8x128xf32>, vector<128x512xf32>, vector<8x512xf32> -> vector<8x512xf32>
    %463 = arith.addf %461, %462 : vector<8x512xf32>
    %464 = vector.extract_strided_slice %463 {offsets = [0, 0], sizes = [8, 128], strides = [1, 1]} : vector<8x512xf32> to vector<8x128xf32>
    %465 = arith.negf %464 : vector<8x128xf32>
    %466 = math.exp %465 : vector<8x128xf32>
    %cst_112 = arith.constant 1.000000e+00 : f32
    %467 = vector.broadcast %cst_112 : f32 to vector<8x128xf32>
    %468 = arith.addf %467, %466 : vector<8x128xf32>
    %469 = arith.divf %467, %468 : vector<8x128xf32>
    %470 = vector.extract_strided_slice %463 {offsets = [0, 128], sizes = [8, 128], strides = [1, 1]} : vector<8x512xf32> to vector<8x128xf32>
    %471 = arith.negf %470 : vector<8x128xf32>
    %472 = math.exp %471 : vector<8x128xf32>
    %cst_113 = arith.constant 1.000000e+00 : f32
    %473 = vector.broadcast %cst_113 : f32 to vector<8x128xf32>
    %474 = arith.addf %473, %472 : vector<8x128xf32>
    %475 = arith.divf %473, %474 : vector<8x128xf32>
    %476 = vector.extract_strided_slice %463 {offsets = [0, 256], sizes = [8, 128], strides = [1, 1]} : vector<8x512xf32> to vector<8x128xf32>
    %477 = math.tanh %476 : vector<8x128xf32>
    %478 = vector.extract_strided_slice %463 {offsets = [0, 384], sizes = [8, 128], strides = [1, 1]} : vector<8x512xf32> to vector<8x128xf32>
    %479 = arith.negf %478 : vector<8x128xf32>
    %480 = math.exp %479 : vector<8x128xf32>
    %cst_114 = arith.constant 1.000000e+00 : f32
    %481 = vector.broadcast %cst_114 : f32 to vector<8x128xf32>
    %482 = arith.addf %481, %480 : vector<8x128xf32>
    %483 = arith.divf %481, %482 : vector<8x128xf32>
    %484 = arith.mulf %475, %421 : vector<8x128xf32>
    %485 = arith.mulf %469, %477 : vector<8x128xf32>
    %486 = arith.addf %484, %485 : vector<8x128xf32>
    %487 = math.tanh %486 : vector<8x128xf32>
    %488 = arith.mulf %483, %487 : vector<8x128xf32>
    %c1_i32_115 = arith.constant 1 : i32
    %489 = arith.subi %c7_i32, %c1_i32_115 : i32
    %490 = arith.index_cast %489 : i32 to index
    %c0_116 = arith.constant 0 : index
    %c0_117 = arith.constant 0 : index
    %491 = vector.load %arg7[%490, %c0_116, %c0_117] : memref<8x8x128xf32, #tpu.memory_space<vmem>>, vector<1x8x128xf32>
    %492 = vector.shape_cast %491 : vector<1x8x128xf32> to vector<8x128xf32>
    %493 = vector.shape_cast %488 : vector<8x128xf32> to vector<1x8x128xf32>
    tpu.vector_store %arg7[%490, %c0_116, %c0_117], %493 {strides = array<i32>} : memref<8x8x128xf32, #tpu.memory_space<vmem>>, vector<1x8x128xf32>,
    %c7_i32_118 = arith.constant 7 : i32
    %c0_119 = arith.constant 0 : index
    %c0_120 = arith.constant 0 : index
    %c0_121 = arith.constant 0 : index
    %494 = vector.load %arg8[%c0_119, %c0_120, %c0_121] : memref<2x8x128xf32, #tpu.memory_space<vmem>>, vector<1x8x128xf32>
    %495 = vector.shape_cast %494 : vector<1x8x128xf32> to vector<8x128xf32>
    %496 = vector.shape_cast %458 : vector<8x128xf32> to vector<1x8x128xf32>
    tpu.vector_store %arg8[%c0_119, %c0_120, %c0_121], %496 {strides = array<i32>} : memref<2x8x128xf32, #tpu.memory_space<vmem>>, vector<1x8x128xf32>,
    %c0_122 = arith.constant 0 : index
    %c0_123 = arith.constant 0 : index
    %c0_124 = arith.constant 0 : index
    %497 = vector.load %arg9[%c0_122, %c0_123, %c0_124] : memref<2x8x128xf32, #tpu.memory_space<vmem>>, vector<1x8x128xf32>
    %498 = vector.shape_cast %497 : vector<1x8x128xf32> to vector<8x128xf32>
    %499 = vector.shape_cast %456 : vector<8x128xf32> to vector<1x8x128xf32>
    tpu.vector_store %arg9[%c0_122, %c0_123, %c0_124], %499 {strides = array<i32>} : memref<2x8x128xf32, #tpu.memory_space<vmem>>, vector<1x8x128xf32>,
    %cst_125 = arith.constant dense<0.000000e+00> : vector<8x512xf32>
    %500 = tpu.matmul %458, %1, %cst_125 {dimension_numbers = #tpu.dot_dimension_numbers<[1], [0], [0], [1], [0, 0, 1, 1], [], []>} : vector<8x128xf32>, vector<128x512xf32>, vector<8x512xf32> -> vector<8x512xf32>
    %501 = vector.broadcast %3 : vector<1x512xf32> to vector<8x512xf32>
    %502 = arith.addf %501, %500 : vector<8x512xf32>
    %cst_126 = arith.constant dense<0.000000e+00> : vector<8x512xf32>
    %503 = tpu.matmul %488, %2, %cst_126 {dimension_numbers = #tpu.dot_dimension_numbers<[1], [0], [0], [1], [0, 0, 1, 1], [], []>} : vector<8x128xf32>, vector<128x512xf32>, vector<8x512xf32> -> vector<8x512xf32>
    %504 = arith.addf %502, %503 : vector<8x512xf32>
    %505 = vector.extract_strided_slice %504 {offsets = [0, 0], sizes = [8, 128], strides = [1, 1]} : vector<8x512xf32> to vector<8x128xf32>
    %506 = arith.negf %505 : vector<8x128xf32>
    %507 = math.exp %506 : vector<8x128xf32>
    %cst_127 = arith.constant 1.000000e+00 : f32
    %508 = vector.broadcast %cst_127 : f32 to vector<8x128xf32>
    %509 = arith.addf %508, %507 : vector<8x128xf32>
    %510 = arith.divf %508, %509 : vector<8x128xf32>
    %511 = vector.extract_strided_slice %504 {offsets = [0, 128], sizes = [8, 128], strides = [1, 1]} : vector<8x512xf32> to vector<8x128xf32>
    %512 = arith.negf %511 : vector<8x128xf32>
    %513 = math.exp %512 : vector<8x128xf32>
    %cst_128 = arith.constant 1.000000e+00 : f32
    %514 = vector.broadcast %cst_128 : f32 to vector<8x128xf32>
    %515 = arith.addf %514, %513 : vector<8x128xf32>
    %516 = arith.divf %514, %515 : vector<8x128xf32>
    %517 = vector.extract_strided_slice %504 {offsets = [0, 256], sizes = [8, 128], strides = [1, 1]} : vector<8x512xf32> to vector<8x128xf32>
    %518 = math.tanh %517 : vector<8x128xf32>
    %519 = vector.extract_strided_slice %504 {offsets = [0, 384], sizes = [8, 128], strides = [1, 1]} : vector<8x512xf32> to vector<8x128xf32>
    %520 = arith.negf %519 : vector<8x128xf32>
    %521 = math.exp %520 : vector<8x128xf32>
    %cst_129 = arith.constant 1.000000e+00 : f32
    %522 = vector.broadcast %cst_129 : f32 to vector<8x128xf32>
    %523 = arith.addf %522, %521 : vector<8x128xf32>
    %524 = arith.divf %522, %523 : vector<8x128xf32>
    %525 = arith.mulf %516, %486 : vector<8x128xf32>
    %526 = arith.mulf %510, %518 : vector<8x128xf32>
    %527 = arith.addf %525, %526 : vector<8x128xf32>
    %528 = math.tanh %527 : vector<8x128xf32>
    %529 = arith.mulf %524, %528 : vector<8x128xf32>
    %c7 = arith.constant 7 : index
    %c0_130 = arith.constant 0 : index
    %c0_131 = arith.constant 0 : index
    %530 = vector.load %arg7[%c7, %c0_130, %c0_131] : memref<8x8x128xf32, #tpu.memory_space<vmem>>, vector<1x8x128xf32>
    %531 = vector.shape_cast %530 : vector<1x8x128xf32> to vector<8x128xf32>
    %532 = vector.shape_cast %529 : vector<8x128xf32> to vector<1x8x128xf32>
    tpu.vector_store %arg7[%c7, %c0_130, %c0_131], %532 {strides = array<i32>} : memref<8x8x128xf32, #tpu.memory_space<vmem>>, vector<1x8x128xf32>,
    %c1_132 = arith.constant 1 : index
    %c0_133 = arith.constant 0 : index
    %c0_134 = arith.constant 0 : index
    %533 = vector.load %arg8[%c1_132, %c0_133, %c0_134] : memref<2x8x128xf32, #tpu.memory_space<vmem>>, vector<1x8x128xf32>
    %534 = vector.shape_cast %533 : vector<1x8x128xf32> to vector<8x128xf32>
    %535 = vector.shape_cast %529 : vector<8x128xf32> to vector<1x8x128xf32>
    tpu.vector_store %arg8[%c1_132, %c0_133, %c0_134], %535 {strides = array<i32>} : memref<2x8x128xf32, #tpu.memory_space<vmem>>, vector<1x8x128xf32>,
    %c1_135 = arith.constant 1 : index
    %c0_136 = arith.constant 0 : index
    %c0_137 = arith.constant 0 : index
    %536 = vector.load %arg9[%c1_135, %c0_136, %c0_137] : memref<2x8x128xf32, #tpu.memory_space<vmem>>, vector<1x8x128xf32>
    %537 = vector.shape_cast %536 : vector<1x8x128xf32> to vector<8x128xf32>
    %538 = vector.shape_cast %527 : vector<8x128xf32> to vector<1x8x128xf32>
    tpu.vector_store %arg9[%c1_135, %c0_136, %c0_137], %538 {strides = array<i32>} : memref<2x8x128xf32, #tpu.memory_space<vmem>>, vector<1x8x128xf32>,
    return
  }
  func.func @transform_0(%arg0: i32) -> (i32, i32, i32) {
    %c0_i32 = arith.constant 0 : i32
    %c0_i32_0 = arith.constant 0 : i32
    %c0_i32_1 = arith.constant 0 : i32
    %c0_i32_2 = arith.constant 0 : i32
    return %c0_i32, %c0_i32_0, %c0_i32_1 : i32, i32, i32
  }
  func.func @transform_1(%arg0: i32) -> (i32, i32, i32) {
    %c0_i32 = arith.constant 0 : i32
    %c0_i32_0 = arith.constant 0 : i32
    %c0_i32_1 = arith.constant 0 : i32
    %c0_i32_2 = arith.constant 0 : i32
    return %c0_i32, %c0_i32_0, %c0_i32_1 : i32, i32, i32
  }
  func.func @transform_2(%arg0: i32) -> (i32, i32) {
    %c0_i32 = arith.constant 0 : i32
    %c0_i32_0 = arith.constant 0 : i32
    %c0_i32_1 = arith.constant 0 : i32
    return %c0_i32, %c0_i32_0 : i32, i32
  }
  func.func @transform_3(%arg0: i32) -> (i32, i32) {
    %c0_i32 = arith.constant 0 : i32
    %c0_i32_0 = arith.constant 0 : i32
    %c0_i32_1 = arith.constant 0 : i32
    return %c0_i32, %c0_i32_0 : i32, i32
  }
  func.func @transform_4(%arg0: i32) -> (i32, i32) {
    %c0_i32 = arith.constant 0 : i32
    %c0_i32_0 = arith.constant 0 : i32
    %c0_i32_1 = arith.constant 0 : i32
    return %c0_i32, %c0_i32_0 : i32, i32
  }
  func.func @transform_5(%arg0: i32) -> (i32, i32) {
    %c0_i32 = arith.constant 0 : i32
    %c0_i32_0 = arith.constant 0 : i32
    %c0_i32_1 = arith.constant 0 : i32
    return %c0_i32, %c0_i32_0 : i32, i32
  }
  func.func @transform_6(%arg0: i32) -> (i32, i32, i32) {
    %c0_i32 = arith.constant 0 : i32
    %c0_i32_0 = arith.constant 0 : i32
    %c0_i32_1 = arith.constant 0 : i32
    %c0_i32_2 = arith.constant 0 : i32
    return %c0_i32, %c0_i32_0, %c0_i32_1 : i32, i32, i32
  }
  func.func @transform_7(%arg0: i32) -> (i32, i32, i32) {
    %c0_i32 = arith.constant 0 : i32
    %c0_i32_0 = arith.constant 0 : i32
    %c0_i32_1 = arith.constant 0 : i32
    %c0_i32_2 = arith.constant 0 : i32
    return %c0_i32, %c0_i32_0, %c0_i32_1 : i32, i32, i32
  }
  func.func @transform_8(%arg0: i32) -> (i32, i32, i32) {
    %c0_i32 = arith.constant 0 : i32
    %c0_i32_0 = arith.constant 0 : i32
    %c0_i32_1 = arith.constant 0 : i32
    %c0_i32_2 = arith.constant 0 : i32
    return %c0_i32, %c0_i32_0, %c0_i32_1 : i32, i32, i32
  }
}

</mosaic_0001>

<llo_original>
// kernel: network_forward.1
$region0: #{network_forward.1}
  #allocation0 [shape = 'u32[]', space=smem, size = 0x4, offset = 0x4, fixed_abs, tag = 'smem constant byte address 0x4 - core index']
  #allocation1 [shape = 'u32[144,128]{1,0:T(1,128)}', space=vmem, size = 0x12000, scoped, tag = 'internal scratch']
  %s0 = inlined_call_operand.vmem [shape: f32[8,8,512], index: 0, kind: input, shape index: {}]
  %s1 = inlined_call_operand.vmem [shape: f32[2,8,128], index: 1, kind: input, shape index: {}]
  %s2 = inlined_call_operand.vmem [shape: f32[128,512], index: 2, kind: input, shape index: {}]
  %s3 = inlined_call_operand.vmem [shape: f32[128,512], index: 3, kind: input, shape index: {}]
  %s4 = inlined_call_operand.vmem [shape: f32[128,512], index: 4, kind: input, shape index: {}]
  %s5 = inlined_call_operand.vmem [shape: f32[1,512], index: 5, kind: input, shape index: {}]
  %s6 = inlined_call_operand.hbm [shape: f32[8,8,128], index: 6, kind: output, shape index: {0}]
  %s7 = inlined_call_operand.hbm [shape: f32[2,8,128], index: 7, kind: output, shape index: {1}]
  %s8 = inlined_call_operand.hbm [shape: f32[2,8,128], index: 8, kind: output, shape index: {2}]
  %9 = xla_tuple %s6, %s7, %s8
  %s10 = sld [smem:[#allocation0]]
  $region50: #{network_forward.1} parent=0
    _
  %s12 = ssub.s32 1, %s10
  %s13 = scalar_select 0, %s12, %s10
  $region1: #{network_forward.1} parent=0
    #allocation2 [shape = 'u8[32768]{0}', space=vmem, size = 0x8000, scoped, tag = 'output window, operand 0, single buffered']
    #allocation3 [shape = 's32[1]{0}', space=sflag, size = 0x4, scoped, tag = 'scoped memory for network_forward.1']
    #allocation4 [shape = 'u8[8192]{0}', space=vmem, size = 0x2000, scoped, tag = 'output window, operand 1, single buffered']
    #allocation5 [shape = 's32[1]{0}', space=sflag, size = 0x4, scoped, tag = 'scoped memory for network_forward.1']
    #allocation6 [shape = 'u8[8192]{0}', space=vmem, size = 0x2000, scoped, tag = 'output window, operand 2, single buffered']
    %14 = vsyncpa [#allocation3], 0
    %15 = vsyncpa [#allocation5], 0
    // Predicated region
    $region2: #{network_forward.1} parent=1 // pred_check
      _
    $region3: #{network_forward.1} parent=1 // pred_check_branch
      %17 = sbr.rel (0) target = $region5
    $region4: #{network_forward.1} parent=1 // pred_region
      _
    $region5: #{network_forward.1} parent=1 // pred_fallthru
      _
    // Predicated region
    $region6: #{network_forward.1} parent=1 // pred_check
      _
    $region7: #{network_forward.1} parent=1 // pred_check_branch
      %19 = sbr.rel (0) target = $region9
    $region8: #{network_forward.1} parent=1 // pred_region
      _
    $region9: #{network_forward.1} parent=1 // pred_fallthru
      _
    // Predicated region
    $region10: #{network_forward.1} parent=1 // pred_check
      _
    $region11: #{network_forward.1} parent=1 // pred_check_branch
      %21 = sbr.rel (0) target = $region13
    $region12: #{network_forward.1} parent=1 // pred_region
      _
    $region13: #{network_forward.1} parent=1 // pred_fallthru
      _
    // Predicated region
    $region14: #{network_forward.1} parent=1 // pred_check
      _
    $region15: #{network_forward.1} parent=1 // pred_check_branch
      %23 = sbr.rel (0) target = $region17
    $region16: #{network_forward.1} parent=1 // pred_region
      _
    $region17: #{network_forward.1} parent=1 // pred_fallthru
      _
    // Predicated region
    $region18: #{network_forward.1} parent=1 // pred_check
      _
    $region19: #{network_forward.1} parent=1 // pred_check_branch
      %25 = sbr.rel (0) target = $region21
    $region20: #{network_forward.1} parent=1 // pred_region
      _
    $region21: #{network_forward.1} parent=1 // pred_fallthru
      _
    // Predicated region
    $region22: #{network_forward.1} parent=1 // pred_check
      _
    $region23: #{network_forward.1} parent=1 // pred_check_branch
      %27 = sbr.rel (0) target = $region25
    $region24: #{network_forward.1} parent=1 // pred_region
      _
    $region25: #{network_forward.1} parent=1 // pred_fallthru
      _
    %v28 = vld [vmem:[%s2] sm:$0xff]
    %v29 = vld [vmem:[%s2 + $0x8] sm:$0xff]
    %v30 = vld [vmem:[%s2 + $0x10] sm:$0xff]
    %v31 = vld [vmem:[%s2 + $0x18] sm:$0xff]
    %v32 = vld [vmem:[%s2 + $0x20] sm:$0xff]
    %v33 = vld [vmem:[%s2 + $0x28] sm:$0xff]
    %v34 = vld [vmem:[%s2 + $0x30] sm:$0xff]
    %v35 = vld [vmem:[%s2 + $0x38] sm:$0xff]
    %v36 = vld [vmem:[%s2 + $0x40] sm:$0xff]
    %v37 = vld [vmem:[%s2 + $0x48] sm:$0xff]
    %v38 = vld [vmem:[%s2 + $0x50] sm:$0xff]
    %v39 = vld [vmem:[%s2 + $0x58] sm:$0xff]
    %v40 = vld [vmem:[%s2 + $0x60] sm:$0xff]
    %v41 = vld [vmem:[%s2 + $0x68] sm:$0xff]
    %v42 = vld [vmem:[%s2 + $0x70] sm:$0xff]
    %v43 = vld [vmem:[%s2 + $0x78] sm:$0xff]
    %v44 = vld [vmem:[%s2 + $0x80] sm:$0xff]
    %v45 = vld [vmem:[%s2 + $0x88] sm:$0xff]
    %v46 = vld [vmem:[%s2 + $0x90] sm:$0xff]
    %v47 = vld [vmem:[%s2 + $0x98] sm:$0xff]
    %v48 = vld [vmem:[%s2 + $0xa0] sm:$0xff]
    %v49 = vld [vmem:[%s2 + $0xa8] sm:$0xff]
    %v50 = vld [vmem:[%s2 + $0xb0] sm:$0xff]
    %v51 = vld [vmem:[%s2 + $0xb8] sm:$0xff]
    %v52 = vld [vmem:[%s2 + $0xc0] sm:$0xff]
    %v53 = vld [vmem:[%s2 + $0xc8] sm:$0xff]
    %v54 = vld [vmem:[%s2 + $0xd0] sm:$0xff]
    %v55 = vld [vmem:[%s2 + $0xd8] sm:$0xff]
    %v56 = vld [vmem:[%s2 + $0xe0] sm:$0xff]
    %v57 = vld [vmem:[%s2 + $0xe8] sm:$0xff]
    %v58 = vld [vmem:[%s2 + $0xf0] sm:$0xff]
    %v59 = vld [vmem:[%s2 + $0xf8] sm:$0xff]
    %v60 = vld [vmem:[%s2 + $0x100] sm:$0xff]
    %v61 = vld [vmem:[%s2 + $0x108] sm:$0xff]
    %v62 = vld [vmem:[%s2 + $0x110] sm:$0xff]
    %v63 = vld [vmem:[%s2 + $0x118] sm:$0xff]
    %v64 = vld [vmem:[%s2 + $0x120] sm:$0xff]
    %v65 = vld [vmem:[%s2 + $0x128] sm:$0xff]
    %v66 = vld [vmem:[%s2 + $0x130] sm:$0xff]
    %v67 = vld [vmem:[%s2 + $0x138] sm:$0xff]
    %v68 = vld [vmem:[%s2 + $0x140] sm:$0xff]
    %v69 = vld [vmem:[%s2 + $0x148] sm:$0xff]
    %v70 = vld [vmem:[%s2 + $0x150] sm:$0xff]
    %v71 = vld [vmem:[%s2 + $0x158] sm:$0xff]
    %v72 = vld [vmem:[%s2 + $0x160] sm:$0xff]
    %v73 = vld [vmem:[%s2 + $0x168] sm:$0xff]
    %v74 = vld [vmem:[%s2 + $0x170] sm:$0xff]
    %v75 = vld [vmem:[%s2 + $0x178] sm:$0xff]
    %v76 = vld [vmem:[%s2 + $0x180] sm:$0xff]
    %v77 = vld [vmem:[%s2 + $0x188] sm:$0xff]
    %v78 = vld [vmem:[%s2 + $0x190] sm:$0xff]
    %v79 = vld [vmem:[%s2 + $0x198] sm:$0xff]
    %v80 = vld [vmem:[%s2 + $0x1a0] sm:$0xff]
    %v81 = vld [vmem:[%s2 + $0x1a8] sm:$0xff]
    %v82 = vld [vmem:[%s2 + $0x1b0] sm:$0xff]
    %v83 = vld [vmem:[%s2 + $0x1b8] sm:$0xff]
    %v84 = vld [vmem:[%s2 + $0x1c0] sm:$0xff]
    %v85 = vld [vmem:[%s2 + $0x1c8] sm:$0xff]
    %v86 = vld [vmem:[%s2 + $0x1d0] sm:$0xff]
    %v87 = vld [vmem:[%s2 + $0x1d8] sm:$0xff]
    %v88 = vld [vmem:[%s2 + $0x1e0] sm:$0xff]
    %v89 = vld [vmem:[%s2 + $0x1e8] sm:$0xff]
    %v90 = vld [vmem:[%s2 + $0x1f0] sm:$0xff]
    %v91 = vld [vmem:[%s2 + $0x1f8] sm:$0xff]
    %v92 = vld [vmem:[%s3] sm:$0xff]
    %v93 = vld [vmem:[%s3 + $0x8] sm:$0xff]
    %v94 = vld [vmem:[%s3 + $0x10] sm:$0xff]
    %v95 = vld [vmem:[%s3 + $0x18] sm:$0xff]
    %v96 = vld [vmem:[%s3 + $0x20] sm:$0xff]
    %v97 = vld [vmem:[%s3 + $0x28] sm:$0xff]
    %v98 = vld [vmem:[%s3 + $0x30] sm:$0xff]
    %v99 = vld [vmem:[%s3 + $0x38] sm:$0xff]
    %v100 = vld [vmem:[%s3 + $0x40] sm:$0xff]
    %v101 = vld [vmem:[%s3 + $0x48] sm:$0xff]
    %v102 = vld [vmem:[%s3 + $0x50] sm:$0xff]
    %v103 = vld [vmem:[%s3 + $0x58] sm:$0xff]
    %v104 = vld [vmem:[%s3 + $0x60] sm:$0xff]
    %v105 = vld [vmem:[%s3 + $0x68] sm:$0xff]
    %v106 = vld [vmem:[%s3 + $0x70] sm:$0xff]
    %v107 = vld [vmem:[%s3 + $0x78] sm:$0xff]
    %v108 = vld [vmem:[%s3 + $0x80] sm:$0xff]
    %v109 = vld [vmem:[%s3 + $0x88] sm:$0xff]
    %v110 = vld [vmem:[%s3 + $0x90] sm:$0xff]
    %v111 = vld [vmem:[%s3 + $0x98] sm:$0xff]
    %v112 = vld [vmem:[%s3 + $0xa0] sm:$0xff]
    %v113 = vld [vmem:[%s3 + $0xa8] sm:$0xff]
    %v114 = vld [vmem:[%s3 + $0xb0] sm:$0xff]
    %v115 = vld [vmem:[%s3 + $0xb8] sm:$0xff]
    %v116 = vld [vmem:[%s3 + $0xc0] sm:$0xff]
    %v117 = vld [vmem:[%s3 + $0xc8] sm:$0xff]
    %v118 = vld [vmem:[%s3 + $0xd0] sm:$0xff]
    %v119 = vld [vmem:[%s3 + $0xd8] sm:$0xff]
    %v120 = vld [vmem:[%s3 + $0xe0] sm:$0xff]
    %v121 = vld [vmem:[%s3 + $0xe8] sm:$0xff]
    %v122 = vld [vmem:[%s3 + $0xf0] sm:$0xff]
    %v123 = vld [vmem:[%s3 + $0xf8] sm:$0xff]
    %v124 = vld [vmem:[%s3 + $0x100] sm:$0xff]
    %v125 = vld [vmem:[%s3 + $0x108] sm:$0xff]
    %v126 = vld [vmem:[%s3 + $0x110] sm:$0xff]
    %v127 = vld [vmem:[%s3 + $0x118] sm:$0xff]
    %v128 = vld [vmem:[%s3 + $0x120] sm:$0xff]
    %v129 = vld [vmem:[%s3 + $0x128] sm:$0xff]
    %v130 = vld [vmem:[%s3 + $0x130] sm:$0xff]
    %v131 = vld [vmem:[%s3 + $0x138] sm:$0xff]
    %v132 = vld [vmem:[%s3 + $0x140] sm:$0xff]
    %v133 = vld [vmem:[%s3 + $0x148] sm:$0xff]
    %v134 = vld [vmem:[%s3 + $0x150] sm:$0xff]
    %v135 = vld [vmem:[%s3 + $0x158] sm:$0xff]
    %v136 = vld [vmem:[%s3 + $0x160] sm:$0xff]
    %v137 = vld [vmem:[%s3 + $0x168] sm:$0xff]
    %v138 = vld [vmem:[%s3 + $0x170] sm:$0xff]
    %v139 = vld [vmem:[%s3 + $0x178] sm:$0xff]
    %v140 = vld [vmem:[%s3 + $0x180] sm:$0xff]
    %v141 = vld [vmem:[%s3 + $0x188] sm:$0xff]
    %v142 = vld [vmem:[%s3 + $0x190] sm:$0xff]
    %v143 = vld [vmem:[%s3 + $0x198] sm:$0xff]
    %v144 = vld [vmem:[%s3 + $0x1a0] sm:$0xff]
    %v145 = vld [vmem:[%s3 + $0x1a8] sm:$0xff]
    %v146 = vld [vmem:[%s3 + $0x1b0] sm:$0xff]
    %v147 = vld [vmem:[%s3 + $0x1b8] sm:$0xff]
    %v148 = vld [vmem:[%s3 + $0x1c0] sm:$0xff]
    %v149 = vld [vmem:[%s3 + $0x1c8] sm:$0xff]
    %v150 = vld [vmem:[%s3 + $0x1d0] sm:$0xff]
    %v151 = vld [vmem:[%s3 + $0x1d8] sm:$0xff]
    %v152 = vld [vmem:[%s3 + $0x1e0] sm:$0xff]
    %v153 = vld [vmem:[%s3 + $0x1e8] sm:$0xff]
    %v154 = vld [vmem:[%s3 + $0x1f0] sm:$0xff]
    %v155 = vld [vmem:[%s3 + $0x1f8] sm:$0xff]
    %v156 = vld [vmem:[%s4] sm:$0xff]
    %v157 = vld [vmem:[%s4 + $0x8] sm:$0xff]
    %v158 = vld [vmem:[%s4 + $0x10] sm:$0xff]
    %v159 = vld [vmem:[%s4 + $0x18] sm:$0xff]
    %v160 = vld [vmem:[%s4 + $0x20] sm:$0xff]
    %v161 = vld [vmem:[%s4 + $0x28] sm:$0xff]
    %v162 = vld [vmem:[%s4 + $0x30] sm:$0xff]
    %v163 = vld [vmem:[%s4 + $0x38] sm:$0xff]
    %v164 = vld [vmem:[%s4 + $0x40] sm:$0xff]
    %v165 = vld [vmem:[%s4 + $0x48] sm:$0xff]
    %v166 = vld [vmem:[%s4 + $0x50] sm:$0xff]
    %v167 = vld [vmem:[%s4 + $0x58] sm:$0xff]
    %v168 = vld [vmem:[%s4 + $0x60] sm:$0xff]
    %v169 = vld [vmem:[%s4 + $0x68] sm:$0xff]
    %v170 = vld [vmem:[%s4 + $0x70] sm:$0xff]
    %v171 = vld [vmem:[%s4 + $0x78] sm:$0xff]
    %v172 = vld [vmem:[%s4 + $0x80] sm:$0xff]
    %v173 = vld [vmem:[%s4 + $0x88] sm:$0xff]
    %v174 = vld [vmem:[%s4 + $0x90] sm:$0xff]
    %v175 = vld [vmem:[%s4 + $0x98] sm:$0xff]
    %v176 = vld [vmem:[%s4 + $0xa0] sm:$0xff]
    %v177 = vld [vmem:[%s4 + $0xa8] sm:$0xff]
    %v178 = vld [vmem:[%s4 + $0xb0] sm:$0xff]
    %v179 = vld [vmem:[%s4 + $0xb8] sm:$0xff]
    %v180 = vld [vmem:[%s4 + $0xc0] sm:$0xff]
    %v181 = vld [vmem:[%s4 + $0xc8] sm:$0xff]
    %v182 = vld [vmem:[%s4 + $0xd0] sm:$0xff]
    %v183 = vld [vmem:[%s4 + $0xd8] sm:$0xff]
    %v184 = vld [vmem:[%s4 + $0xe0] sm:$0xff]
    %v185 = vld [vmem:[%s4 + $0xe8] sm:$0xff]
    %v186 = vld [vmem:[%s4 + $0xf0] sm:$0xff]
    %v187 = vld [vmem:[%s4 + $0xf8] sm:$0xff]
    %v188 = vld [vmem:[%s4 + $0x100] sm:$0xff]
    %v189 = vld [vmem:[%s4 + $0x108] sm:$0xff]
    %v190 = vld [vmem:[%s4 + $0x110] sm:$0xff]
    %v191 = vld [vmem:[%s4 + $0x118] sm:$0xff]
    %v192 = vld [vmem:[%s4 + $0x120] sm:$0xff]
    %v193 = vld [vmem:[%s4 + $0x128] sm:$0xff]
    %v194 = vld [vmem:[%s4 + $0x130] sm:$0xff]
    %v195 = vld [vmem:[%s4 + $0x138] sm:$0xff]
    %v196 = vld [vmem:[%s4 + $0x140] sm:$0xff]
    %v197 = vld [vmem:[%s4 + $0x148] sm:$0xff]
    %v198 = vld [vmem:[%s4 + $0x150] sm:$0xff]
    %v199 = vld [vmem:[%s4 + $0x158] sm:$0xff]
    %v200 = vld [vmem:[%s4 + $0x160] sm:$0xff]
    %v201 = vld [vmem:[%s4 + $0x168] sm:$0xff]
    %v202 = vld [vmem:[%s4 + $0x170] sm:$0xff]
    %v203 = vld [vmem:[%s4 + $0x178] sm:$0xff]
    %v204 = vld [vmem:[%s4 + $0x180] sm:$0xff]
    %v205 = vld [vmem:[%s4 + $0x188] sm:$0xff]
    %v206 = vld [vmem:[%s4 + $0x190] sm:$0xff]
    %v207 = vld [vmem:[%s4 + $0x198] sm:$0xff]
    %v208 = vld [vmem:[%s4 + $0x1a0] sm:$0xff]
    %v209 = vld [vmem:[%s4 + $0x1a8] sm:$0xff]
    %v210 = vld [vmem:[%s4 + $0x1b0] sm:$0xff]
    %v211 = vld [vmem:[%s4 + $0x1b8] sm:$0xff]
    %v212 = vld [vmem:[%s4 + $0x1c0] sm:$0xff]
    %v213 = vld [vmem:[%s4 + $0x1c8] sm:$0xff]
    %v214 = vld [vmem:[%s4 + $0x1d0] sm:$0xff]
    %v215 = vld [vmem:[%s4 + $0x1d8] sm:$0xff]
    %v216 = vld [vmem:[%s4 + $0x1e0] sm:$0xff]
    %v217 = vld [vmem:[%s4 + $0x1e8] sm:$0xff]
    %v218 = vld [vmem:[%s4 + $0x1f0] sm:$0xff]
    %v219 = vld [vmem:[%s4 + $0x1f8] sm:$0xff]
    %v220 = vld [vmem:[%s5] sm:$0xf]
    %v221 = vld [vmem:[%s1] sm:$0xff]
    %v222 = vld [vmem:[%s0] sm:$0xff]
    %v223 = vld [vmem:[%s0 + $0x8] sm:$0xff]
    %v224 = vld [vmem:[%s0 + $0x10] sm:$0xff]
    %v225 = vld [vmem:[%s0 + $0x18] sm:$0xff]
    %226 = vmatprep.subr.mxu0 %v89
    %227 = vmatpush1.msra.mxu0 %v88
    %228 = vmatprep.subr.mxu0 %v85
    %229 = vmatpush1.msra.mxu0 %v84
    %230 = vmatprep.subr.mxu0 %v81
    %231 = vmatpush1.msra.mxu0 %v80
    %232 = vmatprep.subr.mxu0 %v77
    %233 = vmatpush1.msra.mxu0 %v76
    %234 = vmatprep.subr.mxu0 %v73
    %235 = vmatpush1.msra.mxu0 %v72
    %236 = vmatprep.subr.mxu0 %v69
    %237 = vmatpush1.msra.mxu0 %v68
    %238 = vmatprep.subr.mxu0 %v65
    %239 = vmatpush1.msra.mxu0 %v64
    %240 = vmatprep.subr.mxu0 %v61
    %241 = vmatpush1.msra.mxu0 %v60
    %242 = vmatprep.subr.mxu0 %v57
    %243 = vmatpush1.msra.mxu0 %v56
    %244 = vmatprep.subr.mxu0 %v53
    %245 = vmatpush1.msra.mxu0 %v52
    %246 = vmatprep.subr.mxu0 %v49
    %247 = vmatpush1.msra.mxu0 %v48
    %248 = vmatprep.subr.mxu0 %v45
    %249 = vmatpush1.msra.mxu0 %v44
    %250 = vmatprep.subr.mxu0 %v41
    %251 = vmatpush1.msra.mxu0 %v40
    %252 = vmatprep.subr.mxu0 %v37
    %253 = vmatpush1.msra.mxu0 %v36
    %254 = vmatprep.subr.mxu0 %v33
    %255 = vmatpush1.msra.mxu0 %v32
    %256 = vmatprep.subr.mxu0 %v29
    %257 = vmatpush1.msra.mxu0 %v28
    %258 = vmatprep.subr.mxu0 0.0
    %259 = vmatpush2.msra.mxu0 0.0
    %260 = vmatprep.subr.mxu0 0.0
    %261 = vmatpush2.msra.mxu0 0.0
    %262 = vmatprep.subr.mxu0 0.0
    %263 = vmatpush2.msra.mxu0 0.0
    %264 = vmatprep.subr.mxu0 0.0
    %265 = vmatpush2.msra.mxu0 0.0
    %266 = vmatprep.subr.mxu0 0.0
    %267 = vmatpush2.msra.mxu0 0.0
    %268 = vmatprep.subr.mxu0 0.0
    %269 = vmatpush2.msra.mxu0 0.0
    %270 = vmatprep.subr.mxu0 0.0
    %271 = vmatpush2.msra.mxu0 0.0
    %272 = vmatprep.subr.mxu0 0.0
    %273 = vmatpush2.msra.mxu0 0.0
    %274 = vmatprep.subr.mxu0 0.0
    %275 = vmatpush2.msra.mxu0 0.0
    %276 = vmatprep.subr.mxu0 0.0
    %277 = vmatpush2.msra.mxu0 0.0
    %278 = vmatprep.subr.mxu0 0.0
    %279 = vmatpush2.msra.mxu0 0.0
    %280 = vmatprep.subr.mxu0 0.0
    %281 = vmatpush2.msra.mxu0 0.0
    %282 = vmatprep.subr.mxu0 0.0
    %283 = vmatpush2.msra.mxu0 0.0
    %284 = vmatprep.subr.mxu0 0.0
    %285 = vmatpush2.msra.mxu0 0.0
    %286 = vmatprep.subr.mxu0 0.0
    %287 = vmatpush2.msra.mxu0 0.0
    %288 = vmatprep.subr.mxu0 0.0
    %289 = vmatpush2.msra.mxu0 0.0
    %290 = vmatprep.mubr.f32.mxu0 0.0
    %291 = vmatmul.mubr.f32.gmra.mxu0 %v221
    %v292 = vpop.f32.mrf.mxu0
    %v293 = vadd.f32 0.0, %v292
    %v294 = vpop.f32.mrf.mxu0
    %v295 = vadd.f32 0.0, %v294
    %296 = vdwg.mxu0
    %297 = vmatprep.subr.mxu0 %v91
    %298 = vmatpush1.msra.mxu0 %v90
    %299 = vmatprep.subr.mxu0 %v87
    %300 = vmatpush1.msra.mxu0 %v86
    %301 = vmatprep.subr.mxu0 %v83
    %302 = vmatpush1.msra.mxu0 %v82
    %303 = vmatprep.subr.mxu0 %v79
    %304 = vmatpush1.msra.mxu0 %v78
    %305 = vmatprep.subr.mxu0 %v75
    %306 = vmatpush1.msra.mxu0 %v74
    %307 = vmatprep.subr.mxu0 %v71
    %308 = vmatpush1.msra.mxu0 %v70
    %309 = vmatprep.subr.mxu0 %v67
    %310 = vmatpush1.msra.mxu0 %v66
    %311 = vmatprep.subr.mxu0 %v63
    %312 = vmatpush1.msra.mxu0 %v62
    %313 = vmatprep.subr.mxu0 %v59
    %314 = vmatpush1.msra.mxu0 %v58
    %315 = vmatprep.subr.mxu0 %v55
    %316 = vmatpush1.msra.mxu0 %v54
    %317 = vmatprep.subr.mxu0 %v51
    %318 = vmatpush1.msra.mxu0 %v50
    %319 = vmatprep.subr.mxu0 %v47
    %320 = vmatpush1.msra.mxu0 %v46
    %321 = vmatprep.subr.mxu0 %v43
    %322 = vmatpush1.msra.mxu0 %v42
    %323 = vmatprep.subr.mxu0 %v39
    %324 = vmatpush1.msra.mxu0 %v38
    %325 = vmatprep.subr.mxu0 %v35
    %326 = vmatpush1.msra.mxu0 %v34
    %327 = vmatprep.subr.mxu0 %v31
    %328 = vmatpush1.msra.mxu0 %v30
    %329 = vmatprep.subr.mxu0 0.0
    %330 = vmatpush2.msra.mxu0 0.0
    %331 = vmatprep.subr.mxu0 0.0
    %332 = vmatpush2.msra.mxu0 0.0
    %333 = vmatprep.subr.mxu0 0.0
    %334 = vmatpush2.msra.mxu0 0.0
    %335 = vmatprep.subr.mxu0 0.0
    %336 = vmatpush2.msra.mxu0 0.0
    %337 = vmatprep.subr.mxu0 0.0
    %338 = vmatpush2.msra.mxu0 0.0
    %339 = vmatprep.subr.mxu0 0.0
    %340 = vmatpush2.msra.mxu0 0.0
    %341 = vmatprep.subr.mxu0 0.0
    %342 = vmatpush2.msra.mxu0 0.0
    %343 = vmatprep.subr.mxu0 0.0
    %344 = vmatpush2.msra.mxu0 0.0
    %345 = vmatprep.subr.mxu0 0.0
    %346 = vmatpush2.msra.mxu0 0.0
    %347 = vmatprep.subr.mxu0 0.0
    %348 = vmatpush2.msra.mxu0 0.0
    %349 = vmatprep.subr.mxu0 0.0
    %350 = vmatpush2.msra.mxu0 0.0
    %351 = vmatprep.subr.mxu0 0.0
    %352 = vmatpush2.msra.mxu0 0.0
    %353 = vmatprep.subr.mxu0 0.0
    %354 = vmatpush2.msra.mxu0 0.0
    %355 = vmatprep.subr.mxu0 0.0
    %356 = vmatpush2.msra.mxu0 0.0
    %357 = vmatprep.subr.mxu0 0.0
    %358 = vmatpush2.msra.mxu0 0.0
    %359 = vmatprep.subr.mxu0 0.0
    %360 = vmatpush2.msra.mxu0 0.0
    %361 = vmatprep.mubr.f32.mxu0 0.0
    %362 = vmatmul.mubr.f32.gmra.mxu0 %v221
    %v363 = vpop.f32.mrf.mxu0
    %v364 = vadd.f32 0.0, %v363
    %v365 = vpop.f32.mrf.mxu0
    %v366 = vadd.f32 0.0, %v365
    %367 = vdwg.mxu0
    %v368 = vadd.f32 %v222, %v293
    %v369 = vadd.f32 %v223, %v295
    %v370 = vadd.f32 %v224, %v364
    %v371 = vadd.f32 %v225, %v366
    %v372 = vxor.u32 %v368, 2147483648
    %v373 = vmul.f32 %v372, 1.442695
    %v374 = vpow.pop %v373
    %v375 = vadd.f32 %v374, 1.0
    %v376 = vrcp.pop %v375
    %v377 = vmul.f32 1.0, %v376
    %v378 = vxor.u32 %v369, 2147483648
    %v379 = vmul.f32 %v378, 1.442695
    %v380 = vpow.pop %v379
    %v381 = vadd.f32 %v380, 1.0
    %v382 = vrcp.pop %v381
    %v383 = vmul.f32 1.0, %v382
    %v384 = vtanh.pop %v370
    %v385 = vxor.u32 %v371, 2147483648
    %v386 = vmul.f32 %v385, 1.442695
    %v387 = vpow.pop %v386
    %v388 = vadd.f32 %v387, 1.0
    %v389 = vrcp.pop %v388
    %v390 = vmul.f32 1.0, %v389
    %v391 = vmul.f32 %v383, 0.0
    %v392 = vmul.f32 %v377, %v384
    %v393 = vadd.f32 %v391, %v392
    %v394 = vtanh.pop %v393
    %v395 = vmul.f32 %v390, %v394
    %s396 = scalar_lea.vmem %s1, 8
    %v397 = vld [vmem:[%s396] sm:$0xff]
    %s398 = scalar_lea.vmem %s0, 32
    %v399 = vld [vmem:[%s398] sm:$0xff]
    %v400 = vld [vmem:[%s398 + $0x8] sm:$0xff]
    %v401 = vld [vmem:[%s398 + $0x10] sm:$0xff]
    %v402 = vld [vmem:[%s398 + $0x18] sm:$0xff]
    %403 = vmatprep.subr.mxu0 %v89
    %404 = vmatpush1.msra.mxu0 %v88
    %405 = vmatprep.subr.mxu0 %v85
    %406 = vmatpush1.msra.mxu0 %v84
    %407 = vmatprep.subr.mxu0 %v81
    %408 = vmatpush1.msra.mxu0 %v80
    %409 = vmatprep.subr.mxu0 %v77
    %410 = vmatpush1.msra.mxu0 %v76
    %411 = vmatprep.subr.mxu0 %v73
    %412 = vmatpush1.msra.mxu0 %v72
    %413 = vmatprep.subr.mxu0 %v69
    %414 = vmatpush1.msra.mxu0 %v68
    %415 = vmatprep.subr.mxu0 %v65
    %416 = vmatpush1.msra.mxu0 %v64
    %417 = vmatprep.subr.mxu0 %v61
    %418 = vmatpush1.msra.mxu0 %v60
    %419 = vmatprep.subr.mxu0 %v57
    %420 = vmatpush1.msra.mxu0 %v56
    %421 = vmatprep.subr.mxu0 %v53
    %422 = vmatpush1.msra.mxu0 %v52
    %423 = vmatprep.subr.mxu0 %v49
    %424 = vmatpush1.msra.mxu0 %v48
    %425 = vmatprep.subr.mxu0 %v45
    %426 = vmatpush1.msra.mxu0 %v44
    %427 = vmatprep.subr.mxu0 %v41
    %428 = vmatpush1.msra.mxu0 %v40
    %429 = vmatprep.subr.mxu0 %v37
    %430 = vmatpush1.msra.mxu0 %v36
    %431 = vmatprep.subr.mxu0 %v33
    %432 = vmatpush1.msra.mxu0 %v32
    %433 = vmatprep.subr.mxu0 %v29
    %434 = vmatpush1.msra.mxu0 %v28
    %435 = vmatprep.subr.mxu0 0.0
    %436 = vmatpush2.msra.mxu0 0.0
    %437 = vmatprep.subr.mxu0 0.0
    %438 = vmatpush2.msra.mxu0 0.0
    %439 = vmatprep.subr.mxu0 0.0
    %440 = vmatpush2.msra.mxu0 0.0
    %441 = vmatprep.subr.mxu0 0.0
    %442 = vmatpush2.msra.mxu0 0.0
    %443 = vmatprep.subr.mxu0 0.0
    %444 = vmatpush2.msra.mxu0 0.0
    %445 = vmatprep.subr.mxu0 0.0
    %446 = vmatpush2.msra.mxu0 0.0
    %447 = vmatprep.subr.mxu0 0.0
    %448 = vmatpush2.msra.mxu0 0.0
    %449 = vmatprep.subr.mxu0 0.0
    %450 = vmatpush2.msra.mxu0 0.0
    %451 = vmatprep.subr.mxu0 0.0
    %452 = vmatpush2.msra.mxu0 0.0
    %453 = vmatprep.subr.mxu0 0.0
    %454 = vmatpush2.msra.mxu0 0.0
    %455 = vmatprep.subr.mxu0 0.0
    %456 = vmatpush2.msra.mxu0 0.0
    %457 = vmatprep.subr.mxu0 0.0
    %458 = vmatpush2.msra.mxu0 0.0
    %459 = vmatprep.subr.mxu0 0.0
    %460 = vmatpush2.msra.mxu0 0.0
    %461 = vmatprep.subr.mxu0 0.0
    %462 = vmatpush2.msra.mxu0 0.0
    %463 = vmatprep.subr.mxu0 0.0
    %464 = vmatpush2.msra.mxu0 0.0
    %465 = vmatprep.subr.mxu0 0.0
    %466 = vmatpush2.msra.mxu0 0.0
    %467 = vmatprep.mubr.f32.mxu0 0.0
    %468 = vmatmul.mubr.f32.gmra.mxu0 %v395
    %v469 = vpop.f32.mrf.mxu0
    %v470 = vadd.f32 0.0, %v469
    %v471 = vpop.f32.mrf.mxu0
    %v472 = vadd.f32 0.0, %v471
    %473 = vdwg.mxu0
    %474 = vmatprep.subr.mxu0 %v91
    %475 = vmatpush1.msra.mxu0 %v90
    %476 = vmatprep.subr.mxu0 %v87
    %477 = vmatpush1.msra.mxu0 %v86
    %478 = vmatprep.subr.mxu0 %v83
    %479 = vmatpush1.msra.mxu0 %v82
    %480 = vmatprep.subr.mxu0 %v79
    %481 = vmatpush1.msra.mxu0 %v78
    %482 = vmatprep.subr.mxu0 %v75
    %483 = vmatpush1.msra.mxu0 %v74
    %484 = vmatprep.subr.mxu0 %v71
    %485 = vmatpush1.msra.mxu0 %v70
    %486 = vmatprep.subr.mxu0 %v67
    %487 = vmatpush1.msra.mxu0 %v66
    %488 = vmatprep.subr.mxu0 %v63
    %489 = vmatpush1.msra.mxu0 %v62
    %490 = vmatprep.subr.mxu0 %v59
    %491 = vmatpush1.msra.mxu0 %v58
    %492 = vmatprep.subr.mxu0 %v55
    %493 = vmatpush1.msra.mxu0 %v54
    %494 = vmatprep.subr.mxu0 %v51
    %495 = vmatpush1.msra.mxu0 %v50
    %496 = vmatprep.subr.mxu0 %v47
    %497 = vmatpush1.msra.mxu0 %v46
    %498 = vmatprep.subr.mxu0 %v43
    %499 = vmatpush1.msra.mxu0 %v42
    %500 = vmatprep.subr.mxu0 %v39
    %501 = vmatpush1.msra.mxu0 %v38
    %502 = vmatprep.subr.mxu0 %v35
    %503 = vmatpush1.msra.mxu0 %v34
    %504 = vmatprep.subr.mxu0 %v31
    %505 = vmatpush1.msra.mxu0 %v30
    %506 = vmatprep.subr.mxu0 0.0
    %507 = vmatpush2.msra.mxu0 0.0
    %508 = vmatprep.subr.mxu0 0.0
    %509 = vmatpush2.msra.mxu0 0.0
    %510 = vmatprep.subr.mxu0 0.0
    %511 = vmatpush2.msra.mxu0 0.0
    %512 = vmatprep.subr.mxu0 0.0
    %513 = vmatpush2.msra.mxu0 0.0
    %514 = vmatprep.subr.mxu0 0.0
    %515 = vmatpush2.msra.mxu0 0.0
    %516 = vmatprep.subr.mxu0 0.0
    %517 = vmatpush2.msra.mxu0 0.0
    %518 = vmatprep.subr.mxu0 0.0
    %519 = vmatpush2.msra.mxu0 0.0
    %520 = vmatprep.subr.mxu0 0.0
    %521 = vmatpush2.msra.mxu0 0.0
    %522 = vmatprep.subr.mxu0 0.0
    %523 = vmatpush2.msra.mxu0 0.0
    %524 = vmatprep.subr.mxu0 0.0
    %525 = vmatpush2.msra.mxu0 0.0
    %526 = vmatprep.subr.mxu0 0.0
    %527 = vmatpush2.msra.mxu0 0.0
    %528 = vmatprep.subr.mxu0 0.0
    %529 = vmatpush2.msra.mxu0 0.0
    %530 = vmatprep.subr.mxu0 0.0
    %531 = vmatpush2.msra.mxu0 0.0
    %532 = vmatprep.subr.mxu0 0.0
    %533 = vmatpush2.msra.mxu0 0.0
    %534 = vmatprep.subr.mxu0 0.0
    %535 = vmatpush2.msra.mxu0 0.0
    %536 = vmatprep.subr.mxu0 0.0
    %537 = vmatpush2.msra.mxu0 0.0
    %538 = vmatprep.mubr.f32.mxu0 0.0
    %539 = vmatmul.mubr.f32.gmra.mxu0 %v395
    %v540 = vpop.f32.mrf.mxu0
    %v541 = vadd.f32 0.0, %v540
    %v542 = vpop.f32.mrf.mxu0
    %v543 = vadd.f32 0.0, %v542
    %544 = vdwg.mxu0
    %v545 = vadd.f32 %v399, %v470
    %v546 = vadd.f32 %v400, %v472
    %v547 = vadd.f32 %v401, %v541
    %v548 = vadd.f32 %v402, %v543
    %v549 = vxor.u32 %v545, 2147483648
    %v550 = vmul.f32 %v549, 1.442695
    %v551 = vpow.pop %v550
    %v552 = vadd.f32 %v551, 1.0
    %v553 = vrcp.pop %v552
    %v554 = vmul.f32 1.0, %v553
    %v555 = vxor.u32 %v546, 2147483648
    %v556 = vmul.f32 %v555, 1.442695
    %v557 = vpow.pop %v556
    %v558 = vadd.f32 %v557, 1.0
    %v559 = vrcp.pop %v558
    %v560 = vmul.f32 1.0, %v559
    %v561 = vtanh.pop %v547
    %v562 = vxor.u32 %v548, 2147483648
    %v563 = vmul.f32 %v562, 1.442695
    %v564 = vpow.pop %v563
    %v565 = vadd.f32 %v564, 1.0
    %v566 = vrcp.pop %v565
    %v567 = vmul.f32 1.0, %v566
    %v568 = vmul.f32 %v560, %v393
    %v569 = vmul.f32 %v554, %v561
    %v570 = vadd.f32 %v568, %v569
    %v571 = vtanh.pop %v570
    %v572 = vmul.f32 %v567, %v571
    %573 = vmatprep.subr.mxu0 %v153
    %574 = vmatpush1.msra.mxu0 %v152
    %575 = vmatprep.subr.mxu0 %v149
    %576 = vmatpush1.msra.mxu0 %v148
    %577 = vmatprep.subr.mxu0 %v145
    %578 = vmatpush1.msra.mxu0 %v144
    %579 = vmatprep.subr.mxu0 %v141
    %580 = vmatpush1.msra.mxu0 %v140
    %581 = vmatprep.subr.mxu0 %v137
    %582 = vmatpush1.msra.mxu0 %v136
    %583 = vmatprep.subr.mxu0 %v133
    %584 = vmatpush1.msra.mxu0 %v132
    %585 = vmatprep.subr.mxu0 %v129
    %586 = vmatpush1.msra.mxu0 %v128
    %587 = vmatprep.subr.mxu0 %v125
    %588 = vmatpush1.msra.mxu0 %v124
    %589 = vmatprep.subr.mxu0 %v121
    %590 = vmatpush1.msra.mxu0 %v120
    %591 = vmatprep.subr.mxu0 %v117
    %592 = vmatpush1.msra.mxu0 %v116
    %593 = vmatprep.subr.mxu0 %v113
    %594 = vmatpush1.msra.mxu0 %v112
    %595 = vmatprep.subr.mxu0 %v109
    %596 = vmatpush1.msra.mxu0 %v108
    %597 = vmatprep.subr.mxu0 %v105
    %598 = vmatpush1.msra.mxu0 %v104
    %599 = vmatprep.subr.mxu0 %v101
    %600 = vmatpush1.msra.mxu0 %v100
    %601 = vmatprep.subr.mxu0 %v97
    %602 = vmatpush1.msra.mxu0 %v96
    %603 = vmatprep.subr.mxu0 %v93
    %604 = vmatpush1.msra.mxu0 %v92
    %605 = vmatprep.subr.mxu0 0.0
    %606 = vmatpush2.msra.mxu0 0.0
    %607 = vmatprep.subr.mxu0 0.0
    %608 = vmatpush2.msra.mxu0 0.0
    %609 = vmatprep.subr.mxu0 0.0
    %610 = vmatpush2.msra.mxu0 0.0
    %611 = vmatprep.subr.mxu0 0.0
    %612 = vmatpush2.msra.mxu0 0.0
    %613 = vmatprep.subr.mxu0 0.0
    %614 = vmatpush2.msra.mxu0 0.0
    %615 = vmatprep.subr.mxu0 0.0
    %616 = vmatpush2.msra.mxu0 0.0
    %617 = vmatprep.subr.mxu0 0.0
    %618 = vmatpush2.msra.mxu0 0.0
    %619 = vmatprep.subr.mxu0 0.0
    %620 = vmatpush2.msra.mxu0 0.0
    %621 = vmatprep.subr.mxu0 0.0
    %622 = vmatpush2.msra.mxu0 0.0
    %623 = vmatprep.subr.mxu0 0.0
    %624 = vmatpush2.msra.mxu0 0.0
    %625 = vmatprep.subr.mxu0 0.0
    %626 = vmatpush2.msra.mxu0 0.0
    %627 = vmatprep.subr.mxu0 0.0
    %628 = vmatpush2.msra.mxu0 0.0
    %629 = vmatprep.subr.mxu0 0.0
    %630 = vmatpush2.msra.mxu0 0.0
    %631 = vmatprep.subr.mxu0 0.0
    %632 = vmatpush2.msra.mxu0 0.0
    %633 = vmatprep.subr.mxu0 0.0
    %634 = vmatpush2.msra.mxu0 0.0
    %635 = vmatprep.subr.mxu0 0.0
    %636 = vmatpush2.msra.mxu0 0.0
    %637 = vmatprep.mubr.f32.mxu0 0.0
    %638 = vmatmul.mubr.f32.gmra.mxu0 %v395
    %v639 = vpop.f32.mrf.mxu0
    %v640 = vadd.f32 0.0, %v639
    %v641 = vpop.f32.mrf.mxu0
    %v642 = vadd.f32 0.0, %v641
    %643 = vdwg.mxu0
    %644 = vmatprep.subr.mxu0 %v155
    %645 = vmatpush1.msra.mxu0 %v154
    %646 = vmatprep.subr.mxu0 %v151
    %647 = vmatpush1.msra.mxu0 %v150
    %648 = vmatprep.subr.mxu0 %v147
    %649 = vmatpush1.msra.mxu0 %v146
    %650 = vmatprep.subr.mxu0 %v143
    %651 = vmatpush1.msra.mxu0 %v142
    %652 = vmatprep.subr.mxu0 %v139
    %653 = vmatpush1.msra.mxu0 %v138
    %654 = vmatprep.subr.mxu0 %v135
    %655 = vmatpush1.msra.mxu0 %v134
    %656 = vmatprep.subr.mxu0 %v131
    %657 = vmatpush1.msra.mxu0 %v130
    %658 = vmatprep.subr.mxu0 %v127
    %659 = vmatpush1.msra.mxu0 %v126
    %660 = vmatprep.subr.mxu0 %v123
    %661 = vmatpush1.msra.mxu0 %v122
    %662 = vmatprep.subr.mxu0 %v119
    %663 = vmatpush1.msra.mxu0 %v118
    %664 = vmatprep.subr.mxu0 %v115
    %665 = vmatpush1.msra.mxu0 %v114
    %666 = vmatprep.subr.mxu0 %v111
    %667 = vmatpush1.msra.mxu0 %v110
    %668 = vmatprep.subr.mxu0 %v107
    %669 = vmatpush1.msra.mxu0 %v106
    %670 = vmatprep.subr.mxu0 %v103
    %671 = vmatpush1.msra.mxu0 %v102
    %672 = vmatprep.subr.mxu0 %v99
    %673 = vmatpush1.msra.mxu0 %v98
    %674 = vmatprep.subr.mxu0 %v95
    %675 = vmatpush1.msra.mxu0 %v94
    %676 = vmatprep.subr.mxu0 0.0
    %677 = vmatpush2.msra.mxu0 0.0
    %678 = vmatprep.subr.mxu0 0.0
    %679 = vmatpush2.msra.mxu0 0.0
    %680 = vmatprep.subr.mxu0 0.0
    %681 = vmatpush2.msra.mxu0 0.0
    %682 = vmatprep.subr.mxu0 0.0
    %683 = vmatpush2.msra.mxu0 0.0
    %684 = vmatprep.subr.mxu0 0.0
    %685 = vmatpush2.msra.mxu0 0.0
    %686 = vmatprep.subr.mxu0 0.0
    %687 = vmatpush2.msra.mxu0 0.0
    %688 = vmatprep.subr.mxu0 0.0
    %689 = vmatpush2.msra.mxu0 0.0
    %690 = vmatprep.subr.mxu0 0.0
    %691 = vmatpush2.msra.mxu0 0.0
    %692 = vmatprep.subr.mxu0 0.0
    %693 = vmatpush2.msra.mxu0 0.0
    %694 = vmatprep.subr.mxu0 0.0
    %695 = vmatpush2.msra.mxu0 0.0
    %696 = vmatprep.subr.mxu0 0.0
    %697 = vmatpush2.msra.mxu0 0.0
    %698 = vmatprep.subr.mxu0 0.0
    %699 = vmatpush2.msra.mxu0 0.0
    %700 = vmatprep.subr.mxu0 0.0
    %701 = vmatpush2.msra.mxu0 0.0
    %702 = vmatprep.subr.mxu0 0.0
    %703 = vmatpush2.msra.mxu0 0.0
    %704 = vmatprep.subr.mxu0 0.0
    %705 = vmatpush2.msra.mxu0 0.0
    %706 = vmatprep.subr.mxu0 0.0
    %707 = vmatpush2.msra.mxu0 0.0
    %708 = vmatprep.mubr.f32.mxu0 0.0
    %709 = vmatmul.mubr.f32.gmra.mxu0 %v395
    %v710 = vpop.f32.mrf.mxu0
    %v711 = vadd.f32 0.0, %v710
    %v712 = vpop.f32.mrf.mxu0
    %v713 = vadd.f32 0.0, %v712
    %714 = vdwg.mxu0
    %v716 = vlaneseq
    %v717 = vshrl.u32 %v716, 7
    %v718 = vsub.s32 0, %v717
    %v719 = vrot.slane %v220, %v718
    %v720 = vlaneseq
    %v721 = vshrl.u32 %v720, 7
    %v722 = vsub.s32 1, %v721
    %v723 = vrot.slane %v220, %v722
    %v724 = vlaneseq
    %v725 = vshrl.u32 %v724, 7
    %v726 = vsub.s32 2, %v725
    %v727 = vrot.slane %v220, %v726
    %v728 = vlaneseq
    %v729 = vshrl.u32 %v728, 7
    %v730 = vsub.s32 3, %v729
    %v731 = vrot.slane %v220, %v730
    %v736 = vadd.f32 %v719, %v640
    %v737 = vadd.f32 %v723, %v642
    %v738 = vadd.f32 %v727, %v711
    %v739 = vadd.f32 %v731, %v713
    %740 = vmatprep.subr.mxu0 %v217
    %741 = vmatpush1.msra.mxu0 %v216
    %742 = vmatprep.subr.mxu0 %v213
    %743 = vmatpush1.msra.mxu0 %v212
    %744 = vmatprep.subr.mxu0 %v209
    %745 = vmatpush1.msra.mxu0 %v208
    %746 = vmatprep.subr.mxu0 %v205
    %747 = vmatpush1.msra.mxu0 %v204
    %748 = vmatprep.subr.mxu0 %v201
    %749 = vmatpush1.msra.mxu0 %v200
    %750 = vmatprep.subr.mxu0 %v197
    %751 = vmatpush1.msra.mxu0 %v196
    %752 = vmatprep.subr.mxu0 %v193
    %753 = vmatpush1.msra.mxu0 %v192
    %754 = vmatprep.subr.mxu0 %v189
    %755 = vmatpush1.msra.mxu0 %v188
    %756 = vmatprep.subr.mxu0 %v185
    %757 = vmatpush1.msra.mxu0 %v184
    %758 = vmatprep.subr.mxu0 %v181
    %759 = vmatpush1.msra.mxu0 %v180
    %760 = vmatprep.subr.mxu0 %v177
    %761 = vmatpush1.msra.mxu0 %v176
    %762 = vmatprep.subr.mxu0 %v173
    %763 = vmatpush1.msra.mxu0 %v172
    %764 = vmatprep.subr.mxu0 %v169
    %765 = vmatpush1.msra.mxu0 %v168
    %766 = vmatprep.subr.mxu0 %v165
    %767 = vmatpush1.msra.mxu0 %v164
    %768 = vmatprep.subr.mxu0 %v161
    %769 = vmatpush1.msra.mxu0 %v160
    %770 = vmatprep.subr.mxu0 %v157
    %771 = vmatpush1.msra.mxu0 %v156
    %772 = vmatprep.subr.mxu0 0.0
    %773 = vmatpush2.msra.mxu0 0.0
    %774 = vmatprep.subr.mxu0 0.0
    %775 = vmatpush2.msra.mxu0 0.0
    %776 = vmatprep.subr.mxu0 0.0
    %777 = vmatpush2.msra.mxu0 0.0
    %778 = vmatprep.subr.mxu0 0.0
    %779 = vmatpush2.msra.mxu0 0.0
    %780 = vmatprep.subr.mxu0 0.0
    %781 = vmatpush2.msra.mxu0 0.0
    %782 = vmatprep.subr.mxu0 0.0
    %783 = vmatpush2.msra.mxu0 0.0
    %784 = vmatprep.subr.mxu0 0.0
    %785 = vmatpush2.msra.mxu0 0.0
    %786 = vmatprep.subr.mxu0 0.0
    %787 = vmatpush2.msra.mxu0 0.0
    %788 = vmatprep.subr.mxu0 0.0
    %789 = vmatpush2.msra.mxu0 0.0
    %790 = vmatprep.subr.mxu0 0.0
    %791 = vmatpush2.msra.mxu0 0.0
    %792 = vmatprep.subr.mxu0 0.0
    %793 = vmatpush2.msra.mxu0 0.0
    %794 = vmatprep.subr.mxu0 0.0
    %795 = vmatpush2.msra.mxu0 0.0
    %796 = vmatprep.subr.mxu0 0.0
    %797 = vmatpush2.msra.mxu0 0.0
    %798 = vmatprep.subr.mxu0 0.0
    %799 = vmatpush2.msra.mxu0 0.0
    %800 = vmatprep.subr.mxu0 0.0
    %801 = vmatpush2.msra.mxu0 0.0
    %802 = vmatprep.subr.mxu0 0.0
    %803 = vmatpush2.msra.mxu0 0.0
    %804 = vmatprep.mubr.f32.mxu0 0.0
    %805 = vmatmul.mubr.f32.gmra.mxu0 %v397
    %v806 = vpop.f32.mrf.mxu0
    %v807 = vadd.f32 0.0, %v806
    %v808 = vpop.f32.mrf.mxu0
    %v809 = vadd.f32 0.0, %v808
    %810 = vdwg.mxu0
    %811 = vmatprep.subr.mxu0 %v219
    %812 = vmatpush1.msra.mxu0 %v218
    %813 = vmatprep.subr.mxu0 %v215
    %814 = vmatpush1.msra.mxu0 %v214
    %815 = vmatprep.subr.mxu0 %v211
    %816 = vmatpush1.msra.mxu0 %v210
    %817 = vmatprep.subr.mxu0 %v207
    %818 = vmatpush1.msra.mxu0 %v206
    %819 = vmatprep.subr.mxu0 %v203
    %820 = vmatpush1.msra.mxu0 %v202
    %821 = vmatprep.subr.mxu0 %v199
    %822 = vmatpush1.msra.mxu0 %v198
    %823 = vmatprep.subr.mxu0 %v195
    %824 = vmatpush1.msra.mxu0 %v194
    %825 = vmatprep.subr.mxu0 %v191
    %826 = vmatpush1.msra.mxu0 %v190
    %827 = vmatprep.subr.mxu0 %v187
    %828 = vmatpush1.msra.mxu0 %v186
    %829 = vmatprep.subr.mxu0 %v183
    %830 = vmatpush1.msra.mxu0 %v182
    %831 = vmatprep.subr.mxu0 %v179
    %832 = vmatpush1.msra.mxu0 %v178
    %833 = vmatprep.subr.mxu0 %v175
    %834 = vmatpush1.msra.mxu0 %v174
    %835 = vmatprep.subr.mxu0 %v171
    %836 = vmatpush1.msra.mxu0 %v170
    %837 = vmatprep.subr.mxu0 %v167
    %838 = vmatpush1.msra.mxu0 %v166
    %839 = vmatprep.subr.mxu0 %v163
    %840 = vmatpush1.msra.mxu0 %v162
    %841 = vmatprep.subr.mxu0 %v159
    %842 = vmatpush1.msra.mxu0 %v158
    %843 = vmatprep.subr.mxu0 0.0
    %844 = vmatpush2.msra.mxu0 0.0
    %845 = vmatprep.subr.mxu0 0.0
    %846 = vmatpush2.msra.mxu0 0.0
    %847 = vmatprep.subr.mxu0 0.0
    %848 = vmatpush2.msra.mxu0 0.0
    %849 = vmatprep.subr.mxu0 0.0
    %850 = vmatpush2.msra.mxu0 0.0
    %851 = vmatprep.subr.mxu0 0.0
    %852 = vmatpush2.msra.mxu0 0.0
    %853 = vmatprep.subr.mxu0 0.0
    %854 = vmatpush2.msra.mxu0 0.0
    %855 = vmatprep.subr.mxu0 0.0
    %856 = vmatpush2.msra.mxu0 0.0
    %857 = vmatprep.subr.mxu0 0.0
    %858 = vmatpush2.msra.mxu0 0.0
    %859 = vmatprep.subr.mxu0 0.0
    %860 = vmatpush2.msra.mxu0 0.0
    %861 = vmatprep.subr.mxu0 0.0
    %862 = vmatpush2.msra.mxu0 0.0
    %863 = vmatprep.subr.mxu0 0.0
    %864 = vmatpush2.msra.mxu0 0.0
    %865 = vmatprep.subr.mxu0 0.0
    %866 = vmatpush2.msra.mxu0 0.0
    %867 = vmatprep.subr.mxu0 0.0
    %868 = vmatpush2.msra.mxu0 0.0
    %869 = vmatprep.subr.mxu0 0.0
    %870 = vmatpush2.msra.mxu0 0.0
    %871 = vmatprep.subr.mxu0 0.0
    %872 = vmatpush2.msra.mxu0 0.0
    %873 = vmatprep.subr.mxu0 0.0
    %874 = vmatpush2.msra.mxu0 0.0
    %875 = vmatprep.mubr.f32.mxu0 0.0
    %876 = vmatmul.mubr.f32.gmra.mxu0 %v397
    %v877 = vpop.f32.mrf.mxu0
    %v878 = vadd.f32 0.0, %v877
    %v879 = vpop.f32.mrf.mxu0
    %v880 = vadd.f32 0.0, %v879
    %881 = vdwg.mxu0
    %v882 = vadd.f32 %v736, %v807
    %v883 = vadd.f32 %v737, %v809
    %v884 = vadd.f32 %v738, %v878
    %v885 = vadd.f32 %v739, %v880
    %v886 = vxor.u32 %v882, 2147483648
    %v887 = vmul.f32 %v886, 1.442695
    %v888 = vpow.pop %v887
    %v889 = vadd.f32 %v888, 1.0
    %v890 = vrcp.pop %v889
    %v891 = vmul.f32 1.0, %v890
    %v892 = vxor.u32 %v883, 2147483648
    %v893 = vmul.f32 %v892, 1.442695
    %v894 = vpow.pop %v893
    %v895 = vadd.f32 %v894, 1.0
    %v896 = vrcp.pop %v895
    %v897 = vmul.f32 1.0, %v896
    %v898 = vtanh.pop %v884
    %v899 = vxor.u32 %v885, 2147483648
    %v900 = vmul.f32 %v899, 1.442695
    %v901 = vpow.pop %v900
    %v902 = vadd.f32 %v901, 1.0
    %v903 = vrcp.pop %v902
    %v904 = vmul.f32 1.0, %v903
    %v905 = vmul.f32 %v897, 0.0
    %v906 = vmul.f32 %v891, %v898
    %v907 = vadd.f32 %v905, %v906
    %v908 = vtanh.pop %v907
    %v909 = vmul.f32 %v904, %v908
    %910 = vst [vmem:[#allocation2] sm:$0xff] %v909
    %s911 = scalar_lea.vmem %s0, 64
    %v912 = vld [vmem:[%s911] sm:$0xff]
    %v913 = vld [vmem:[%s911 + $0x8] sm:$0xff]
    %v914 = vld [vmem:[%s911 + $0x10] sm:$0xff]
    %v915 = vld [vmem:[%s911 + $0x18] sm:$0xff]
    %916 = vmatprep.subr.mxu0 %v89
    %917 = vmatpush1.msra.mxu0 %v88
    %918 = vmatprep.subr.mxu0 %v85
    %919 = vmatpush1.msra.mxu0 %v84
    %920 = vmatprep.subr.mxu0 %v81
    %921 = vmatpush1.msra.mxu0 %v80
    %922 = vmatprep.subr.mxu0 %v77
    %923 = vmatpush1.msra.mxu0 %v76
    %924 = vmatprep.subr.mxu0 %v73
    %925 = vmatpush1.msra.mxu0 %v72
    %926 = vmatprep.subr.mxu0 %v69
    %927 = vmatpush1.msra.mxu0 %v68
    %928 = vmatprep.subr.mxu0 %v65
    %929 = vmatpush1.msra.mxu0 %v64
    %930 = vmatprep.subr.mxu0 %v61
    %931 = vmatpush1.msra.mxu0 %v60
    %932 = vmatprep.subr.mxu0 %v57
    %933 = vmatpush1.msra.mxu0 %v56
    %934 = vmatprep.subr.mxu0 %v53
    %935 = vmatpush1.msra.mxu0 %v52
    %936 = vmatprep.subr.mxu0 %v49
    %937 = vmatpush1.msra.mxu0 %v48
    %938 = vmatprep.subr.mxu0 %v45
    %939 = vmatpush1.msra.mxu0 %v44
    %940 = vmatprep.subr.mxu0 %v41
    %941 = vmatpush1.msra.mxu0 %v40
    %942 = vmatprep.subr.mxu0 %v37
    %943 = vmatpush1.msra.mxu0 %v36
    %944 = vmatprep.subr.mxu0 %v33
    %945 = vmatpush1.msra.mxu0 %v32
    %946 = vmatprep.subr.mxu0 %v29
    %947 = vmatpush1.msra.mxu0 %v28
    %948 = vmatprep.subr.mxu0 0.0
    %949 = vmatpush2.msra.mxu0 0.0
    %950 = vmatprep.subr.mxu0 0.0
    %951 = vmatpush2.msra.mxu0 0.0
    %952 = vmatprep.subr.mxu0 0.0
    %953 = vmatpush2.msra.mxu0 0.0
    %954 = vmatprep.subr.mxu0 0.0
    %955 = vmatpush2.msra.mxu0 0.0
    %956 = vmatprep.subr.mxu0 0.0
    %957 = vmatpush2.msra.mxu0 0.0
    %958 = vmatprep.subr.mxu0 0.0
    %959 = vmatpush2.msra.mxu0 0.0
    %960 = vmatprep.subr.mxu0 0.0
    %961 = vmatpush2.msra.mxu0 0.0
    %962 = vmatprep.subr.mxu0 0.0
    %963 = vmatpush2.msra.mxu0 0.0
    %964 = vmatprep.subr.mxu0 0.0
    %965 = vmatpush2.msra.mxu0 0.0
    %966 = vmatprep.subr.mxu0 0.0
    %967 = vmatpush2.msra.mxu0 0.0
    %968 = vmatprep.subr.mxu0 0.0
    %969 = vmatpush2.msra.mxu0 0.0
    %970 = vmatprep.subr.mxu0 0.0
    %971 = vmatpush2.msra.mxu0 0.0
    %972 = vmatprep.subr.mxu0 0.0
    %973 = vmatpush2.msra.mxu0 0.0
    %974 = vmatprep.subr.mxu0 0.0
    %975 = vmatpush2.msra.mxu0 0.0
    %976 = vmatprep.subr.mxu0 0.0
    %977 = vmatpush2.msra.mxu0 0.0
    %978 = vmatprep.subr.mxu0 0.0
    %979 = vmatpush2.msra.mxu0 0.0
    %980 = vmatprep.mubr.f32.mxu0 0.0
    %981 = vmatmul.mubr.f32.gmra.mxu0 %v572
    %v982 = vpop.f32.mrf.mxu0
    %v983 = vadd.f32 0.0, %v982
    %v984 = vpop.f32.mrf.mxu0
    %v985 = vadd.f32 0.0, %v984
    %986 = vdwg.mxu0
    %987 = vmatprep.subr.mxu0 %v91
    %988 = vmatpush1.msra.mxu0 %v90
    %989 = vmatprep.subr.mxu0 %v87
    %990 = vmatpush1.msra.mxu0 %v86
    %991 = vmatprep.subr.mxu0 %v83
    %992 = vmatpush1.msra.mxu0 %v82
    %993 = vmatprep.subr.mxu0 %v79
    %994 = vmatpush1.msra.mxu0 %v78
    %995 = vmatprep.subr.mxu0 %v75
    %996 = vmatpush1.msra.mxu0 %v74
    %997 = vmatprep.subr.mxu0 %v71
    %998 = vmatpush1.msra.mxu0 %v70
    %999 = vmatprep.subr.mxu0 %v67
    %1000 = vmatpush1.msra.mxu0 %v66
    %1001 = vmatprep.subr.mxu0 %v63
    %1002 = vmatpush1.msra.mxu0 %v62
    %1003 = vmatprep.subr.mxu0 %v59
    %1004 = vmatpush1.msra.mxu0 %v58
    %1005 = vmatprep.subr.mxu0 %v55
    %1006 = vmatpush1.msra.mxu0 %v54
    %1007 = vmatprep.subr.mxu0 %v51
    %1008 = vmatpush1.msra.mxu0 %v50
    %1009 = vmatprep.subr.mxu0 %v47
    %1010 = vmatpush1.msra.mxu0 %v46
    %1011 = vmatprep.subr.mxu0 %v43
    %1012 = vmatpush1.msra.mxu0 %v42
    %1013 = vmatprep.subr.mxu0 %v39
    %1014 = vmatpush1.msra.mxu0 %v38
    %1015 = vmatprep.subr.mxu0 %v35
    %1016 = vmatpush1.msra.mxu0 %v34
    %1017 = vmatprep.subr.mxu0 %v31
    %1018 = vmatpush1.msra.mxu0 %v30
    %1019 = vmatprep.subr.mxu0 0.0
    %1020 = vmatpush2.msra.mxu0 0.0
    %1021 = vmatprep.subr.mxu0 0.0
    %1022 = vmatpush2.msra.mxu0 0.0
    %1023 = vmatprep.subr.mxu0 0.0
    %1024 = vmatpush2.msra.mxu0 0.0
    %1025 = vmatprep.subr.mxu0 0.0
    %1026 = vmatpush2.msra.mxu0 0.0
    %1027 = vmatprep.subr.mxu0 0.0
    %1028 = vmatpush2.msra.mxu0 0.0
    %1029 = vmatprep.subr.mxu0 0.0
    %1030 = vmatpush2.msra.mxu0 0.0
    %1031 = vmatprep.subr.mxu0 0.0
    %1032 = vmatpush2.msra.mxu0 0.0
    %1033 = vmatprep.subr.mxu0 0.0
    %1034 = vmatpush2.msra.mxu0 0.0
    %1035 = vmatprep.subr.mxu0 0.0
    %1036 = vmatpush2.msra.mxu0 0.0
    %1037 = vmatprep.subr.mxu0 0.0
    %1038 = vmatpush2.msra.mxu0 0.0
    %1039 = vmatprep.subr.mxu0 0.0
    %1040 = vmatpush2.msra.mxu0 0.0
    %1041 = vmatprep.subr.mxu0 0.0
    %1042 = vmatpush2.msra.mxu0 0.0
    %1043 = vmatprep.subr.mxu0 0.0
    %1044 = vmatpush2.msra.mxu0 0.0
    %1045 = vmatprep.subr.mxu0 0.0
    %1046 = vmatpush2.msra.mxu0 0.0
    %1047 = vmatprep.subr.mxu0 0.0
    %1048 = vmatpush2.msra.mxu0 0.0
    %1049 = vmatprep.subr.mxu0 0.0
    %1050 = vmatpush2.msra.mxu0 0.0
    %1051 = vmatprep.mubr.f32.mxu0 0.0
    %1052 = vmatmul.mubr.f32.gmra.mxu0 %v572
    %v1053 = vpop.f32.mrf.mxu0
    %v1054 = vadd.f32 0.0, %v1053
    %v1055 = vpop.f32.mrf.mxu0
    %v1056 = vadd.f32 0.0, %v1055
    %1057 = vdwg.mxu0
    %v1058 = vadd.f32 %v912, %v983
    %v1059 = vadd.f32 %v913, %v985
    %v1060 = vadd.f32 %v914, %v1054
    %v1061 = vadd.f32 %v915, %v1056
    %v1062 = vxor.u32 %v1058, 2147483648
    %v1063 = vmul.f32 %v1062, 1.442695
    %v1064 = vpow.pop %v1063
    %v1065 = vadd.f32 %v1064, 1.0
    %v1066 = vrcp.pop %v1065
    %v1067 = vmul.f32 1.0, %v1066
    %v1068 = vxor.u32 %v1059, 2147483648
    %v1069 = vmul.f32 %v1068, 1.442695
    %v1070 = vpow.pop %v1069
    %v1071 = vadd.f32 %v1070, 1.0
    %v1072 = vrcp.pop %v1071
    %v1073 = vmul.f32 1.0, %v1072
    %v1074 = vtanh.pop %v1060
    %v1075 = vxor.u32 %v1061, 2147483648
    %v1076 = vmul.f32 %v1075, 1.442695
    %v1077 = vpow.pop %v1076
    %v1078 = vadd.f32 %v1077, 1.0
    %v1079 = vrcp.pop %v1078
    %v1080 = vmul.f32 1.0, %v1079
    %v1081 = vmul.f32 %v1073, %v570
    %v1082 = vmul.f32 %v1067, %v1074
    %v1083 = vadd.f32 %v1081, %v1082
    %v1084 = vtanh.pop %v1083
    %v1085 = vmul.f32 %v1080, %v1084
    %1086 = vmatprep.subr.mxu0 %v153
    %1087 = vmatpush1.msra.mxu0 %v152
    %1088 = vmatprep.subr.mxu0 %v149
    %1089 = vmatpush1.msra.mxu0 %v148
    %1090 = vmatprep.subr.mxu0 %v145
    %1091 = vmatpush1.msra.mxu0 %v144
    %1092 = vmatprep.subr.mxu0 %v141
    %1093 = vmatpush1.msra.mxu0 %v140
    %1094 = vmatprep.subr.mxu0 %v137
    %1095 = vmatpush1.msra.mxu0 %v136
    %1096 = vmatprep.subr.mxu0 %v133
    %1097 = vmatpush1.msra.mxu0 %v132
    %1098 = vmatprep.subr.mxu0 %v129
    %1099 = vmatpush1.msra.mxu0 %v128
    %1100 = vmatprep.subr.mxu0 %v125
    %1101 = vmatpush1.msra.mxu0 %v124
    %1102 = vmatprep.subr.mxu0 %v121
    %1103 = vmatpush1.msra.mxu0 %v120
    %1104 = vmatprep.subr.mxu0 %v117
    %1105 = vmatpush1.msra.mxu0 %v116
    %1106 = vmatprep.subr.mxu0 %v113
    %1107 = vmatpush1.msra.mxu0 %v112
    %1108 = vmatprep.subr.mxu0 %v109
    %1109 = vmatpush1.msra.mxu0 %v108
    %1110 = vmatprep.subr.mxu0 %v105
    %1111 = vmatpush1.msra.mxu0 %v104
    %1112 = vmatprep.subr.mxu0 %v101
    %1113 = vmatpush1.msra.mxu0 %v100
    %1114 = vmatprep.subr.mxu0 %v97
    %1115 = vmatpush1.msra.mxu0 %v96
    %1116 = vmatprep.subr.mxu0 %v93
    %1117 = vmatpush1.msra.mxu0 %v92
    %1118 = vmatprep.subr.mxu0 0.0
    %1119 = vmatpush2.msra.mxu0 0.0
    %1120 = vmatprep.subr.mxu0 0.0
    %1121 = vmatpush2.msra.mxu0 0.0
    %1122 = vmatprep.subr.mxu0 0.0
    %1123 = vmatpush2.msra.mxu0 0.0
    %1124 = vmatprep.subr.mxu0 0.0
    %1125 = vmatpush2.msra.mxu0 0.0
    %1126 = vmatprep.subr.mxu0 0.0
    %1127 = vmatpush2.msra.mxu0 0.0
    %1128 = vmatprep.subr.mxu0 0.0
    %1129 = vmatpush2.msra.mxu0 0.0
    %1130 = vmatprep.subr.mxu0 0.0
    %1131 = vmatpush2.msra.mxu0 0.0
    %1132 = vmatprep.subr.mxu0 0.0
    %1133 = vmatpush2.msra.mxu0 0.0
    %1134 = vmatprep.subr.mxu0 0.0
    %1135 = vmatpush2.msra.mxu0 0.0
    %1136 = vmatprep.subr.mxu0 0.0
    %1137 = vmatpush2.msra.mxu0 0.0
    %1138 = vmatprep.subr.mxu0 0.0
    %1139 = vmatpush2.msra.mxu0 0.0
    %1140 = vmatprep.subr.mxu0 0.0
    %1141 = vmatpush2.msra.mxu0 0.0
    %1142 = vmatprep.subr.mxu0 0.0
    %1143 = vmatpush2.msra.mxu0 0.0
    %1144 = vmatprep.subr.mxu0 0.0
    %1145 = vmatpush2.msra.mxu0 0.0
    %1146 = vmatprep.subr.mxu0 0.0
    %1147 = vmatpush2.msra.mxu0 0.0
    %1148 = vmatprep.subr.mxu0 0.0
    %1149 = vmatpush2.msra.mxu0 0.0
    %1150 = vmatprep.mubr.f32.mxu0 0.0
    %1151 = vmatmul.mubr.f32.gmra.mxu0 %v572
    %v1152 = vpop.f32.mrf.mxu0
    %v1153 = vadd.f32 0.0, %v1152
    %v1154 = vpop.f32.mrf.mxu0
    %v1155 = vadd.f32 0.0, %v1154
    %1156 = vdwg.mxu0
    %1157 = vmatprep.subr.mxu0 %v155
    %1158 = vmatpush1.msra.mxu0 %v154
    %1159 = vmatprep.subr.mxu0 %v151
    %1160 = vmatpush1.msra.mxu0 %v150
    %1161 = vmatprep.subr.mxu0 %v147
    %1162 = vmatpush1.msra.mxu0 %v146
    %1163 = vmatprep.subr.mxu0 %v143
    %1164 = vmatpush1.msra.mxu0 %v142
    %1165 = vmatprep.subr.mxu0 %v139
    %1166 = vmatpush1.msra.mxu0 %v138
    %1167 = vmatprep.subr.mxu0 %v135
    %1168 = vmatpush1.msra.mxu0 %v134
    %1169 = vmatprep.subr.mxu0 %v131
    %1170 = vmatpush1.msra.mxu0 %v130
    %1171 = vmatprep.subr.mxu0 %v127
    %1172 = vmatpush1.msra.mxu0 %v126
    %1173 = vmatprep.subr.mxu0 %v123
    %1174 = vmatpush1.msra.mxu0 %v122
    %1175 = vmatprep.subr.mxu0 %v119
    %1176 = vmatpush1.msra.mxu0 %v118
    %1177 = vmatprep.subr.mxu0 %v115
    %1178 = vmatpush1.msra.mxu0 %v114
    %1179 = vmatprep.subr.mxu0 %v111
    %1180 = vmatpush1.msra.mxu0 %v110
    %1181 = vmatprep.subr.mxu0 %v107
    %1182 = vmatpush1.msra.mxu0 %v106
    %1183 = vmatprep.subr.mxu0 %v103
    %1184 = vmatpush1.msra.mxu0 %v102
    %1185 = vmatprep.subr.mxu0 %v99
    %1186 = vmatpush1.msra.mxu0 %v98
    %1187 = vmatprep.subr.mxu0 %v95
    %1188 = vmatpush1.msra.mxu0 %v94
    %1189 = vmatprep.subr.mxu0 0.0
    %1190 = vmatpush2.msra.mxu0 0.0
    %1191 = vmatprep.subr.mxu0 0.0
    %1192 = vmatpush2.msra.mxu0 0.0
    %1193 = vmatprep.subr.mxu0 0.0
    %1194 = vmatpush2.msra.mxu0 0.0
    %1195 = vmatprep.subr.mxu0 0.0
    %1196 = vmatpush2.msra.mxu0 0.0
    %1197 = vmatprep.subr.mxu0 0.0
    %1198 = vmatpush2.msra.mxu0 0.0
    %1199 = vmatprep.subr.mxu0 0.0
    %1200 = vmatpush2.msra.mxu0 0.0
    %1201 = vmatprep.subr.mxu0 0.0
    %1202 = vmatpush2.msra.mxu0 0.0
    %1203 = vmatprep.subr.mxu0 0.0
    %1204 = vmatpush2.msra.mxu0 0.0
    %1205 = vmatprep.subr.mxu0 0.0
    %1206 = vmatpush2.msra.mxu0 0.0
    %1207 = vmatprep.subr.mxu0 0.0
    %1208 = vmatpush2.msra.mxu0 0.0
    %1209 = vmatprep.subr.mxu0 0.0
    %1210 = vmatpush2.msra.mxu0 0.0
    %1211 = vmatprep.subr.mxu0 0.0
    %1212 = vmatpush2.msra.mxu0 0.0
    %1213 = vmatprep.subr.mxu0 0.0
    %1214 = vmatpush2.msra.mxu0 0.0
    %1215 = vmatprep.subr.mxu0 0.0
    %1216 = vmatpush2.msra.mxu0 0.0
    %1217 = vmatprep.subr.mxu0 0.0
    %1218 = vmatpush2.msra.mxu0 0.0
    %1219 = vmatprep.subr.mxu0 0.0
    %1220 = vmatpush2.msra.mxu0 0.0
    %1221 = vmatprep.mubr.f32.mxu0 0.0
    %1222 = vmatmul.mubr.f32.gmra.mxu0 %v572
    %v1223 = vpop.f32.mrf.mxu0
    %v1224 = vadd.f32 0.0, %v1223
    %v1225 = vpop.f32.mrf.mxu0
    %v1226 = vadd.f32 0.0, %v1225
    %1227 = vdwg.mxu0
    %v1228 = vadd.f32 %v719, %v1153
    %v1229 = vadd.f32 %v723, %v1155
    %v1230 = vadd.f32 %v727, %v1224
    %v1231 = vadd.f32 %v731, %v1226
    %1232 = vmatprep.subr.mxu0 %v217
    %1233 = vmatpush1.msra.mxu0 %v216
    %1234 = vmatprep.subr.mxu0 %v213
    %1235 = vmatpush1.msra.mxu0 %v212
    %1236 = vmatprep.subr.mxu0 %v209
    %1237 = vmatpush1.msra.mxu0 %v208
    %1238 = vmatprep.subr.mxu0 %v205
    %1239 = vmatpush1.msra.mxu0 %v204
    %1240 = vmatprep.subr.mxu0 %v201
    %1241 = vmatpush1.msra.mxu0 %v200
    %1242 = vmatprep.subr.mxu0 %v197
    %1243 = vmatpush1.msra.mxu0 %v196
    %1244 = vmatprep.subr.mxu0 %v193
    %1245 = vmatpush1.msra.mxu0 %v192
    %1246 = vmatprep.subr.mxu0 %v189
    %1247 = vmatpush1.msra.mxu0 %v188
    %1248 = vmatprep.subr.mxu0 %v185
    %1249 = vmatpush1.msra.mxu0 %v184
    %1250 = vmatprep.subr.mxu0 %v181
    %1251 = vmatpush1.msra.mxu0 %v180
    %1252 = vmatprep.subr.mxu0 %v177
    %1253 = vmatpush1.msra.mxu0 %v176
    %1254 = vmatprep.subr.mxu0 %v173
    %1255 = vmatpush1.msra.mxu0 %v172
    %1256 = vmatprep.subr.mxu0 %v169
    %1257 = vmatpush1.msra.mxu0 %v168
    %1258 = vmatprep.subr.mxu0 %v165
    %1259 = vmatpush1.msra.mxu0 %v164
    %1260 = vmatprep.subr.mxu0 %v161
    %1261 = vmatpush1.msra.mxu0 %v160
    %1262 = vmatprep.subr.mxu0 %v157
    %1263 = vmatpush1.msra.mxu0 %v156
    %1264 = vmatprep.subr.mxu0 0.0
    %1265 = vmatpush2.msra.mxu0 0.0
    %1266 = vmatprep.subr.mxu0 0.0
    %1267 = vmatpush2.msra.mxu0 0.0
    %1268 = vmatprep.subr.mxu0 0.0
    %1269 = vmatpush2.msra.mxu0 0.0
    %1270 = vmatprep.subr.mxu0 0.0
    %1271 = vmatpush2.msra.mxu0 0.0
    %1272 = vmatprep.subr.mxu0 0.0
    %1273 = vmatpush2.msra.mxu0 0.0
    %1274 = vmatprep.subr.mxu0 0.0
    %1275 = vmatpush2.msra.mxu0 0.0
    %1276 = vmatprep.subr.mxu0 0.0
    %1277 = vmatpush2.msra.mxu0 0.0
    %1278 = vmatprep.subr.mxu0 0.0
    %1279 = vmatpush2.msra.mxu0 0.0
    %1280 = vmatprep.subr.mxu0 0.0
    %1281 = vmatpush2.msra.mxu0 0.0
    %1282 = vmatprep.subr.mxu0 0.0
    %1283 = vmatpush2.msra.mxu0 0.0
    %1284 = vmatprep.subr.mxu0 0.0
    %1285 = vmatpush2.msra.mxu0 0.0
    %1286 = vmatprep.subr.mxu0 0.0
    %1287 = vmatpush2.msra.mxu0 0.0
    %1288 = vmatprep.subr.mxu0 0.0
    %1289 = vmatpush2.msra.mxu0 0.0
    %1290 = vmatprep.subr.mxu0 0.0
    %1291 = vmatpush2.msra.mxu0 0.0
    %1292 = vmatprep.subr.mxu0 0.0
    %1293 = vmatpush2.msra.mxu0 0.0
    %1294 = vmatprep.subr.mxu0 0.0
    %1295 = vmatpush2.msra.mxu0 0.0
    %1296 = vmatprep.mubr.f32.mxu0 0.0
    %1297 = vmatmul.mubr.f32.gmra.mxu0 %v909
    %v1298 = vpop.f32.mrf.mxu0
    %v1299 = vadd.f32 0.0, %v1298
    %v1300 = vpop.f32.mrf.mxu0
    %v1301 = vadd.f32 0.0, %v1300
    %1302 = vdwg.mxu0
    %1303 = vmatprep.subr.mxu0 %v219
    %1304 = vmatpush1.msra.mxu0 %v218
    %1305 = vmatprep.subr.mxu0 %v215
    %1306 = vmatpush1.msra.mxu0 %v214
    %1307 = vmatprep.subr.mxu0 %v211
    %1308 = vmatpush1.msra.mxu0 %v210
    %1309 = vmatprep.subr.mxu0 %v207
    %1310 = vmatpush1.msra.mxu0 %v206
    %1311 = vmatprep.subr.mxu0 %v203
    %1312 = vmatpush1.msra.mxu0 %v202
    %1313 = vmatprep.subr.mxu0 %v199
    %1314 = vmatpush1.msra.mxu0 %v198
    %1315 = vmatprep.subr.mxu0 %v195
    %1316 = vmatpush1.msra.mxu0 %v194
    %1317 = vmatprep.subr.mxu0 %v191
    %1318 = vmatpush1.msra.mxu0 %v190
    %1319 = vmatprep.subr.mxu0 %v187
    %1320 = vmatpush1.msra.mxu0 %v186
    %1321 = vmatprep.subr.mxu0 %v183
    %1322 = vmatpush1.msra.mxu0 %v182
    %1323 = vmatprep.subr.mxu0 %v179
    %1324 = vmatpush1.msra.mxu0 %v178
    %1325 = vmatprep.subr.mxu0 %v175
    %1326 = vmatpush1.msra.mxu0 %v174
    %1327 = vmatprep.subr.mxu0 %v171
    %1328 = vmatpush1.msra.mxu0 %v170
    %1329 = vmatprep.subr.mxu0 %v167
    %1330 = vmatpush1.msra.mxu0 %v166
    %1331 = vmatprep.subr.mxu0 %v163
    %1332 = vmatpush1.msra.mxu0 %v162
    %1333 = vmatprep.subr.mxu0 %v159
    %1334 = vmatpush1.msra.mxu0 %v158
    %1335 = vmatprep.subr.mxu0 0.0
    %1336 = vmatpush2.msra.mxu0 0.0
    %1337 = vmatprep.subr.mxu0 0.0
    %1338 = vmatpush2.msra.mxu0 0.0
    %1339 = vmatprep.subr.mxu0 0.0
    %1340 = vmatpush2.msra.mxu0 0.0
    %1341 = vmatprep.subr.mxu0 0.0
    %1342 = vmatpush2.msra.mxu0 0.0
    %1343 = vmatprep.subr.mxu0 0.0
    %1344 = vmatpush2.msra.mxu0 0.0
    %1345 = vmatprep.subr.mxu0 0.0
    %1346 = vmatpush2.msra.mxu0 0.0
    %1347 = vmatprep.subr.mxu0 0.0
    %1348 = vmatpush2.msra.mxu0 0.0
    %1349 = vmatprep.subr.mxu0 0.0
    %1350 = vmatpush2.msra.mxu0 0.0
    %1351 = vmatprep.subr.mxu0 0.0
    %1352 = vmatpush2.msra.mxu0 0.0
    %1353 = vmatprep.subr.mxu0 0.0
    %1354 = vmatpush2.msra.mxu0 0.0
    %1355 = vmatprep.subr.mxu0 0.0
    %1356 = vmatpush2.msra.mxu0 0.0
    %1357 = vmatprep.subr.mxu0 0.0
    %1358 = vmatpush2.msra.mxu0 0.0
    %1359 = vmatprep.subr.mxu0 0.0
    %1360 = vmatpush2.msra.mxu0 0.0
    %1361 = vmatprep.subr.mxu0 0.0
    %1362 = vmatpush2.msra.mxu0 0.0
    %1363 = vmatprep.subr.mxu0 0.0
    %1364 = vmatpush2.msra.mxu0 0.0
    %1365 = vmatprep.subr.mxu0 0.0
    %1366 = vmatpush2.msra.mxu0 0.0
    %1367 = vmatprep.mubr.f32.mxu0 0.0
    %1368 = vmatmul.mubr.f32.gmra.mxu0 %v909
    %v1369 = vpop.f32.mrf.mxu0
    %v1370 = vadd.f32 0.0, %v1369
    %v1371 = vpop.f32.mrf.mxu0
    %v1372 = vadd.f32 0.0, %v1371
    %1373 = vdwg.mxu0
    %v1374 = vadd.f32 %v1228, %v1299
    %v1375 = vadd.f32 %v1229, %v1301
    %v1376 = vadd.f32 %v1230, %v1370
    %v1377 = vadd.f32 %v1231, %v1372
    %v1378 = vxor.u32 %v1374, 2147483648
    %v1379 = vmul.f32 %v1378, 1.442695
    %v1380 = vpow.pop %v1379
    %v1381 = vadd.f32 %v1380, 1.0
    %v1382 = vrcp.pop %v1381
    %v1383 = vmul.f32 1.0, %v1382
    %v1384 = vxor.u32 %v1375, 2147483648
    %v1385 = vmul.f32 %v1384, 1.442695
    %v1386 = vpow.pop %v1385
    %v1387 = vadd.f32 %v1386, 1.0
    %v1388 = vrcp.pop %v1387
    %v1389 = vmul.f32 1.0, %v1388
    %v1390 = vtanh.pop %v1376
    %v1391 = vxor.u32 %v1377, 2147483648
    %v1392 = vmul.f32 %v1391, 1.442695
    %v1393 = vpow.pop %v1392
    %v1394 = vadd.f32 %v1393, 1.0
    %v1395 = vrcp.pop %v1394
    %v1396 = vmul.f32 1.0, %v1395
    %v1397 = vmul.f32 %v1389, %v907
    %v1398 = vmul.f32 %v1383, %v1390
    %v1399 = vadd.f32 %v1397, %v1398
    %v1400 = vtanh.pop %v1399
    %v1401 = vmul.f32 %v1396, %v1400
    %s1402 = scalar_lea.vmem [#allocation2], 8
    %1403 = vst [vmem:[%s1402] sm:$0xff] %v1401
    %s1404 = scalar_lea.vmem %s0, 96
    %v1405 = vld [vmem:[%s1404] sm:$0xff]
    %v1406 = vld [vmem:[%s1404 + $0x8] sm:$0xff]
    %v1407 = vld [vmem:[%s1404 + $0x10] sm:$0xff]
    %v1408 = vld [vmem:[%s1404 + $0x18] sm:$0xff]
    %1409 = vmatprep.subr.mxu0 %v89
    %1410 = vmatpush1.msra.mxu0 %v88
    %1411 = vmatprep.subr.mxu0 %v85
    %1412 = vmatpush1.msra.mxu0 %v84
    %1413 = vmatprep.subr.mxu0 %v81
    %1414 = vmatpush1.msra.mxu0 %v80
    %1415 = vmatprep.subr.mxu0 %v77
    %1416 = vmatpush1.msra.mxu0 %v76
    %1417 = vmatprep.subr.mxu0 %v73
    %1418 = vmatpush1.msra.mxu0 %v72
    %1419 = vmatprep.subr.mxu0 %v69
    %1420 = vmatpush1.msra.mxu0 %v68
    %1421 = vmatprep.subr.mxu0 %v65
    %1422 = vmatpush1.msra.mxu0 %v64
    %1423 = vmatprep.subr.mxu0 %v61
    %1424 = vmatpush1.msra.mxu0 %v60
    %1425 = vmatprep.subr.mxu0 %v57
    %1426 = vmatpush1.msra.mxu0 %v56
    %1427 = vmatprep.subr.mxu0 %v53
    %1428 = vmatpush1.msra.mxu0 %v52
    %1429 = vmatprep.subr.mxu0 %v49
    %1430 = vmatpush1.msra.mxu0 %v48
    %1431 = vmatprep.subr.mxu0 %v45
    %1432 = vmatpush1.msra.mxu0 %v44
    %1433 = vmatprep.subr.mxu0 %v41
    %1434 = vmatpush1.msra.mxu0 %v40
    %1435 = vmatprep.subr.mxu0 %v37
    %1436 = vmatpush1.msra.mxu0 %v36
    %1437 = vmatprep.subr.mxu0 %v33
    %1438 = vmatpush1.msra.mxu0 %v32
    %1439 = vmatprep.subr.mxu0 %v29
    %1440 = vmatpush1.msra.mxu0 %v28
    %1441 = vmatprep.subr.mxu0 0.0
    %1442 = vmatpush2.msra.mxu0 0.0
    %1443 = vmatprep.subr.mxu0 0.0
    %1444 = vmatpush2.msra.mxu0 0.0
    %1445 = vmatprep.subr.mxu0 0.0
    %1446 = vmatpush2.msra.mxu0 0.0
    %1447 = vmatprep.subr.mxu0 0.0
    %1448 = vmatpush2.msra.mxu0 0.0
    %1449 = vmatprep.subr.mxu0 0.0
    %1450 = vmatpush2.msra.mxu0 0.0
    %1451 = vmatprep.subr.mxu0 0.0
    %1452 = vmatpush2.msra.mxu0 0.0
    %1453 = vmatprep.subr.mxu0 0.0
    %1454 = vmatpush2.msra.mxu0 0.0
    %1455 = vmatprep.subr.mxu0 0.0
    %1456 = vmatpush2.msra.mxu0 0.0
    %1457 = vmatprep.subr.mxu0 0.0
    %1458 = vmatpush2.msra.mxu0 0.0
    %1459 = vmatprep.subr.mxu0 0.0
    %1460 = vmatpush2.msra.mxu0 0.0
    %1461 = vmatprep.subr.mxu0 0.0
    %1462 = vmatpush2.msra.mxu0 0.0
    %1463 = vmatprep.subr.mxu0 0.0
    %1464 = vmatpush2.msra.mxu0 0.0
    %1465 = vmatprep.subr.mxu0 0.0
    %1466 = vmatpush2.msra.mxu0 0.0
    %1467 = vmatprep.subr.mxu0 0.0
    %1468 = vmatpush2.msra.mxu0 0.0
    %1469 = vmatprep.subr.mxu0 0.0
    %1470 = vmatpush2.msra.mxu0 0.0
    %1471 = vmatprep.subr.mxu0 0.0
    %1472 = vmatpush2.msra.mxu0 0.0
    %1473 = vmatprep.mubr.f32.mxu0 0.0
    %1474 = vmatmul.mubr.f32.gmra.mxu0 %v1085
    %v1475 = vpop.f32.mrf.mxu0
    %v1476 = vadd.f32 0.0, %v1475
    %v1477 = vpop.f32.mrf.mxu0
    %v1478 = vadd.f32 0.0, %v1477
    %1479 = vdwg.mxu0
    %1480 = vmatprep.subr.mxu0 %v91
    %1481 = vmatpush1.msra.mxu0 %v90
    %1482 = vmatprep.subr.mxu0 %v87
    %1483 = vmatpush1.msra.mxu0 %v86
    %1484 = vmatprep.subr.mxu0 %v83
    %1485 = vmatpush1.msra.mxu0 %v82
    %1486 = vmatprep.subr.mxu0 %v79
    %1487 = vmatpush1.msra.mxu0 %v78
    %1488 = vmatprep.subr.mxu0 %v75
    %1489 = vmatpush1.msra.mxu0 %v74
    %1490 = vmatprep.subr.mxu0 %v71
    %1491 = vmatpush1.msra.mxu0 %v70
    %1492 = vmatprep.subr.mxu0 %v67
    %1493 = vmatpush1.msra.mxu0 %v66
    %1494 = vmatprep.subr.mxu0 %v63
    %1495 = vmatpush1.msra.mxu0 %v62
    %1496 = vmatprep.subr.mxu0 %v59
    %1497 = vmatpush1.msra.mxu0 %v58
    %1498 = vmatprep.subr.mxu0 %v55
    %1499 = vmatpush1.msra.mxu0 %v54
    %1500 = vmatprep.subr.mxu0 %v51
    %1501 = vmatpush1.msra.mxu0 %v50
    %1502 = vmatprep.subr.mxu0 %v47
    %1503 = vmatpush1.msra.mxu0 %v46
    %1504 = vmatprep.subr.mxu0 %v43
    %1505 = vmatpush1.msra.mxu0 %v42
    %1506 = vmatprep.subr.mxu0 %v39
    %1507 = vmatpush1.msra.mxu0 %v38
    %1508 = vmatprep.subr.mxu0 %v35
    %1509 = vmatpush1.msra.mxu0 %v34
    %1510 = vmatprep.subr.mxu0 %v31
    %1511 = vmatpush1.msra.mxu0 %v30
    %1512 = vmatprep.subr.mxu0 0.0
    %1513 = vmatpush2.msra.mxu0 0.0
    %1514 = vmatprep.subr.mxu0 0.0
    %1515 = vmatpush2.msra.mxu0 0.0
    %1516 = vmatprep.subr.mxu0 0.0
    %1517 = vmatpush2.msra.mxu0 0.0
    %1518 = vmatprep.subr.mxu0 0.0
    %1519 = vmatpush2.msra.mxu0 0.0
    %1520 = vmatprep.subr.mxu0 0.0
    %1521 = vmatpush2.msra.mxu0 0.0
    %1522 = vmatprep.subr.mxu0 0.0
    %1523 = vmatpush2.msra.mxu0 0.0
    %1524 = vmatprep.subr.mxu0 0.0
    %1525 = vmatpush2.msra.mxu0 0.0
    %1526 = vmatprep.subr.mxu0 0.0
    %1527 = vmatpush2.msra.mxu0 0.0
    %1528 = vmatprep.subr.mxu0 0.0
    %1529 = vmatpush2.msra.mxu0 0.0
    %1530 = vmatprep.subr.mxu0 0.0
    %1531 = vmatpush2.msra.mxu0 0.0
    %1532 = vmatprep.subr.mxu0 0.0
    %1533 = vmatpush2.msra.mxu0 0.0
    %1534 = vmatprep.subr.mxu0 0.0
    %1535 = vmatpush2.msra.mxu0 0.0
    %1536 = vmatprep.subr.mxu0 0.0
    %1537 = vmatpush2.msra.mxu0 0.0
    %1538 = vmatprep.subr.mxu0 0.0
    %1539 = vmatpush2.msra.mxu0 0.0
    %1540 = vmatprep.subr.mxu0 0.0
    %1541 = vmatpush2.msra.mxu0 0.0
    %1542 = vmatprep.subr.mxu0 0.0
    %1543 = vmatpush2.msra.mxu0 0.0
    %1544 = vmatprep.mubr.f32.mxu0 0.0
    %1545 = vmatmul.mubr.f32.gmra.mxu0 %v1085
    %v1546 = vpop.f32.mrf.mxu0
    %v1547 = vadd.f32 0.0, %v1546
    %v1548 = vpop.f32.mrf.mxu0
    %v1549 = vadd.f32 0.0, %v1548
    %1550 = vdwg.mxu0
    %v1551 = vadd.f32 %v1405, %v1476
    %v1552 = vadd.f32 %v1406, %v1478
    %v1553 = vadd.f32 %v1407, %v1547
    %v1554 = vadd.f32 %v1408, %v1549
    %v1555 = vxor.u32 %v1551, 2147483648
    %v1556 = vmul.f32 %v1555, 1.442695
    %v1557 = vpow.pop %v1556
    %v1558 = vadd.f32 %v1557, 1.0
    %v1559 = vrcp.pop %v1558
    %v1560 = vmul.f32 1.0, %v1559
    %v1561 = vxor.u32 %v1552, 2147483648
    %v1562 = vmul.f32 %v1561, 1.442695
    %v1563 = vpow.pop %v1562
    %v1564 = vadd.f32 %v1563, 1.0
    %v1565 = vrcp.pop %v1564
    %v1566 = vmul.f32 1.0, %v1565
    %v1567 = vtanh.pop %v1553
    %v1568 = vxor.u32 %v1554, 2147483648
    %v1569 = vmul.f32 %v1568, 1.442695
    %v1570 = vpow.pop %v1569
    %v1571 = vadd.f32 %v1570, 1.0
    %v1572 = vrcp.pop %v1571
    %v1573 = vmul.f32 1.0, %v1572
    %v1574 = vmul.f32 %v1566, %v1083
    %v1575 = vmul.f32 %v1560, %v1567
    %v1576 = vadd.f32 %v1574, %v1575
    %v1577 = vtanh.pop %v1576
    %v1578 = vmul.f32 %v1573, %v1577
    %1579 = vmatprep.subr.mxu0 %v153
    %1580 = vmatpush1.msra.mxu0 %v152
    %1581 = vmatprep.subr.mxu0 %v149
    %1582 = vmatpush1.msra.mxu0 %v148
    %1583 = vmatprep.subr.mxu0 %v145
    %1584 = vmatpush1.msra.mxu0 %v144
    %1585 = vmatprep.subr.mxu0 %v141
    %1586 = vmatpush1.msra.mxu0 %v140
    %1587 = vmatprep.subr.mxu0 %v137
    %1588 = vmatpush1.msra.mxu0 %v136
    %1589 = vmatprep.subr.mxu0 %v133
    %1590 = vmatpush1.msra.mxu0 %v132
    %1591 = vmatprep.subr.mxu0 %v129
    %1592 = vmatpush1.msra.mxu0 %v128
    %1593 = vmatprep.subr.mxu0 %v125
    %1594 = vmatpush1.msra.mxu0 %v124
    %1595 = vmatprep.subr.mxu0 %v121
    %1596 = vmatpush1.msra.mxu0 %v120
    %1597 = vmatprep.subr.mxu0 %v117
    %1598 = vmatpush1.msra.mxu0 %v116
    %1599 = vmatprep.subr.mxu0 %v113
    %1600 = vmatpush1.msra.mxu0 %v112
    %1601 = vmatprep.subr.mxu0 %v109
    %1602 = vmatpush1.msra.mxu0 %v108
    %1603 = vmatprep.subr.mxu0 %v105
    %1604 = vmatpush1.msra.mxu0 %v104
    %1605 = vmatprep.subr.mxu0 %v101
    %1606 = vmatpush1.msra.mxu0 %v100
    %1607 = vmatprep.subr.mxu0 %v97
    %1608 = vmatpush1.msra.mxu0 %v96
    %1609 = vmatprep.subr.mxu0 %v93
    %1610 = vmatpush1.msra.mxu0 %v92
    %1611 = vmatprep.subr.mxu0 0.0
    %1612 = vmatpush2.msra.mxu0 0.0
    %1613 = vmatprep.subr.mxu0 0.0
    %1614 = vmatpush2.msra.mxu0 0.0
    %1615 = vmatprep.subr.mxu0 0.0
    %1616 = vmatpush2.msra.mxu0 0.0
    %1617 = vmatprep.subr.mxu0 0.0
    %1618 = vmatpush2.msra.mxu0 0.0
    %1619 = vmatprep.subr.mxu0 0.0
    %1620 = vmatpush2.msra.mxu0 0.0
    %1621 = vmatprep.subr.mxu0 0.0
    %1622 = vmatpush2.msra.mxu0 0.0
    %1623 = vmatprep.subr.mxu0 0.0
    %1624 = vmatpush2.msra.mxu0 0.0
    %1625 = vmatprep.subr.mxu0 0.0
    %1626 = vmatpush2.msra.mxu0 0.0
    %1627 = vmatprep.subr.mxu0 0.0
    %1628 = vmatpush2.msra.mxu0 0.0
    %1629 = vmatprep.subr.mxu0 0.0
    %1630 = vmatpush2.msra.mxu0 0.0
    %1631 = vmatprep.subr.mxu0 0.0
    %1632 = vmatpush2.msra.mxu0 0.0
    %1633 = vmatprep.subr.mxu0 0.0
    %1634 = vmatpush2.msra.mxu0 0.0
    %1635 = vmatprep.subr.mxu0 0.0
    %1636 = vmatpush2.msra.mxu0 0.0
    %1637 = vmatprep.subr.mxu0 0.0
    %1638 = vmatpush2.msra.mxu0 0.0
    %1639 = vmatprep.subr.mxu0 0.0
    %1640 = vmatpush2.msra.mxu0 0.0
    %1641 = vmatprep.subr.mxu0 0.0
    %1642 = vmatpush2.msra.mxu0 0.0
    %1643 = vmatprep.mubr.f32.mxu0 0.0
    %1644 = vmatmul.mubr.f32.gmra.mxu0 %v1085
    %v1645 = vpop.f32.mrf.mxu0
    %v1646 = vadd.f32 0.0, %v1645
    %v1647 = vpop.f32.mrf.mxu0
    %v1648 = vadd.f32 0.0, %v1647
    %1649 = vdwg.mxu0
    %1650 = vmatprep.subr.mxu0 %v155
    %1651 = vmatpush1.msra.mxu0 %v154
    %1652 = vmatprep.subr.mxu0 %v151
    %1653 = vmatpush1.msra.mxu0 %v150
    %1654 = vmatprep.subr.mxu0 %v147
    %1655 = vmatpush1.msra.mxu0 %v146
    %1656 = vmatprep.subr.mxu0 %v143
    %1657 = vmatpush1.msra.mxu0 %v142
    %1658 = vmatprep.subr.mxu0 %v139
    %1659 = vmatpush1.msra.mxu0 %v138
    %1660 = vmatprep.subr.mxu0 %v135
    %1661 = vmatpush1.msra.mxu0 %v134
    %1662 = vmatprep.subr.mxu0 %v131
    %1663 = vmatpush1.msra.mxu0 %v130
    %1664 = vmatprep.subr.mxu0 %v127
    %1665 = vmatpush1.msra.mxu0 %v126
    %1666 = vmatprep.subr.mxu0 %v123
    %1667 = vmatpush1.msra.mxu0 %v122
    %1668 = vmatprep.subr.mxu0 %v119
    %1669 = vmatpush1.msra.mxu0 %v118
    %1670 = vmatprep.subr.mxu0 %v115
    %1671 = vmatpush1.msra.mxu0 %v114
    %1672 = vmatprep.subr.mxu0 %v111
    %1673 = vmatpush1.msra.mxu0 %v110
    %1674 = vmatprep.subr.mxu0 %v107
    %1675 = vmatpush1.msra.mxu0 %v106
    %1676 = vmatprep.subr.mxu0 %v103
    %1677 = vmatpush1.msra.mxu0 %v102
    %1678 = vmatprep.subr.mxu0 %v99
    %1679 = vmatpush1.msra.mxu0 %v98
    %1680 = vmatprep.subr.mxu0 %v95
    %1681 = vmatpush1.msra.mxu0 %v94
    %1682 = vmatprep.subr.mxu0 0.0
    %1683 = vmatpush2.msra.mxu0 0.0
    %1684 = vmatprep.subr.mxu0 0.0
    %1685 = vmatpush2.msra.mxu0 0.0
    %1686 = vmatprep.subr.mxu0 0.0
    %1687 = vmatpush2.msra.mxu0 0.0
    %1688 = vmatprep.subr.mxu0 0.0
    %1689 = vmatpush2.msra.mxu0 0.0
    %1690 = vmatprep.subr.mxu0 0.0
    %1691 = vmatpush2.msra.mxu0 0.0
    %1692 = vmatprep.subr.mxu0 0.0
    %1693 = vmatpush2.msra.mxu0 0.0
    %1694 = vmatprep.subr.mxu0 0.0
    %1695 = vmatpush2.msra.mxu0 0.0
    %1696 = vmatprep.subr.mxu0 0.0
    %1697 = vmatpush2.msra.mxu0 0.0
    %1698 = vmatprep.subr.mxu0 0.0
    %1699 = vmatpush2.msra.mxu0 0.0
    %1700 = vmatprep.subr.mxu0 0.0
    %1701 = vmatpush2.msra.mxu0 0.0
    %1702 = vmatprep.subr.mxu0 0.0
    %1703 = vmatpush2.msra.mxu0 0.0
    %1704 = vmatprep.subr.mxu0 0.0
    %1705 = vmatpush2.msra.mxu0 0.0
    %1706 = vmatprep.subr.mxu0 0.0
    %1707 = vmatpush2.msra.mxu0 0.0
    %1708 = vmatprep.subr.mxu0 0.0
    %1709 = vmatpush2.msra.mxu0 0.0
    %1710 = vmatprep.subr.mxu0 0.0
    %1711 = vmatpush2.msra.mxu0 0.0
    %1712 = vmatprep.subr.mxu0 0.0
    %1713 = vmatpush2.msra.mxu0 0.0
    %1714 = vmatprep.mubr.f32.mxu0 0.0
    %1715 = vmatmul.mubr.f32.gmra.mxu0 %v1085
    %v1716 = vpop.f32.mrf.mxu0
    %v1717 = vadd.f32 0.0, %v1716
    %v1718 = vpop.f32.mrf.mxu0
    %v1719 = vadd.f32 0.0, %v1718
    %1720 = vdwg.mxu0
    %v1721 = vadd.f32 %v719, %v1646
    %v1722 = vadd.f32 %v723, %v1648
    %v1723 = vadd.f32 %v727, %v1717
    %v1724 = vadd.f32 %v731, %v1719
    %1725 = vmatprep.subr.mxu0 %v217
    %1726 = vmatpush1.msra.mxu0 %v216
    %1727 = vmatprep.subr.mxu0 %v213
    %1728 = vmatpush1.msra.mxu0 %v212
    %1729 = vmatprep.subr.mxu0 %v209
    %1730 = vmatpush1.msra.mxu0 %v208
    %1731 = vmatprep.subr.mxu0 %v205
    %1732 = vmatpush1.msra.mxu0 %v204
    %1733 = vmatprep.subr.mxu0 %v201
    %1734 = vmatpush1.msra.mxu0 %v200
    %1735 = vmatprep.subr.mxu0 %v197
    %1736 = vmatpush1.msra.mxu0 %v196
    %1737 = vmatprep.subr.mxu0 %v193
    %1738 = vmatpush1.msra.mxu0 %v192
    %1739 = vmatprep.subr.mxu0 %v189
    %1740 = vmatpush1.msra.mxu0 %v188
    %1741 = vmatprep.subr.mxu0 %v185
    %1742 = vmatpush1.msra.mxu0 %v184
    %1743 = vmatprep.subr.mxu0 %v181
    %1744 = vmatpush1.msra.mxu0 %v180
    %1745 = vmatprep.subr.mxu0 %v177
    %1746 = vmatpush1.msra.mxu0 %v176
    %1747 = vmatprep.subr.mxu0 %v173
    %1748 = vmatpush1.msra.mxu0 %v172
    %1749 = vmatprep.subr.mxu0 %v169
    %1750 = vmatpush1.msra.mxu0 %v168
    %1751 = vmatprep.subr.mxu0 %v165
    %1752 = vmatpush1.msra.mxu0 %v164
    %1753 = vmatprep.subr.mxu0 %v161
    %1754 = vmatpush1.msra.mxu0 %v160
    %1755 = vmatprep.subr.mxu0 %v157
    %1756 = vmatpush1.msra.mxu0 %v156
    %1757 = vmatprep.subr.mxu0 0.0
    %1758 = vmatpush2.msra.mxu0 0.0
    %1759 = vmatprep.subr.mxu0 0.0
    %1760 = vmatpush2.msra.mxu0 0.0
    %1761 = vmatprep.subr.mxu0 0.0
    %1762 = vmatpush2.msra.mxu0 0.0
    %1763 = vmatprep.subr.mxu0 0.0
    %1764 = vmatpush2.msra.mxu0 0.0
    %1765 = vmatprep.subr.mxu0 0.0
    %1766 = vmatpush2.msra.mxu0 0.0
    %1767 = vmatprep.subr.mxu0 0.0
    %1768 = vmatpush2.msra.mxu0 0.0
    %1769 = vmatprep.subr.mxu0 0.0
    %1770 = vmatpush2.msra.mxu0 0.0
    %1771 = vmatprep.subr.mxu0 0.0
    %1772 = vmatpush2.msra.mxu0 0.0
    %1773 = vmatprep.subr.mxu0 0.0
    %1774 = vmatpush2.msra.mxu0 0.0
    %1775 = vmatprep.subr.mxu0 0.0
    %1776 = vmatpush2.msra.mxu0 0.0
    %1777 = vmatprep.subr.mxu0 0.0
    %1778 = vmatpush2.msra.mxu0 0.0
    %1779 = vmatprep.subr.mxu0 0.0
    %1780 = vmatpush2.msra.mxu0 0.0
    %1781 = vmatprep.subr.mxu0 0.0
    %1782 = vmatpush2.msra.mxu0 0.0
    %1783 = vmatprep.subr.mxu0 0.0
    %1784 = vmatpush2.msra.mxu0 0.0
    %1785 = vmatprep.subr.mxu0 0.0
    %1786 = vmatpush2.msra.mxu0 0.0
    %1787 = vmatprep.subr.mxu0 0.0
    %1788 = vmatpush2.msra.mxu0 0.0
    %1789 = vmatprep.mubr.f32.mxu0 0.0
    %1790 = vmatmul.mubr.f32.gmra.mxu0 %v1401
    %v1791 = vpop.f32.mrf.mxu0
    %v1792 = vadd.f32 0.0, %v1791
    %v1793 = vpop.f32.mrf.mxu0
    %v1794 = vadd.f32 0.0, %v1793
    %1795 = vdwg.mxu0
    %1796 = vmatprep.subr.mxu0 %v219
    %1797 = vmatpush1.msra.mxu0 %v218
    %1798 = vmatprep.subr.mxu0 %v215
    %1799 = vmatpush1.msra.mxu0 %v214
    %1800 = vmatprep.subr.mxu0 %v211
    %1801 = vmatpush1.msra.mxu0 %v210
    %1802 = vmatprep.subr.mxu0 %v207
    %1803 = vmatpush1.msra.mxu0 %v206
    %1804 = vmatprep.subr.mxu0 %v203
    %1805 = vmatpush1.msra.mxu0 %v202
    %1806 = vmatprep.subr.mxu0 %v199
    %1807 = vmatpush1.msra.mxu0 %v198
    %1808 = vmatprep.subr.mxu0 %v195
    %1809 = vmatpush1.msra.mxu0 %v194
    %1810 = vmatprep.subr.mxu0 %v191
    %1811 = vmatpush1.msra.mxu0 %v190
    %1812 = vmatprep.subr.mxu0 %v187
    %1813 = vmatpush1.msra.mxu0 %v186
    %1814 = vmatprep.subr.mxu0 %v183
    %1815 = vmatpush1.msra.mxu0 %v182
    %1816 = vmatprep.subr.mxu0 %v179
    %1817 = vmatpush1.msra.mxu0 %v178
    %1818 = vmatprep.subr.mxu0 %v175
    %1819 = vmatpush1.msra.mxu0 %v174
    %1820 = vmatprep.subr.mxu0 %v171
    %1821 = vmatpush1.msra.mxu0 %v170
    %1822 = vmatprep.subr.mxu0 %v167
    %1823 = vmatpush1.msra.mxu0 %v166
    %1824 = vmatprep.subr.mxu0 %v163
    %1825 = vmatpush1.msra.mxu0 %v162
    %1826 = vmatprep.subr.mxu0 %v159
    %1827 = vmatpush1.msra.mxu0 %v158
    %1828 = vmatprep.subr.mxu0 0.0
    %1829 = vmatpush2.msra.mxu0 0.0
    %1830 = vmatprep.subr.mxu0 0.0
    %1831 = vmatpush2.msra.mxu0 0.0
    %1832 = vmatprep.subr.mxu0 0.0
    %1833 = vmatpush2.msra.mxu0 0.0
    %1834 = vmatprep.subr.mxu0 0.0
    %1835 = vmatpush2.msra.mxu0 0.0
    %1836 = vmatprep.subr.mxu0 0.0
    %1837 = vmatpush2.msra.mxu0 0.0
    %1838 = vmatprep.subr.mxu0 0.0
    %1839 = vmatpush2.msra.mxu0 0.0
    %1840 = vmatprep.subr.mxu0 0.0
    %1841 = vmatpush2.msra.mxu0 0.0
    %1842 = vmatprep.subr.mxu0 0.0
    %1843 = vmatpush2.msra.mxu0 0.0
    %1844 = vmatprep.subr.mxu0 0.0
    %1845 = vmatpush2.msra.mxu0 0.0
    %1846 = vmatprep.subr.mxu0 0.0
    %1847 = vmatpush2.msra.mxu0 0.0
    %1848 = vmatprep.subr.mxu0 0.0
    %1849 = vmatpush2.msra.mxu0 0.0
    %1850 = vmatprep.subr.mxu0 0.0
    %1851 = vmatpush2.msra.mxu0 0.0
    %1852 = vmatprep.subr.mxu0 0.0
    %1853 = vmatpush2.msra.mxu0 0.0
    %1854 = vmatprep.subr.mxu0 0.0
    %1855 = vmatpush2.msra.mxu0 0.0
    %1856 = vmatprep.subr.mxu0 0.0
    %1857 = vmatpush2.msra.mxu0 0.0
    %1858 = vmatprep.subr.mxu0 0.0
    %1859 = vmatpush2.msra.mxu0 0.0
    %1860 = vmatprep.mubr.f32.mxu0 0.0
    %1861 = vmatmul.mubr.f32.gmra.mxu0 %v1401
    %v1862 = vpop.f32.mrf.mxu0
    %v1863 = vadd.f32 0.0, %v1862
    %v1864 = vpop.f32.mrf.mxu0
    %v1865 = vadd.f32 0.0, %v1864
    %1866 = vdwg.mxu0
    %v1867 = vadd.f32 %v1721, %v1792
    %v1868 = vadd.f32 %v1722, %v1794
    %v1869 = vadd.f32 %v1723, %v1863
    %v1870 = vadd.f32 %v1724, %v1865
    %v1871 = vxor.u32 %v1867, 2147483648
    %v1872 = vmul.f32 %v1871, 1.442695
    %v1873 = vpow.pop %v1872
    %v1874 = vadd.f32 %v1873, 1.0
    %v1875 = vrcp.pop %v1874
    %v1876 = vmul.f32 1.0, %v1875
    %v1877 = vxor.u32 %v1868, 2147483648
    %v1878 = vmul.f32 %v1877, 1.442695
    %v1879 = vpow.pop %v1878
    %v1880 = vadd.f32 %v1879, 1.0
    %v1881 = vrcp.pop %v1880
    %v1882 = vmul.f32 1.0, %v1881
    %v1883 = vtanh.pop %v1869
    %v1884 = vxor.u32 %v1870, 2147483648
    %v1885 = vmul.f32 %v1884, 1.442695
    %v1886 = vpow.pop %v1885
    %v1887 = vadd.f32 %v1886, 1.0
    %v1888 = vrcp.pop %v1887
    %v1889 = vmul.f32 1.0, %v1888
    %v1890 = vmul.f32 %v1882, %v1399
    %v1891 = vmul.f32 %v1876, %v1883
    %v1892 = vadd.f32 %v1890, %v1891
    %v1893 = vtanh.pop %v1892
    %v1894 = vmul.f32 %v1889, %v1893
    %s1895 = scalar_lea.vmem [#allocation2], 16
    %1896 = vst [vmem:[%s1895] sm:$0xff] %v1894
    %s1897 = scalar_lea.vmem %s0, 128
    %v1898 = vld [vmem:[%s1897] sm:$0xff]
    %v1899 = vld [vmem:[%s1897 + $0x8] sm:$0xff]
    %v1900 = vld [vmem:[%s1897 + $0x10] sm:$0xff]
    %v1901 = vld [vmem:[%s1897 + $0x18] sm:$0xff]
    %1902 = vmatprep.subr.mxu0 %v89
    %1903 = vmatpush1.msra.mxu0 %v88
    %1904 = vmatprep.subr.mxu0 %v85
    %1905 = vmatpush1.msra.mxu0 %v84
    %1906 = vmatprep.subr.mxu0 %v81
    %1907 = vmatpush1.msra.mxu0 %v80
    %1908 = vmatprep.subr.mxu0 %v77
    %1909 = vmatpush1.msra.mxu0 %v76
    %1910 = vmatprep.subr.mxu0 %v73
    %1911 = vmatpush1.msra.mxu0 %v72
    %1912 = vmatprep.subr.mxu0 %v69
    %1913 = vmatpush1.msra.mxu0 %v68
    %1914 = vmatprep.subr.mxu0 %v65
    %1915 = vmatpush1.msra.mxu0 %v64
    %1916 = vmatprep.subr.mxu0 %v61
    %1917 = vmatpush1.msra.mxu0 %v60
    %1918 = vmatprep.subr.mxu0 %v57
    %1919 = vmatpush1.msra.mxu0 %v56
    %1920 = vmatprep.subr.mxu0 %v53
    %1921 = vmatpush1.msra.mxu0 %v52
    %1922 = vmatprep.subr.mxu0 %v49
    %1923 = vmatpush1.msra.mxu0 %v48
    %1924 = vmatprep.subr.mxu0 %v45
    %1925 = vmatpush1.msra.mxu0 %v44
    %1926 = vmatprep.subr.mxu0 %v41
    %1927 = vmatpush1.msra.mxu0 %v40
    %1928 = vmatprep.subr.mxu0 %v37
    %1929 = vmatpush1.msra.mxu0 %v36
    %1930 = vmatprep.subr.mxu0 %v33
    %1931 = vmatpush1.msra.mxu0 %v32
    %1932 = vmatprep.subr.mxu0 %v29
    %1933 = vmatpush1.msra.mxu0 %v28
    %1934 = vmatprep.subr.mxu0 0.0
    %1935 = vmatpush2.msra.mxu0 0.0
    %1936 = vmatprep.subr.mxu0 0.0
    %1937 = vmatpush2.msra.mxu0 0.0
    %1938 = vmatprep.subr.mxu0 0.0
    %1939 = vmatpush2.msra.mxu0 0.0
    %1940 = vmatprep.subr.mxu0 0.0
    %1941 = vmatpush2.msra.mxu0 0.0
    %1942 = vmatprep.subr.mxu0 0.0
    %1943 = vmatpush2.msra.mxu0 0.0
    %1944 = vmatprep.subr.mxu0 0.0
    %1945 = vmatpush2.msra.mxu0 0.0
    %1946 = vmatprep.subr.mxu0 0.0
    %1947 = vmatpush2.msra.mxu0 0.0
    %1948 = vmatprep.subr.mxu0 0.0
    %1949 = vmatpush2.msra.mxu0 0.0
    %1950 = vmatprep.subr.mxu0 0.0
    %1951 = vmatpush2.msra.mxu0 0.0
    %1952 = vmatprep.subr.mxu0 0.0
    %1953 = vmatpush2.msra.mxu0 0.0
    %1954 = vmatprep.subr.mxu0 0.0
    %1955 = vmatpush2.msra.mxu0 0.0
    %1956 = vmatprep.subr.mxu0 0.0
    %1957 = vmatpush2.msra.mxu0 0.0
    %1958 = vmatprep.subr.mxu0 0.0
    %1959 = vmatpush2.msra.mxu0 0.0
    %1960 = vmatprep.subr.mxu0 0.0
    %1961 = vmatpush2.msra.mxu0 0.0
    %1962 = vmatprep.subr.mxu0 0.0
    %1963 = vmatpush2.msra.mxu0 0.0
    %1964 = vmatprep.subr.mxu0 0.0
    %1965 = vmatpush2.msra.mxu0 0.0
    %1966 = vmatprep.mubr.f32.mxu0 0.0
    %1967 = vmatmul.mubr.f32.gmra.mxu0 %v1578
    %v1968 = vpop.f32.mrf.mxu0
    %v1969 = vadd.f32 0.0, %v1968
    %v1970 = vpop.f32.mrf.mxu0
    %v1971 = vadd.f32 0.0, %v1970
    %1972 = vdwg.mxu0
    %1973 = vmatprep.subr.mxu0 %v91
    %1974 = vmatpush1.msra.mxu0 %v90
    %1975 = vmatprep.subr.mxu0 %v87
    %1976 = vmatpush1.msra.mxu0 %v86
    %1977 = vmatprep.subr.mxu0 %v83
    %1978 = vmatpush1.msra.mxu0 %v82
    %1979 = vmatprep.subr.mxu0 %v79
    %1980 = vmatpush1.msra.mxu0 %v78
    %1981 = vmatprep.subr.mxu0 %v75
    %1982 = vmatpush1.msra.mxu0 %v74
    %1983 = vmatprep.subr.mxu0 %v71
    %1984 = vmatpush1.msra.mxu0 %v70
    %1985 = vmatprep.subr.mxu0 %v67
    %1986 = vmatpush1.msra.mxu0 %v66
    %1987 = vmatprep.subr.mxu0 %v63
    %1988 = vmatpush1.msra.mxu0 %v62
    %1989 = vmatprep.subr.mxu0 %v59
    %1990 = vmatpush1.msra.mxu0 %v58
    %1991 = vmatprep.subr.mxu0 %v55
    %1992 = vmatpush1.msra.mxu0 %v54
    %1993 = vmatprep.subr.mxu0 %v51
    %1994 = vmatpush1.msra.mxu0 %v50
    %1995 = vmatprep.subr.mxu0 %v47
    %1996 = vmatpush1.msra.mxu0 %v46
    %1997 = vmatprep.subr.mxu0 %v43
    %1998 = vmatpush1.msra.mxu0 %v42
    %1999 = vmatprep.subr.mxu0 %v39
    %2000 = vmatpush1.msra.mxu0 %v38
    %2001 = vmatprep.subr.mxu0 %v35
    %2002 = vmatpush1.msra.mxu0 %v34
    %2003 = vmatprep.subr.mxu0 %v31
    %2004 = vmatpush1.msra.mxu0 %v30
    %2005 = vmatprep.subr.mxu0 0.0
    %2006 = vmatpush2.msra.mxu0 0.0
    %2007 = vmatprep.subr.mxu0 0.0
    %2008 = vmatpush2.msra.mxu0 0.0
    %2009 = vmatprep.subr.mxu0 0.0
    %2010 = vmatpush2.msra.mxu0 0.0
    %2011 = vmatprep.subr.mxu0 0.0
    %2012 = vmatpush2.msra.mxu0 0.0
    %2013 = vmatprep.subr.mxu0 0.0
    %2014 = vmatpush2.msra.mxu0 0.0
    %2015 = vmatprep.subr.mxu0 0.0
    %2016 = vmatpush2.msra.mxu0 0.0
    %2017 = vmatprep.subr.mxu0 0.0
    %2018 = vmatpush2.msra.mxu0 0.0
    %2019 = vmatprep.subr.mxu0 0.0
    %2020 = vmatpush2.msra.mxu0 0.0
    %2021 = vmatprep.subr.mxu0 0.0
    %2022 = vmatpush2.msra.mxu0 0.0
    %2023 = vmatprep.subr.mxu0 0.0
    %2024 = vmatpush2.msra.mxu0 0.0
    %2025 = vmatprep.subr.mxu0 0.0
    %2026 = vmatpush2.msra.mxu0 0.0
    %2027 = vmatprep.subr.mxu0 0.0
    %2028 = vmatpush2.msra.mxu0 0.0
    %2029 = vmatprep.subr.mxu0 0.0
    %2030 = vmatpush2.msra.mxu0 0.0
    %2031 = vmatprep.subr.mxu0 0.0
    %2032 = vmatpush2.msra.mxu0 0.0
    %2033 = vmatprep.subr.mxu0 0.0
    %2034 = vmatpush2.msra.mxu0 0.0
    %2035 = vmatprep.subr.mxu0 0.0
    %2036 = vmatpush2.msra.mxu0 0.0
    %2037 = vmatprep.mubr.f32.mxu0 0.0
    %2038 = vmatmul.mubr.f32.gmra.mxu0 %v1578
    %v2039 = vpop.f32.mrf.mxu0
    %v2040 = vadd.f32 0.0, %v2039
    %v2041 = vpop.f32.mrf.mxu0
    %v2042 = vadd.f32 0.0, %v2041
    %2043 = vdwg.mxu0
    %v2044 = vadd.f32 %v1898, %v1969
    %v2045 = vadd.f32 %v1899, %v1971
    %v2046 = vadd.f32 %v1900, %v2040
    %v2047 = vadd.f32 %v1901, %v2042
    %v2048 = vxor.u32 %v2044, 2147483648
    %v2049 = vmul.f32 %v2048, 1.442695
    %v2050 = vpow.pop %v2049
    %v2051 = vadd.f32 %v2050, 1.0
    %v2052 = vrcp.pop %v2051
    %v2053 = vmul.f32 1.0, %v2052
    %v2054 = vxor.u32 %v2045, 2147483648
    %v2055 = vmul.f32 %v2054, 1.442695
    %v2056 = vpow.pop %v2055
    %v2057 = vadd.f32 %v2056, 1.0
    %v2058 = vrcp.pop %v2057
    %v2059 = vmul.f32 1.0, %v2058
    %v2060 = vtanh.pop %v2046
    %v2061 = vxor.u32 %v2047, 2147483648
    %v2062 = vmul.f32 %v2061, 1.442695
    %v2063 = vpow.pop %v2062
    %v2064 = vadd.f32 %v2063, 1.0
    %v2065 = vrcp.pop %v2064
    %v2066 = vmul.f32 1.0, %v2065
    %v2067 = vmul.f32 %v2059, %v1576
    %v2068 = vmul.f32 %v2053, %v2060
    %v2069 = vadd.f32 %v2067, %v2068
    %v2070 = vtanh.pop %v2069
    %v2071 = vmul.f32 %v2066, %v2070
    %2072 = vmatprep.subr.mxu0 %v153
    %2073 = vmatpush1.msra.mxu0 %v152
    %2074 = vmatprep.subr.mxu0 %v149
    %2075 = vmatpush1.msra.mxu0 %v148
    %2076 = vmatprep.subr.mxu0 %v145
    %2077 = vmatpush1.msra.mxu0 %v144
    %2078 = vmatprep.subr.mxu0 %v141
    %2079 = vmatpush1.msra.mxu0 %v140
    %2080 = vmatprep.subr.mxu0 %v137
    %2081 = vmatpush1.msra.mxu0 %v136
    %2082 = vmatprep.subr.mxu0 %v133
    %2083 = vmatpush1.msra.mxu0 %v132
    %2084 = vmatprep.subr.mxu0 %v129
    %2085 = vmatpush1.msra.mxu0 %v128
    %2086 = vmatprep.subr.mxu0 %v125
    %2087 = vmatpush1.msra.mxu0 %v124
    %2088 = vmatprep.subr.mxu0 %v121
    %2089 = vmatpush1.msra.mxu0 %v120
    %2090 = vmatprep.subr.mxu0 %v117
    %2091 = vmatpush1.msra.mxu0 %v116
    %2092 = vmatprep.subr.mxu0 %v113
    %2093 = vmatpush1.msra.mxu0 %v112
    %2094 = vmatprep.subr.mxu0 %v109
    %2095 = vmatpush1.msra.mxu0 %v108
    %2096 = vmatprep.subr.mxu0 %v105
    %2097 = vmatpush1.msra.mxu0 %v104
    %2098 = vmatprep.subr.mxu0 %v101
    %2099 = vmatpush1.msra.mxu0 %v100
    %2100 = vmatprep.subr.mxu0 %v97
    %2101 = vmatpush1.msra.mxu0 %v96
    %2102 = vmatprep.subr.mxu0 %v93
    %2103 = vmatpush1.msra.mxu0 %v92
    %2104 = vmatprep.subr.mxu0 0.0
    %2105 = vmatpush2.msra.mxu0 0.0
    %2106 = vmatprep.subr.mxu0 0.0
    %2107 = vmatpush2.msra.mxu0 0.0
    %2108 = vmatprep.subr.mxu0 0.0
    %2109 = vmatpush2.msra.mxu0 0.0
    %2110 = vmatprep.subr.mxu0 0.0
    %2111 = vmatpush2.msra.mxu0 0.0
    %2112 = vmatprep.subr.mxu0 0.0
    %2113 = vmatpush2.msra.mxu0 0.0
    %2114 = vmatprep.subr.mxu0 0.0
    %2115 = vmatpush2.msra.mxu0 0.0
    %2116 = vmatprep.subr.mxu0 0.0
    %2117 = vmatpush2.msra.mxu0 0.0
    %2118 = vmatprep.subr.mxu0 0.0
    %2119 = vmatpush2.msra.mxu0 0.0
    %2120 = vmatprep.subr.mxu0 0.0
    %2121 = vmatpush2.msra.mxu0 0.0
    %2122 = vmatprep.subr.mxu0 0.0
    %2123 = vmatpush2.msra.mxu0 0.0
    %2124 = vmatprep.subr.mxu0 0.0
    %2125 = vmatpush2.msra.mxu0 0.0
    %2126 = vmatprep.subr.mxu0 0.0
    %2127 = vmatpush2.msra.mxu0 0.0
    %2128 = vmatprep.subr.mxu0 0.0
    %2129 = vmatpush2.msra.mxu0 0.0
    %2130 = vmatprep.subr.mxu0 0.0
    %2131 = vmatpush2.msra.mxu0 0.0
    %2132 = vmatprep.subr.mxu0 0.0
    %2133 = vmatpush2.msra.mxu0 0.0
    %2134 = vmatprep.subr.mxu0 0.0
    %2135 = vmatpush2.msra.mxu0 0.0
    %2136 = vmatprep.mubr.f32.mxu0 0.0
    %2137 = vmatmul.mubr.f32.gmra.mxu0 %v1578
    %v2138 = vpop.f32.mrf.mxu0
    %v2139 = vadd.f32 0.0, %v2138
    %v2140 = vpop.f32.mrf.mxu0
    %v2141 = vadd.f32 0.0, %v2140
    %2142 = vdwg.mxu0
    %2143 = vmatprep.subr.mxu0 %v155
    %2144 = vmatpush1.msra.mxu0 %v154
    %2145 = vmatprep.subr.mxu0 %v151
    %2146 = vmatpush1.msra.mxu0 %v150
    %2147 = vmatprep.subr.mxu0 %v147
    %2148 = vmatpush1.msra.mxu0 %v146
    %2149 = vmatprep.subr.mxu0 %v143
    %2150 = vmatpush1.msra.mxu0 %v142
    %2151 = vmatprep.subr.mxu0 %v139
    %2152 = vmatpush1.msra.mxu0 %v138
    %2153 = vmatprep.subr.mxu0 %v135
    %2154 = vmatpush1.msra.mxu0 %v134
    %2155 = vmatprep.subr.mxu0 %v131
    %2156 = vmatpush1.msra.mxu0 %v130
    %2157 = vmatprep.subr.mxu0 %v127
    %2158 = vmatpush1.msra.mxu0 %v126
    %2159 = vmatprep.subr.mxu0 %v123
    %2160 = vmatpush1.msra.mxu0 %v122
    %2161 = vmatprep.subr.mxu0 %v119
    %2162 = vmatpush1.msra.mxu0 %v118
    %2163 = vmatprep.subr.mxu0 %v115
    %2164 = vmatpush1.msra.mxu0 %v114
    %2165 = vmatprep.subr.mxu0 %v111
    %2166 = vmatpush1.msra.mxu0 %v110
    %2167 = vmatprep.subr.mxu0 %v107
    %2168 = vmatpush1.msra.mxu0 %v106
    %2169 = vmatprep.subr.mxu0 %v103
    %2170 = vmatpush1.msra.mxu0 %v102
    %2171 = vmatprep.subr.mxu0 %v99
    %2172 = vmatpush1.msra.mxu0 %v98
    %2173 = vmatprep.subr.mxu0 %v95
    %2174 = vmatpush1.msra.mxu0 %v94
    %2175 = vmatprep.subr.mxu0 0.0
    %2176 = vmatpush2.msra.mxu0 0.0
    %2177 = vmatprep.subr.mxu0 0.0
    %2178 = vmatpush2.msra.mxu0 0.0
    %2179 = vmatprep.subr.mxu0 0.0
    %2180 = vmatpush2.msra.mxu0 0.0
    %2181 = vmatprep.subr.mxu0 0.0
    %2182 = vmatpush2.msra.mxu0 0.0
    %2183 = vmatprep.subr.mxu0 0.0
    %2184 = vmatpush2.msra.mxu0 0.0
    %2185 = vmatprep.subr.mxu0 0.0
    %2186 = vmatpush2.msra.mxu0 0.0
    %2187 = vmatprep.subr.mxu0 0.0
    %2188 = vmatpush2.msra.mxu0 0.0
    %2189 = vmatprep.subr.mxu0 0.0
    %2190 = vmatpush2.msra.mxu0 0.0
    %2191 = vmatprep.subr.mxu0 0.0
    %2192 = vmatpush2.msra.mxu0 0.0
    %2193 = vmatprep.subr.mxu0 0.0
    %2194 = vmatpush2.msra.mxu0 0.0
    %2195 = vmatprep.subr.mxu0 0.0
    %2196 = vmatpush2.msra.mxu0 0.0
    %2197 = vmatprep.subr.mxu0 0.0
    %2198 = vmatpush2.msra.mxu0 0.0
    %2199 = vmatprep.subr.mxu0 0.0
    %2200 = vmatpush2.msra.mxu0 0.0
    %2201 = vmatprep.subr.mxu0 0.0
    %2202 = vmatpush2.msra.mxu0 0.0
    %2203 = vmatprep.subr.mxu0 0.0
    %2204 = vmatpush2.msra.mxu0 0.0
    %2205 = vmatprep.subr.mxu0 0.0
    %2206 = vmatpush2.msra.mxu0 0.0
    %2207 = vmatprep.mubr.f32.mxu0 0.0
    %2208 = vmatmul.mubr.f32.gmra.mxu0 %v1578
    %v2209 = vpop.f32.mrf.mxu0
    %v2210 = vadd.f32 0.0, %v2209
    %v2211 = vpop.f32.mrf.mxu0
    %v2212 = vadd.f32 0.0, %v2211
    %2213 = vdwg.mxu0
    %v2214 = vadd.f32 %v719, %v2139
    %v2215 = vadd.f32 %v723, %v2141
    %v2216 = vadd.f32 %v727, %v2210
    %v2217 = vadd.f32 %v731, %v2212
    %2218 = vmatprep.subr.mxu0 %v217
    %2219 = vmatpush1.msra.mxu0 %v216
    %2220 = vmatprep.subr.mxu0 %v213
    %2221 = vmatpush1.msra.mxu0 %v212
    %2222 = vmatprep.subr.mxu0 %v209
    %2223 = vmatpush1.msra.mxu0 %v208
    %2224 = vmatprep.subr.mxu0 %v205
    %2225 = vmatpush1.msra.mxu0 %v204
    %2226 = vmatprep.subr.mxu0 %v201
    %2227 = vmatpush1.msra.mxu0 %v200
    %2228 = vmatprep.subr.mxu0 %v197
    %2229 = vmatpush1.msra.mxu0 %v196
    %2230 = vmatprep.subr.mxu0 %v193
    %2231 = vmatpush1.msra.mxu0 %v192
    %2232 = vmatprep.subr.mxu0 %v189
    %2233 = vmatpush1.msra.mxu0 %v188
    %2234 = vmatprep.subr.mxu0 %v185
    %2235 = vmatpush1.msra.mxu0 %v184
    %2236 = vmatprep.subr.mxu0 %v181
    %2237 = vmatpush1.msra.mxu0 %v180
    %2238 = vmatprep.subr.mxu0 %v177
    %2239 = vmatpush1.msra.mxu0 %v176
    %2240 = vmatprep.subr.mxu0 %v173
    %2241 = vmatpush1.msra.mxu0 %v172
    %2242 = vmatprep.subr.mxu0 %v169
    %2243 = vmatpush1.msra.mxu0 %v168
    %2244 = vmatprep.subr.mxu0 %v165
    %2245 = vmatpush1.msra.mxu0 %v164
    %2246 = vmatprep.subr.mxu0 %v161
    %2247 = vmatpush1.msra.mxu0 %v160
    %2248 = vmatprep.subr.mxu0 %v157
    %2249 = vmatpush1.msra.mxu0 %v156
    %2250 = vmatprep.subr.mxu0 0.0
    %2251 = vmatpush2.msra.mxu0 0.0
    %2252 = vmatprep.subr.mxu0 0.0
    %2253 = vmatpush2.msra.mxu0 0.0
    %2254 = vmatprep.subr.mxu0 0.0
    %2255 = vmatpush2.msra.mxu0 0.0
    %2256 = vmatprep.subr.mxu0 0.0
    %2257 = vmatpush2.msra.mxu0 0.0
    %2258 = vmatprep.subr.mxu0 0.0
    %2259 = vmatpush2.msra.mxu0 0.0
    %2260 = vmatprep.subr.mxu0 0.0
    %2261 = vmatpush2.msra.mxu0 0.0
    %2262 = vmatprep.subr.mxu0 0.0
    %2263 = vmatpush2.msra.mxu0 0.0
    %2264 = vmatprep.subr.mxu0 0.0
    %2265 = vmatpush2.msra.mxu0 0.0
    %2266 = vmatprep.subr.mxu0 0.0
    %2267 = vmatpush2.msra.mxu0 0.0
    %2268 = vmatprep.subr.mxu0 0.0
    %2269 = vmatpush2.msra.mxu0 0.0
    %2270 = vmatprep.subr.mxu0 0.0
    %2271 = vmatpush2.msra.mxu0 0.0
    %2272 = vmatprep.subr.mxu0 0.0
    %2273 = vmatpush2.msra.mxu0 0.0
    %2274 = vmatprep.subr.mxu0 0.0
    %2275 = vmatpush2.msra.mxu0 0.0
    %2276 = vmatprep.subr.mxu0 0.0
    %2277 = vmatpush2.msra.mxu0 0.0
    %2278 = vmatprep.subr.mxu0 0.0
    %2279 = vmatpush2.msra.mxu0 0.0
    %2280 = vmatprep.subr.mxu0 0.0
    %2281 = vmatpush2.msra.mxu0 0.0
    %2282 = vmatprep.mubr.f32.mxu0 0.0
    %2283 = vmatmul.mubr.f32.gmra.mxu0 %v1894
    %v2284 = vpop.f32.mrf.mxu0
    %v2285 = vadd.f32 0.0, %v2284
    %v2286 = vpop.f32.mrf.mxu0
    %v2287 = vadd.f32 0.0, %v2286
    %2288 = vdwg.mxu0
    %2289 = vmatprep.subr.mxu0 %v219
    %2290 = vmatpush1.msra.mxu0 %v218
    %2291 = vmatprep.subr.mxu0 %v215
    %2292 = vmatpush1.msra.mxu0 %v214
    %2293 = vmatprep.subr.mxu0 %v211
    %2294 = vmatpush1.msra.mxu0 %v210
    %2295 = vmatprep.subr.mxu0 %v207
    %2296 = vmatpush1.msra.mxu0 %v206
    %2297 = vmatprep.subr.mxu0 %v203
    %2298 = vmatpush1.msra.mxu0 %v202
    %2299 = vmatprep.subr.mxu0 %v199
    %2300 = vmatpush1.msra.mxu0 %v198
    %2301 = vmatprep.subr.mxu0 %v195
    %2302 = vmatpush1.msra.mxu0 %v194
    %2303 = vmatprep.subr.mxu0 %v191
    %2304 = vmatpush1.msra.mxu0 %v190
    %2305 = vmatprep.subr.mxu0 %v187
    %2306 = vmatpush1.msra.mxu0 %v186
    %2307 = vmatprep.subr.mxu0 %v183
    %2308 = vmatpush1.msra.mxu0 %v182
    %2309 = vmatprep.subr.mxu0 %v179
    %2310 = vmatpush1.msra.mxu0 %v178
    %2311 = vmatprep.subr.mxu0 %v175
    %2312 = vmatpush1.msra.mxu0 %v174
    %2313 = vmatprep.subr.mxu0 %v171
    %2314 = vmatpush1.msra.mxu0 %v170
    %2315 = vmatprep.subr.mxu0 %v167
    %2316 = vmatpush1.msra.mxu0 %v166
    %2317 = vmatprep.subr.mxu0 %v163
    %2318 = vmatpush1.msra.mxu0 %v162
    %2319 = vmatprep.subr.mxu0 %v159
    %2320 = vmatpush1.msra.mxu0 %v158
    %2321 = vmatprep.subr.mxu0 0.0
    %2322 = vmatpush2.msra.mxu0 0.0
    %2323 = vmatprep.subr.mxu0 0.0
    %2324 = vmatpush2.msra.mxu0 0.0
    %2325 = vmatprep.subr.mxu0 0.0
    %2326 = vmatpush2.msra.mxu0 0.0
    %2327 = vmatprep.subr.mxu0 0.0
    %2328 = vmatpush2.msra.mxu0 0.0
    %2329 = vmatprep.subr.mxu0 0.0
    %2330 = vmatpush2.msra.mxu0 0.0
    %2331 = vmatprep.subr.mxu0 0.0
    %2332 = vmatpush2.msra.mxu0 0.0
    %2333 = vmatprep.subr.mxu0 0.0
    %2334 = vmatpush2.msra.mxu0 0.0
    %2335 = vmatprep.subr.mxu0 0.0
    %2336 = vmatpush2.msra.mxu0 0.0
    %2337 = vmatprep.subr.mxu0 0.0
    %2338 = vmatpush2.msra.mxu0 0.0
    %2339 = vmatprep.subr.mxu0 0.0
    %2340 = vmatpush2.msra.mxu0 0.0
    %2341 = vmatprep.subr.mxu0 0.0
    %2342 = vmatpush2.msra.mxu0 0.0
    %2343 = vmatprep.subr.mxu0 0.0
    %2344 = vmatpush2.msra.mxu0 0.0
    %2345 = vmatprep.subr.mxu0 0.0
    %2346 = vmatpush2.msra.mxu0 0.0
    %2347 = vmatprep.subr.mxu0 0.0
    %2348 = vmatpush2.msra.mxu0 0.0
    %2349 = vmatprep.subr.mxu0 0.0
    %2350 = vmatpush2.msra.mxu0 0.0
    %2351 = vmatprep.subr.mxu0 0.0
    %2352 = vmatpush2.msra.mxu0 0.0
    %2353 = vmatprep.mubr.f32.mxu0 0.0
    %2354 = vmatmul.mubr.f32.gmra.mxu0 %v1894
    %v2355 = vpop.f32.mrf.mxu0
    %v2356 = vadd.f32 0.0, %v2355
    %v2357 = vpop.f32.mrf.mxu0
    %v2358 = vadd.f32 0.0, %v2357
    %2359 = vdwg.mxu0
    %v2360 = vadd.f32 %v2214, %v2285
    %v2361 = vadd.f32 %v2215, %v2287
    %v2362 = vadd.f32 %v2216, %v2356
    %v2363 = vadd.f32 %v2217, %v2358
    %v2364 = vxor.u32 %v2360, 2147483648
    %v2365 = vmul.f32 %v2364, 1.442695
    %v2366 = vpow.pop %v2365
    %v2367 = vadd.f32 %v2366, 1.0
    %v2368 = vrcp.pop %v2367
    %v2369 = vmul.f32 1.0, %v2368
    %v2370 = vxor.u32 %v2361, 2147483648
    %v2371 = vmul.f32 %v2370, 1.442695
    %v2372 = vpow.pop %v2371
    %v2373 = vadd.f32 %v2372, 1.0
    %v2374 = vrcp.pop %v2373
    %v2375 = vmul.f32 1.0, %v2374
    %v2376 = vtanh.pop %v2362
    %v2377 = vxor.u32 %v2363, 2147483648
    %v2378 = vmul.f32 %v2377, 1.442695
    %v2379 = vpow.pop %v2378
    %v2380 = vadd.f32 %v2379, 1.0
    %v2381 = vrcp.pop %v2380
    %v2382 = vmul.f32 1.0, %v2381
    %v2383 = vmul.f32 %v2375, %v1892
    %v2384 = vmul.f32 %v2369, %v2376
    %v2385 = vadd.f32 %v2383, %v2384
    %v2386 = vtanh.pop %v2385
    %v2387 = vmul.f32 %v2382, %v2386
    %s2388 = scalar_lea.vmem [#allocation2], 24
    %2389 = vst [vmem:[%s2388] sm:$0xff] %v2387
    %s2390 = scalar_lea.vmem %s0, 160
    %v2391 = vld [vmem:[%s2390] sm:$0xff]
    %v2392 = vld [vmem:[%s2390 + $0x8] sm:$0xff]
    %v2393 = vld [vmem:[%s2390 + $0x10] sm:$0xff]
    %v2394 = vld [vmem:[%s2390 + $0x18] sm:$0xff]
    %2395 = vmatprep.subr.mxu0 %v89
    %2396 = vmatpush1.msra.mxu0 %v88
    %2397 = vmatprep.subr.mxu0 %v85
    %2398 = vmatpush1.msra.mxu0 %v84
    %2399 = vmatprep.subr.mxu0 %v81
    %2400 = vmatpush1.msra.mxu0 %v80
    %2401 = vmatprep.subr.mxu0 %v77
    %2402 = vmatpush1.msra.mxu0 %v76
    %2403 = vmatprep.subr.mxu0 %v73
    %2404 = vmatpush1.msra.mxu0 %v72
    %2405 = vmatprep.subr.mxu0 %v69
    %2406 = vmatpush1.msra.mxu0 %v68
    %2407 = vmatprep.subr.mxu0 %v65
    %2408 = vmatpush1.msra.mxu0 %v64
    %2409 = vmatprep.subr.mxu0 %v61
    %2410 = vmatpush1.msra.mxu0 %v60
    %2411 = vmatprep.subr.mxu0 %v57
    %2412 = vmatpush1.msra.mxu0 %v56
    %2413 = vmatprep.subr.mxu0 %v53
    %2414 = vmatpush1.msra.mxu0 %v52
    %2415 = vmatprep.subr.mxu0 %v49
    %2416 = vmatpush1.msra.mxu0 %v48
    %2417 = vmatprep.subr.mxu0 %v45
    %2418 = vmatpush1.msra.mxu0 %v44
    %2419 = vmatprep.subr.mxu0 %v41
    %2420 = vmatpush1.msra.mxu0 %v40
    %2421 = vmatprep.subr.mxu0 %v37
    %2422 = vmatpush1.msra.mxu0 %v36
    %2423 = vmatprep.subr.mxu0 %v33
    %2424 = vmatpush1.msra.mxu0 %v32
    %2425 = vmatprep.subr.mxu0 %v29
    %2426 = vmatpush1.msra.mxu0 %v28
    %2427 = vmatprep.subr.mxu0 0.0
    %2428 = vmatpush2.msra.mxu0 0.0
    %2429 = vmatprep.subr.mxu0 0.0
    %2430 = vmatpush2.msra.mxu0 0.0
    %2431 = vmatprep.subr.mxu0 0.0
    %2432 = vmatpush2.msra.mxu0 0.0
    %2433 = vmatprep.subr.mxu0 0.0
    %2434 = vmatpush2.msra.mxu0 0.0
    %2435 = vmatprep.subr.mxu0 0.0
    %2436 = vmatpush2.msra.mxu0 0.0
    %2437 = vmatprep.subr.mxu0 0.0
    %2438 = vmatpush2.msra.mxu0 0.0
    %2439 = vmatprep.subr.mxu0 0.0
    %2440 = vmatpush2.msra.mxu0 0.0
    %2441 = vmatprep.subr.mxu0 0.0
    %2442 = vmatpush2.msra.mxu0 0.0
    %2443 = vmatprep.subr.mxu0 0.0
    %2444 = vmatpush2.msra.mxu0 0.0
    %2445 = vmatprep.subr.mxu0 0.0
    %2446 = vmatpush2.msra.mxu0 0.0
    %2447 = vmatprep.subr.mxu0 0.0
    %2448 = vmatpush2.msra.mxu0 0.0
    %2449 = vmatprep.subr.mxu0 0.0
    %2450 = vmatpush2.msra.mxu0 0.0
    %2451 = vmatprep.subr.mxu0 0.0
    %2452 = vmatpush2.msra.mxu0 0.0
    %2453 = vmatprep.subr.mxu0 0.0
    %2454 = vmatpush2.msra.mxu0 0.0
    %2455 = vmatprep.subr.mxu0 0.0
    %2456 = vmatpush2.msra.mxu0 0.0
    %2457 = vmatprep.subr.mxu0 0.0
    %2458 = vmatpush2.msra.mxu0 0.0
    %2459 = vmatprep.mubr.f32.mxu0 0.0
    %2460 = vmatmul.mubr.f32.gmra.mxu0 %v2071
    %v2461 = vpop.f32.mrf.mxu0
    %v2462 = vadd.f32 0.0, %v2461
    %v2463 = vpop.f32.mrf.mxu0
    %v2464 = vadd.f32 0.0, %v2463
    %2465 = vdwg.mxu0
    %2466 = vmatprep.subr.mxu0 %v91
    %2467 = vmatpush1.msra.mxu0 %v90
    %2468 = vmatprep.subr.mxu0 %v87
    %2469 = vmatpush1.msra.mxu0 %v86
    %2470 = vmatprep.subr.mxu0 %v83
    %2471 = vmatpush1.msra.mxu0 %v82
    %2472 = vmatprep.subr.mxu0 %v79
    %2473 = vmatpush1.msra.mxu0 %v78
    %2474 = vmatprep.subr.mxu0 %v75
    %2475 = vmatpush1.msra.mxu0 %v74
    %2476 = vmatprep.subr.mxu0 %v71
    %2477 = vmatpush1.msra.mxu0 %v70
    %2478 = vmatprep.subr.mxu0 %v67
    %2479 = vmatpush1.msra.mxu0 %v66
    %2480 = vmatprep.subr.mxu0 %v63
    %2481 = vmatpush1.msra.mxu0 %v62
    %2482 = vmatprep.subr.mxu0 %v59
    %2483 = vmatpush1.msra.mxu0 %v58
    %2484 = vmatprep.subr.mxu0 %v55
    %2485 = vmatpush1.msra.mxu0 %v54
    %2486 = vmatprep.subr.mxu0 %v51
    %2487 = vmatpush1.msra.mxu0 %v50
    %2488 = vmatprep.subr.mxu0 %v47
    %2489 = vmatpush1.msra.mxu0 %v46
    %2490 = vmatprep.subr.mxu0 %v43
    %2491 = vmatpush1.msra.mxu0 %v42
    %2492 = vmatprep.subr.mxu0 %v39
    %2493 = vmatpush1.msra.mxu0 %v38
    %2494 = vmatprep.subr.mxu0 %v35
    %2495 = vmatpush1.msra.mxu0 %v34
    %2496 = vmatprep.subr.mxu0 %v31
    %2497 = vmatpush1.msra.mxu0 %v30
    %2498 = vmatprep.subr.mxu0 0.0
    %2499 = vmatpush2.msra.mxu0 0.0
    %2500 = vmatprep.subr.mxu0 0.0
    %2501 = vmatpush2.msra.mxu0 0.0
    %2502 = vmatprep.subr.mxu0 0.0
    %2503 = vmatpush2.msra.mxu0 0.0
    %2504 = vmatprep.subr.mxu0 0.0
    %2505 = vmatpush2.msra.mxu0 0.0
    %2506 = vmatprep.subr.mxu0 0.0
    %2507 = vmatpush2.msra.mxu0 0.0
    %2508 = vmatprep.subr.mxu0 0.0
    %2509 = vmatpush2.msra.mxu0 0.0
    %2510 = vmatprep.subr.mxu0 0.0
    %2511 = vmatpush2.msra.mxu0 0.0
    %2512 = vmatprep.subr.mxu0 0.0
    %2513 = vmatpush2.msra.mxu0 0.0
    %2514 = vmatprep.subr.mxu0 0.0
    %2515 = vmatpush2.msra.mxu0 0.0
    %2516 = vmatprep.subr.mxu0 0.0
    %2517 = vmatpush2.msra.mxu0 0.0
    %2518 = vmatprep.subr.mxu0 0.0
    %2519 = vmatpush2.msra.mxu0 0.0
    %2520 = vmatprep.subr.mxu0 0.0
    %2521 = vmatpush2.msra.mxu0 0.0
    %2522 = vmatprep.subr.mxu0 0.0
    %2523 = vmatpush2.msra.mxu0 0.0
    %2524 = vmatprep.subr.mxu0 0.0
    %2525 = vmatpush2.msra.mxu0 0.0
    %2526 = vmatprep.subr.mxu0 0.0
    %2527 = vmatpush2.msra.mxu0 0.0
    %2528 = vmatprep.subr.mxu0 0.0
    %2529 = vmatpush2.msra.mxu0 0.0
    %2530 = vmatprep.mubr.f32.mxu0 0.0
    %2531 = vmatmul.mubr.f32.gmra.mxu0 %v2071
    %v2532 = vpop.f32.mrf.mxu0
    %v2533 = vadd.f32 0.0, %v2532
    %v2534 = vpop.f32.mrf.mxu0
    %v2535 = vadd.f32 0.0, %v2534
    %2536 = vdwg.mxu0
    %v2537 = vadd.f32 %v2391, %v2462
    %v2538 = vadd.f32 %v2392, %v2464
    %v2539 = vadd.f32 %v2393, %v2533
    %v2540 = vadd.f32 %v2394, %v2535
    %v2541 = vxor.u32 %v2537, 2147483648
    %v2542 = vmul.f32 %v2541, 1.442695
    %v2543 = vpow.pop %v2542
    %v2544 = vadd.f32 %v2543, 1.0
    %v2545 = vrcp.pop %v2544
    %v2546 = vmul.f32 1.0, %v2545
    %v2547 = vxor.u32 %v2538, 2147483648
    %v2548 = vmul.f32 %v2547, 1.442695
    %v2549 = vpow.pop %v2548
    %v2550 = vadd.f32 %v2549, 1.0
    %v2551 = vrcp.pop %v2550
    %v2552 = vmul.f32 1.0, %v2551
    %v2553 = vtanh.pop %v2539
    %v2554 = vxor.u32 %v2540, 2147483648
    %v2555 = vmul.f32 %v2554, 1.442695
    %v2556 = vpow.pop %v2555
    %v2557 = vadd.f32 %v2556, 1.0
    %v2558 = vrcp.pop %v2557
    %v2559 = vmul.f32 1.0, %v2558
    %v2560 = vmul.f32 %v2552, %v2069
    %v2561 = vmul.f32 %v2546, %v2553
    %v2562 = vadd.f32 %v2560, %v2561
    %v2563 = vtanh.pop %v2562
    %v2564 = vmul.f32 %v2559, %v2563
    %2565 = vmatprep.subr.mxu0 %v153
    %2566 = vmatpush1.msra.mxu0 %v152
    %2567 = vmatprep.subr.mxu0 %v149
    %2568 = vmatpush1.msra.mxu0 %v148
    %2569 = vmatprep.subr.mxu0 %v145
    %2570 = vmatpush1.msra.mxu0 %v144
    %2571 = vmatprep.subr.mxu0 %v141
    %2572 = vmatpush1.msra.mxu0 %v140
    %2573 = vmatprep.subr.mxu0 %v137
    %2574 = vmatpush1.msra.mxu0 %v136
    %2575 = vmatprep.subr.mxu0 %v133
    %2576 = vmatpush1.msra.mxu0 %v132
    %2577 = vmatprep.subr.mxu0 %v129
    %2578 = vmatpush1.msra.mxu0 %v128
    %2579 = vmatprep.subr.mxu0 %v125
    %2580 = vmatpush1.msra.mxu0 %v124
    %2581 = vmatprep.subr.mxu0 %v121
    %2582 = vmatpush1.msra.mxu0 %v120
    %2583 = vmatprep.subr.mxu0 %v117
    %2584 = vmatpush1.msra.mxu0 %v116
    %2585 = vmatprep.subr.mxu0 %v113
    %2586 = vmatpush1.msra.mxu0 %v112
    %2587 = vmatprep.subr.mxu0 %v109
    %2588 = vmatpush1.msra.mxu0 %v108
    %2589 = vmatprep.subr.mxu0 %v105
    %2590 = vmatpush1.msra.mxu0 %v104
    %2591 = vmatprep.subr.mxu0 %v101
    %2592 = vmatpush1.msra.mxu0 %v100
    %2593 = vmatprep.subr.mxu0 %v97
    %2594 = vmatpush1.msra.mxu0 %v96
    %2595 = vmatprep.subr.mxu0 %v93
    %2596 = vmatpush1.msra.mxu0 %v92
    %2597 = vmatprep.subr.mxu0 0.0
    %2598 = vmatpush2.msra.mxu0 0.0
    %2599 = vmatprep.subr.mxu0 0.0
    %2600 = vmatpush2.msra.mxu0 0.0
    %2601 = vmatprep.subr.mxu0 0.0
    %2602 = vmatpush2.msra.mxu0 0.0
    %2603 = vmatprep.subr.mxu0 0.0
    %2604 = vmatpush2.msra.mxu0 0.0
    %2605 = vmatprep.subr.mxu0 0.0
    %2606 = vmatpush2.msra.mxu0 0.0
    %2607 = vmatprep.subr.mxu0 0.0
    %2608 = vmatpush2.msra.mxu0 0.0
    %2609 = vmatprep.subr.mxu0 0.0
    %2610 = vmatpush2.msra.mxu0 0.0
    %2611 = vmatprep.subr.mxu0 0.0
    %2612 = vmatpush2.msra.mxu0 0.0
    %2613 = vmatprep.subr.mxu0 0.0
    %2614 = vmatpush2.msra.mxu0 0.0
    %2615 = vmatprep.subr.mxu0 0.0
    %2616 = vmatpush2.msra.mxu0 0.0
    %2617 = vmatprep.subr.mxu0 0.0
    %2618 = vmatpush2.msra.mxu0 0.0
    %2619 = vmatprep.subr.mxu0 0.0
    %2620 = vmatpush2.msra.mxu0 0.0
    %2621 = vmatprep.subr.mxu0 0.0
    %2622 = vmatpush2.msra.mxu0 0.0
    %2623 = vmatprep.subr.mxu0 0.0
    %2624 = vmatpush2.msra.mxu0 0.0
    %2625 = vmatprep.subr.mxu0 0.0
    %2626 = vmatpush2.msra.mxu0 0.0
    %2627 = vmatprep.subr.mxu0 0.0
    %2628 = vmatpush2.msra.mxu0 0.0
    %2629 = vmatprep.mubr.f32.mxu0 0.0
    %2630 = vmatmul.mubr.f32.gmra.mxu0 %v2071
    %v2631 = vpop.f32.mrf.mxu0
    %v2632 = vadd.f32 0.0, %v2631
    %v2633 = vpop.f32.mrf.mxu0
    %v2634 = vadd.f32 0.0, %v2633
    %2635 = vdwg.mxu0
    %2636 = vmatprep.subr.mxu0 %v155
    %2637 = vmatpush1.msra.mxu0 %v154
    %2638 = vmatprep.subr.mxu0 %v151
    %2639 = vmatpush1.msra.mxu0 %v150
    %2640 = vmatprep.subr.mxu0 %v147
    %2641 = vmatpush1.msra.mxu0 %v146
    %2642 = vmatprep.subr.mxu0 %v143
    %2643 = vmatpush1.msra.mxu0 %v142
    %2644 = vmatprep.subr.mxu0 %v139
    %2645 = vmatpush1.msra.mxu0 %v138
    %2646 = vmatprep.subr.mxu0 %v135
    %2647 = vmatpush1.msra.mxu0 %v134
    %2648 = vmatprep.subr.mxu0 %v131
    %2649 = vmatpush1.msra.mxu0 %v130
    %2650 = vmatprep.subr.mxu0 %v127
    %2651 = vmatpush1.msra.mxu0 %v126
    %2652 = vmatprep.subr.mxu0 %v123
    %2653 = vmatpush1.msra.mxu0 %v122
    %2654 = vmatprep.subr.mxu0 %v119
    %2655 = vmatpush1.msra.mxu0 %v118
    %2656 = vmatprep.subr.mxu0 %v115
    %2657 = vmatpush1.msra.mxu0 %v114
    %2658 = vmatprep.subr.mxu0 %v111
    %2659 = vmatpush1.msra.mxu0 %v110
    %2660 = vmatprep.subr.mxu0 %v107
    %2661 = vmatpush1.msra.mxu0 %v106
    %2662 = vmatprep.subr.mxu0 %v103
    %2663 = vmatpush1.msra.mxu0 %v102
    %2664 = vmatprep.subr.mxu0 %v99
    %2665 = vmatpush1.msra.mxu0 %v98
    %2666 = vmatprep.subr.mxu0 %v95
    %2667 = vmatpush1.msra.mxu0 %v94
    %2668 = vmatprep.subr.mxu0 0.0
    %2669 = vmatpush2.msra.mxu0 0.0
    %2670 = vmatprep.subr.mxu0 0.0
    %2671 = vmatpush2.msra.mxu0 0.0
    %2672 = vmatprep.subr.mxu0 0.0
    %2673 = vmatpush2.msra.mxu0 0.0
    %2674 = vmatprep.subr.mxu0 0.0
    %2675 = vmatpush2.msra.mxu0 0.0
    %2676 = vmatprep.subr.mxu0 0.0
    %2677 = vmatpush2.msra.mxu0 0.0
    %2678 = vmatprep.subr.mxu0 0.0
    %2679 = vmatpush2.msra.mxu0 0.0
    %2680 = vmatprep.subr.mxu0 0.0
    %2681 = vmatpush2.msra.mxu0 0.0
    %2682 = vmatprep.subr.mxu0 0.0
    %2683 = vmatpush2.msra.mxu0 0.0
    %2684 = vmatprep.subr.mxu0 0.0
    %2685 = vmatpush2.msra.mxu0 0.0
    %2686 = vmatprep.subr.mxu0 0.0
    %2687 = vmatpush2.msra.mxu0 0.0
    %2688 = vmatprep.subr.mxu0 0.0
    %2689 = vmatpush2.msra.mxu0 0.0
    %2690 = vmatprep.subr.mxu0 0.0
    %2691 = vmatpush2.msra.mxu0 0.0
    %2692 = vmatprep.subr.mxu0 0.0
    %2693 = vmatpush2.msra.mxu0 0.0
    %2694 = vmatprep.subr.mxu0 0.0
    %2695 = vmatpush2.msra.mxu0 0.0
    %2696 = vmatprep.subr.mxu0 0.0
    %2697 = vmatpush2.msra.mxu0 0.0
    %2698 = vmatprep.subr.mxu0 0.0
    %2699 = vmatpush2.msra.mxu0 0.0
    %2700 = vmatprep.mubr.f32.mxu0 0.0
    %2701 = vmatmul.mubr.f32.gmra.mxu0 %v2071
    %v2702 = vpop.f32.mrf.mxu0
    %v2703 = vadd.f32 0.0, %v2702
    %v2704 = vpop.f32.mrf.mxu0
    %v2705 = vadd.f32 0.0, %v2704
    %2706 = vdwg.mxu0
    %v2707 = vadd.f32 %v719, %v2632
    %v2708 = vadd.f32 %v723, %v2634
    %v2709 = vadd.f32 %v727, %v2703
    %v2710 = vadd.f32 %v731, %v2705
    %2711 = vmatprep.subr.mxu0 %v217
    %2712 = vmatpush1.msra.mxu0 %v216
    %2713 = vmatprep.subr.mxu0 %v213
    %2714 = vmatpush1.msra.mxu0 %v212
    %2715 = vmatprep.subr.mxu0 %v209
    %2716 = vmatpush1.msra.mxu0 %v208
    %2717 = vmatprep.subr.mxu0 %v205
    %2718 = vmatpush1.msra.mxu0 %v204
    %2719 = vmatprep.subr.mxu0 %v201
    %2720 = vmatpush1.msra.mxu0 %v200
    %2721 = vmatprep.subr.mxu0 %v197
    %2722 = vmatpush1.msra.mxu0 %v196
    %2723 = vmatprep.subr.mxu0 %v193
    %2724 = vmatpush1.msra.mxu0 %v192
    %2725 = vmatprep.subr.mxu0 %v189
    %2726 = vmatpush1.msra.mxu0 %v188
    %2727 = vmatprep.subr.mxu0 %v185
    %2728 = vmatpush1.msra.mxu0 %v184
    %2729 = vmatprep.subr.mxu0 %v181
    %2730 = vmatpush1.msra.mxu0 %v180
    %2731 = vmatprep.subr.mxu0 %v177
    %2732 = vmatpush1.msra.mxu0 %v176
    %2733 = vmatprep.subr.mxu0 %v173
    %2734 = vmatpush1.msra.mxu0 %v172
    %2735 = vmatprep.subr.mxu0 %v169
    %2736 = vmatpush1.msra.mxu0 %v168
    %2737 = vmatprep.subr.mxu0 %v165
    %2738 = vmatpush1.msra.mxu0 %v164
    %2739 = vmatprep.subr.mxu0 %v161
    %2740 = vmatpush1.msra.mxu0 %v160
    %2741 = vmatprep.subr.mxu0 %v157
    %2742 = vmatpush1.msra.mxu0 %v156
    %2743 = vmatprep.subr.mxu0 0.0
    %2744 = vmatpush2.msra.mxu0 0.0
    %2745 = vmatprep.subr.mxu0 0.0
    %2746 = vmatpush2.msra.mxu0 0.0
    %2747 = vmatprep.subr.mxu0 0.0
    %2748 = vmatpush2.msra.mxu0 0.0
    %2749 = vmatprep.subr.mxu0 0.0
    %2750 = vmatpush2.msra.mxu0 0.0
    %2751 = vmatprep.subr.mxu0 0.0
    %2752 = vmatpush2.msra.mxu0 0.0
    %2753 = vmatprep.subr.mxu0 0.0
    %2754 = vmatpush2.msra.mxu0 0.0
    %2755 = vmatprep.subr.mxu0 0.0
    %2756 = vmatpush2.msra.mxu0 0.0
    %2757 = vmatprep.subr.mxu0 0.0
    %2758 = vmatpush2.msra.mxu0 0.0
    %2759 = vmatprep.subr.mxu0 0.0
    %2760 = vmatpush2.msra.mxu0 0.0
    %2761 = vmatprep.subr.mxu0 0.0
    %2762 = vmatpush2.msra.mxu0 0.0
    %2763 = vmatprep.subr.mxu0 0.0
    %2764 = vmatpush2.msra.mxu0 0.0
    %2765 = vmatprep.subr.mxu0 0.0
    %2766 = vmatpush2.msra.mxu0 0.0
    %2767 = vmatprep.subr.mxu0 0.0
    %2768 = vmatpush2.msra.mxu0 0.0
    %2769 = vmatprep.subr.mxu0 0.0
    %2770 = vmatpush2.msra.mxu0 0.0
    %2771 = vmatprep.subr.mxu0 0.0
    %2772 = vmatpush2.msra.mxu0 0.0
    %2773 = vmatprep.subr.mxu0 0.0
    %2774 = vmatpush2.msra.mxu0 0.0
    %2775 = vmatprep.mubr.f32.mxu0 0.0
    %2776 = vmatmul.mubr.f32.gmra.mxu0 %v2387
    %v2777 = vpop.f32.mrf.mxu0
    %v2778 = vadd.f32 0.0, %v2777
    %v2779 = vpop.f32.mrf.mxu0
    %v2780 = vadd.f32 0.0, %v2779
    %2781 = vdwg.mxu0
    %2782 = vmatprep.subr.mxu0 %v219
    %2783 = vmatpush1.msra.mxu0 %v218
    %2784 = vmatprep.subr.mxu0 %v215
    %2785 = vmatpush1.msra.mxu0 %v214
    %2786 = vmatprep.subr.mxu0 %v211
    %2787 = vmatpush1.msra.mxu0 %v210
    %2788 = vmatprep.subr.mxu0 %v207
    %2789 = vmatpush1.msra.mxu0 %v206
    %2790 = vmatprep.subr.mxu0 %v203
    %2791 = vmatpush1.msra.mxu0 %v202
    %2792 = vmatprep.subr.mxu0 %v199
    %2793 = vmatpush1.msra.mxu0 %v198
    %2794 = vmatprep.subr.mxu0 %v195
    %2795 = vmatpush1.msra.mxu0 %v194
    %2796 = vmatprep.subr.mxu0 %v191
    %2797 = vmatpush1.msra.mxu0 %v190
    %2798 = vmatprep.subr.mxu0 %v187
    %2799 = vmatpush1.msra.mxu0 %v186
    %2800 = vmatprep.subr.mxu0 %v183
    %2801 = vmatpush1.msra.mxu0 %v182
    %2802 = vmatprep.subr.mxu0 %v179
    %2803 = vmatpush1.msra.mxu0 %v178
    %2804 = vmatprep.subr.mxu0 %v175
    %2805 = vmatpush1.msra.mxu0 %v174
    %2806 = vmatprep.subr.mxu0 %v171
    %2807 = vmatpush1.msra.mxu0 %v170
    %2808 = vmatprep.subr.mxu0 %v167
    %2809 = vmatpush1.msra.mxu0 %v166
    %2810 = vmatprep.subr.mxu0 %v163
    %2811 = vmatpush1.msra.mxu0 %v162
    %2812 = vmatprep.subr.mxu0 %v159
    %2813 = vmatpush1.msra.mxu0 %v158
    %2814 = vmatprep.subr.mxu0 0.0
    %2815 = vmatpush2.msra.mxu0 0.0
    %2816 = vmatprep.subr.mxu0 0.0
    %2817 = vmatpush2.msra.mxu0 0.0
    %2818 = vmatprep.subr.mxu0 0.0
    %2819 = vmatpush2.msra.mxu0 0.0
    %2820 = vmatprep.subr.mxu0 0.0
    %2821 = vmatpush2.msra.mxu0 0.0
    %2822 = vmatprep.subr.mxu0 0.0
    %2823 = vmatpush2.msra.mxu0 0.0
    %2824 = vmatprep.subr.mxu0 0.0
    %2825 = vmatpush2.msra.mxu0 0.0
    %2826 = vmatprep.subr.mxu0 0.0
    %2827 = vmatpush2.msra.mxu0 0.0
    %2828 = vmatprep.subr.mxu0 0.0
    %2829 = vmatpush2.msra.mxu0 0.0
    %2830 = vmatprep.subr.mxu0 0.0
    %2831 = vmatpush2.msra.mxu0 0.0
    %2832 = vmatprep.subr.mxu0 0.0
    %2833 = vmatpush2.msra.mxu0 0.0
    %2834 = vmatprep.subr.mxu0 0.0
    %2835 = vmatpush2.msra.mxu0 0.0
    %2836 = vmatprep.subr.mxu0 0.0
    %2837 = vmatpush2.msra.mxu0 0.0
    %2838 = vmatprep.subr.mxu0 0.0
    %2839 = vmatpush2.msra.mxu0 0.0
    %2840 = vmatprep.subr.mxu0 0.0
    %2841 = vmatpush2.msra.mxu0 0.0
    %2842 = vmatprep.subr.mxu0 0.0
    %2843 = vmatpush2.msra.mxu0 0.0
    %2844 = vmatprep.subr.mxu0 0.0
    %2845 = vmatpush2.msra.mxu0 0.0
    %2846 = vmatprep.mubr.f32.mxu0 0.0
    %2847 = vmatmul.mubr.f32.gmra.mxu0 %v2387
    %v2848 = vpop.f32.mrf.mxu0
    %v2849 = vadd.f32 0.0, %v2848
    %v2850 = vpop.f32.mrf.mxu0
    %v2851 = vadd.f32 0.0, %v2850
    %2852 = vdwg.mxu0
    %v2853 = vadd.f32 %v2707, %v2778
    %v2854 = vadd.f32 %v2708, %v2780
    %v2855 = vadd.f32 %v2709, %v2849
    %v2856 = vadd.f32 %v2710, %v2851
    %v2857 = vxor.u32 %v2853, 2147483648
    %v2858 = vmul.f32 %v2857, 1.442695
    %v2859 = vpow.pop %v2858
    %v2860 = vadd.f32 %v2859, 1.0
    %v2861 = vrcp.pop %v2860
    %v2862 = vmul.f32 1.0, %v2861
    %v2863 = vxor.u32 %v2854, 2147483648
    %v2864 = vmul.f32 %v2863, 1.442695
    %v2865 = vpow.pop %v2864
    %v2866 = vadd.f32 %v2865, 1.0
    %v2867 = vrcp.pop %v2866
    %v2868 = vmul.f32 1.0, %v2867
    %v2869 = vtanh.pop %v2855
    %v2870 = vxor.u32 %v2856, 2147483648
    %v2871 = vmul.f32 %v2870, 1.442695
    %v2872 = vpow.pop %v2871
    %v2873 = vadd.f32 %v2872, 1.0
    %v2874 = vrcp.pop %v2873
    %v2875 = vmul.f32 1.0, %v2874
    %v2876 = vmul.f32 %v2868, %v2385
    %v2877 = vmul.f32 %v2862, %v2869
    %v2878 = vadd.f32 %v2876, %v2877
    %v2879 = vtanh.pop %v2878
    %v2880 = vmul.f32 %v2875, %v2879
    %s2881 = scalar_lea.vmem [#allocation2], 32
    %2882 = vst [vmem:[%s2881] sm:$0xff] %v2880
    %s2883 = scalar_lea.vmem %s0, 192
    %v2884 = vld [vmem:[%s2883] sm:$0xff]
    %v2885 = vld [vmem:[%s2883 + $0x8] sm:$0xff]
    %v2886 = vld [vmem:[%s2883 + $0x10] sm:$0xff]
    %v2887 = vld [vmem:[%s2883 + $0x18] sm:$0xff]
    %2888 = vmatprep.subr.mxu0 %v89
    %2889 = vmatpush1.msra.mxu0 %v88
    %2890 = vmatprep.subr.mxu0 %v85
    %2891 = vmatpush1.msra.mxu0 %v84
    %2892 = vmatprep.subr.mxu0 %v81
    %2893 = vmatpush1.msra.mxu0 %v80
    %2894 = vmatprep.subr.mxu0 %v77
    %2895 = vmatpush1.msra.mxu0 %v76
    %2896 = vmatprep.subr.mxu0 %v73
    %2897 = vmatpush1.msra.mxu0 %v72
    %2898 = vmatprep.subr.mxu0 %v69
    %2899 = vmatpush1.msra.mxu0 %v68
    %2900 = vmatprep.subr.mxu0 %v65
    %2901 = vmatpush1.msra.mxu0 %v64
    %2902 = vmatprep.subr.mxu0 %v61
    %2903 = vmatpush1.msra.mxu0 %v60
    %2904 = vmatprep.subr.mxu0 %v57
    %2905 = vmatpush1.msra.mxu0 %v56
    %2906 = vmatprep.subr.mxu0 %v53
    %2907 = vmatpush1.msra.mxu0 %v52
    %2908 = vmatprep.subr.mxu0 %v49
    %2909 = vmatpush1.msra.mxu0 %v48
    %2910 = vmatprep.subr.mxu0 %v45
    %2911 = vmatpush1.msra.mxu0 %v44
    %2912 = vmatprep.subr.mxu0 %v41
    %2913 = vmatpush1.msra.mxu0 %v40
    %2914 = vmatprep.subr.mxu0 %v37
    %2915 = vmatpush1.msra.mxu0 %v36
    %2916 = vmatprep.subr.mxu0 %v33
    %2917 = vmatpush1.msra.mxu0 %v32
    %2918 = vmatprep.subr.mxu0 %v29
    %2919 = vmatpush1.msra.mxu0 %v28
    %2920 = vmatprep.subr.mxu0 0.0
    %2921 = vmatpush2.msra.mxu0 0.0
    %2922 = vmatprep.subr.mxu0 0.0
    %2923 = vmatpush2.msra.mxu0 0.0
    %2924 = vmatprep.subr.mxu0 0.0
    %2925 = vmatpush2.msra.mxu0 0.0
    %2926 = vmatprep.subr.mxu0 0.0
    %2927 = vmatpush2.msra.mxu0 0.0
    %2928 = vmatprep.subr.mxu0 0.0
    %2929 = vmatpush2.msra.mxu0 0.0
    %2930 = vmatprep.subr.mxu0 0.0
    %2931 = vmatpush2.msra.mxu0 0.0
    %2932 = vmatprep.subr.mxu0 0.0
    %2933 = vmatpush2.msra.mxu0 0.0
    %2934 = vmatprep.subr.mxu0 0.0
    %2935 = vmatpush2.msra.mxu0 0.0
    %2936 = vmatprep.subr.mxu0 0.0
    %2937 = vmatpush2.msra.mxu0 0.0
    %2938 = vmatprep.subr.mxu0 0.0
    %2939 = vmatpush2.msra.mxu0 0.0
    %2940 = vmatprep.subr.mxu0 0.0
    %2941 = vmatpush2.msra.mxu0 0.0
    %2942 = vmatprep.subr.mxu0 0.0
    %2943 = vmatpush2.msra.mxu0 0.0
    %2944 = vmatprep.subr.mxu0 0.0
    %2945 = vmatpush2.msra.mxu0 0.0
    %2946 = vmatprep.subr.mxu0 0.0
    %2947 = vmatpush2.msra.mxu0 0.0
    %2948 = vmatprep.subr.mxu0 0.0
    %2949 = vmatpush2.msra.mxu0 0.0
    %2950 = vmatprep.subr.mxu0 0.0
    %2951 = vmatpush2.msra.mxu0 0.0
    %2952 = vmatprep.mubr.f32.mxu0 0.0
    %2953 = vmatmul.mubr.f32.gmra.mxu0 %v2564
    %v2954 = vpop.f32.mrf.mxu0
    %v2955 = vadd.f32 0.0, %v2954
    %v2956 = vpop.f32.mrf.mxu0
    %v2957 = vadd.f32 0.0, %v2956
    %2958 = vdwg.mxu0
    %2959 = vmatprep.subr.mxu0 %v91
    %2960 = vmatpush1.msra.mxu0 %v90
    %2961 = vmatprep.subr.mxu0 %v87
    %2962 = vmatpush1.msra.mxu0 %v86
    %2963 = vmatprep.subr.mxu0 %v83
    %2964 = vmatpush1.msra.mxu0 %v82
    %2965 = vmatprep.subr.mxu0 %v79
    %2966 = vmatpush1.msra.mxu0 %v78
    %2967 = vmatprep.subr.mxu0 %v75
    %2968 = vmatpush1.msra.mxu0 %v74
    %2969 = vmatprep.subr.mxu0 %v71
    %2970 = vmatpush1.msra.mxu0 %v70
    %2971 = vmatprep.subr.mxu0 %v67
    %2972 = vmatpush1.msra.mxu0 %v66
    %2973 = vmatprep.subr.mxu0 %v63
    %2974 = vmatpush1.msra.mxu0 %v62
    %2975 = vmatprep.subr.mxu0 %v59
    %2976 = vmatpush1.msra.mxu0 %v58
    %2977 = vmatprep.subr.mxu0 %v55
    %2978 = vmatpush1.msra.mxu0 %v54
    %2979 = vmatprep.subr.mxu0 %v51
    %2980 = vmatpush1.msra.mxu0 %v50
    %2981 = vmatprep.subr.mxu0 %v47
    %2982 = vmatpush1.msra.mxu0 %v46
    %2983 = vmatprep.subr.mxu0 %v43
    %2984 = vmatpush1.msra.mxu0 %v42
    %2985 = vmatprep.subr.mxu0 %v39
    %2986 = vmatpush1.msra.mxu0 %v38
    %2987 = vmatprep.subr.mxu0 %v35
    %2988 = vmatpush1.msra.mxu0 %v34
    %2989 = vmatprep.subr.mxu0 %v31
    %2990 = vmatpush1.msra.mxu0 %v30
    %2991 = vmatprep.subr.mxu0 0.0
    %2992 = vmatpush2.msra.mxu0 0.0
    %2993 = vmatprep.subr.mxu0 0.0
    %2994 = vmatpush2.msra.mxu0 0.0
    %2995 = vmatprep.subr.mxu0 0.0
    %2996 = vmatpush2.msra.mxu0 0.0
    %2997 = vmatprep.subr.mxu0 0.0
    %2998 = vmatpush2.msra.mxu0 0.0
    %2999 = vmatprep.subr.mxu0 0.0
    %3000 = vmatpush2.msra.mxu0 0.0
    %3001 = vmatprep.subr.mxu0 0.0
    %3002 = vmatpush2.msra.mxu0 0.0
    %3003 = vmatprep.subr.mxu0 0.0
    %3004 = vmatpush2.msra.mxu0 0.0
    %3005 = vmatprep.subr.mxu0 0.0
    %3006 = vmatpush2.msra.mxu0 0.0
    %3007 = vmatprep.subr.mxu0 0.0
    %3008 = vmatpush2.msra.mxu0 0.0
    %3009 = vmatprep.subr.mxu0 0.0
    %3010 = vmatpush2.msra.mxu0 0.0
    %3011 = vmatprep.subr.mxu0 0.0
    %3012 = vmatpush2.msra.mxu0 0.0
    %3013 = vmatprep.subr.mxu0 0.0
    %3014 = vmatpush2.msra.mxu0 0.0
    %3015 = vmatprep.subr.mxu0 0.0
    %3016 = vmatpush2.msra.mxu0 0.0
    %3017 = vmatprep.subr.mxu0 0.0
    %3018 = vmatpush2.msra.mxu0 0.0
    %3019 = vmatprep.subr.mxu0 0.0
    %3020 = vmatpush2.msra.mxu0 0.0
    %3021 = vmatprep.subr.mxu0 0.0
    %3022 = vmatpush2.msra.mxu0 0.0
    %3023 = vmatprep.mubr.f32.mxu0 0.0
    %3024 = vmatmul.mubr.f32.gmra.mxu0 %v2564
    %v3025 = vpop.f32.mrf.mxu0
    %v3026 = vadd.f32 0.0, %v3025
    %v3027 = vpop.f32.mrf.mxu0
    %v3028 = vadd.f32 0.0, %v3027
    %3029 = vdwg.mxu0
    %v3030 = vadd.f32 %v2884, %v2955
    %v3031 = vadd.f32 %v2885, %v2957
    %v3032 = vadd.f32 %v2886, %v3026
    %v3033 = vadd.f32 %v2887, %v3028
    %v3034 = vxor.u32 %v3030, 2147483648
    %v3035 = vmul.f32 %v3034, 1.442695
    %v3036 = vpow.pop %v3035
    %v3037 = vadd.f32 %v3036, 1.0
    %v3038 = vrcp.pop %v3037
    %v3039 = vmul.f32 1.0, %v3038
    %v3040 = vxor.u32 %v3031, 2147483648
    %v3041 = vmul.f32 %v3040, 1.442695
    %v3042 = vpow.pop %v3041
    %v3043 = vadd.f32 %v3042, 1.0
    %v3044 = vrcp.pop %v3043
    %v3045 = vmul.f32 1.0, %v3044
    %v3046 = vtanh.pop %v3032
    %v3047 = vxor.u32 %v3033, 2147483648
    %v3048 = vmul.f32 %v3047, 1.442695
    %v3049 = vpow.pop %v3048
    %v3050 = vadd.f32 %v3049, 1.0
    %v3051 = vrcp.pop %v3050
    %v3052 = vmul.f32 1.0, %v3051
    %v3053 = vmul.f32 %v3045, %v2562
    %v3054 = vmul.f32 %v3039, %v3046
    %v3055 = vadd.f32 %v3053, %v3054
    %v3056 = vtanh.pop %v3055
    %v3057 = vmul.f32 %v3052, %v3056
    %3058 = vmatprep.subr.mxu0 %v153
    %3059 = vmatpush1.msra.mxu0 %v152
    %3060 = vmatprep.subr.mxu0 %v149
    %3061 = vmatpush1.msra.mxu0 %v148
    %3062 = vmatprep.subr.mxu0 %v145
    %3063 = vmatpush1.msra.mxu0 %v144
    %3064 = vmatprep.subr.mxu0 %v141
    %3065 = vmatpush1.msra.mxu0 %v140
    %3066 = vmatprep.subr.mxu0 %v137
    %3067 = vmatpush1.msra.mxu0 %v136
    %3068 = vmatprep.subr.mxu0 %v133
    %3069 = vmatpush1.msra.mxu0 %v132
    %3070 = vmatprep.subr.mxu0 %v129
    %3071 = vmatpush1.msra.mxu0 %v128
    %3072 = vmatprep.subr.mxu0 %v125
    %3073 = vmatpush1.msra.mxu0 %v124
    %3074 = vmatprep.subr.mxu0 %v121
    %3075 = vmatpush1.msra.mxu0 %v120
    %3076 = vmatprep.subr.mxu0 %v117
    %3077 = vmatpush1.msra.mxu0 %v116
    %3078 = vmatprep.subr.mxu0 %v113
    %3079 = vmatpush1.msra.mxu0 %v112
    %3080 = vmatprep.subr.mxu0 %v109
    %3081 = vmatpush1.msra.mxu0 %v108
    %3082 = vmatprep.subr.mxu0 %v105
    %3083 = vmatpush1.msra.mxu0 %v104
    %3084 = vmatprep.subr.mxu0 %v101
    %3085 = vmatpush1.msra.mxu0 %v100
    %3086 = vmatprep.subr.mxu0 %v97
    %3087 = vmatpush1.msra.mxu0 %v96
    %3088 = vmatprep.subr.mxu0 %v93
    %3089 = vmatpush1.msra.mxu0 %v92
    %3090 = vmatprep.subr.mxu0 0.0
    %3091 = vmatpush2.msra.mxu0 0.0
    %3092 = vmatprep.subr.mxu0 0.0
    %3093 = vmatpush2.msra.mxu0 0.0
    %3094 = vmatprep.subr.mxu0 0.0
    %3095 = vmatpush2.msra.mxu0 0.0
    %3096 = vmatprep.subr.mxu0 0.0
    %3097 = vmatpush2.msra.mxu0 0.0
    %3098 = vmatprep.subr.mxu0 0.0
    %3099 = vmatpush2.msra.mxu0 0.0
    %3100 = vmatprep.subr.mxu0 0.0
    %3101 = vmatpush2.msra.mxu0 0.0
    %3102 = vmatprep.subr.mxu0 0.0
    %3103 = vmatpush2.msra.mxu0 0.0
    %3104 = vmatprep.subr.mxu0 0.0
    %3105 = vmatpush2.msra.mxu0 0.0
    %3106 = vmatprep.subr.mxu0 0.0
    %3107 = vmatpush2.msra.mxu0 0.0
    %3108 = vmatprep.subr.mxu0 0.0
    %3109 = vmatpush2.msra.mxu0 0.0
    %3110 = vmatprep.subr.mxu0 0.0
    %3111 = vmatpush2.msra.mxu0 0.0
    %3112 = vmatprep.subr.mxu0 0.0
    %3113 = vmatpush2.msra.mxu0 0.0
    %3114 = vmatprep.subr.mxu0 0.0
    %3115 = vmatpush2.msra.mxu0 0.0
    %3116 = vmatprep.subr.mxu0 0.0
    %3117 = vmatpush2.msra.mxu0 0.0
    %3118 = vmatprep.subr.mxu0 0.0
    %3119 = vmatpush2.msra.mxu0 0.0
    %3120 = vmatprep.subr.mxu0 0.0
    %3121 = vmatpush2.msra.mxu0 0.0
    %3122 = vmatprep.mubr.f32.mxu0 0.0
    %3123 = vmatmul.mubr.f32.gmra.mxu0 %v2564
    %v3124 = vpop.f32.mrf.mxu0
    %v3125 = vadd.f32 0.0, %v3124
    %v3126 = vpop.f32.mrf.mxu0
    %v3127 = vadd.f32 0.0, %v3126
    %3128 = vdwg.mxu0
    %3129 = vmatprep.subr.mxu0 %v155
    %3130 = vmatpush1.msra.mxu0 %v154
    %3131 = vmatprep.subr.mxu0 %v151
    %3132 = vmatpush1.msra.mxu0 %v150
    %3133 = vmatprep.subr.mxu0 %v147
    %3134 = vmatpush1.msra.mxu0 %v146
    %3135 = vmatprep.subr.mxu0 %v143
    %3136 = vmatpush1.msra.mxu0 %v142
    %3137 = vmatprep.subr.mxu0 %v139
    %3138 = vmatpush1.msra.mxu0 %v138
    %3139 = vmatprep.subr.mxu0 %v135
    %3140 = vmatpush1.msra.mxu0 %v134
    %3141 = vmatprep.subr.mxu0 %v131
    %3142 = vmatpush1.msra.mxu0 %v130
    %3143 = vmatprep.subr.mxu0 %v127
    %3144 = vmatpush1.msra.mxu0 %v126
    %3145 = vmatprep.subr.mxu0 %v123
    %3146 = vmatpush1.msra.mxu0 %v122
    %3147 = vmatprep.subr.mxu0 %v119
    %3148 = vmatpush1.msra.mxu0 %v118
    %3149 = vmatprep.subr.mxu0 %v115
    %3150 = vmatpush1.msra.mxu0 %v114
    %3151 = vmatprep.subr.mxu0 %v111
    %3152 = vmatpush1.msra.mxu0 %v110
    %3153 = vmatprep.subr.mxu0 %v107
    %3154 = vmatpush1.msra.mxu0 %v106
    %3155 = vmatprep.subr.mxu0 %v103
    %3156 = vmatpush1.msra.mxu0 %v102
    %3157 = vmatprep.subr.mxu0 %v99
    %3158 = vmatpush1.msra.mxu0 %v98
    %3159 = vmatprep.subr.mxu0 %v95
    %3160 = vmatpush1.msra.mxu0 %v94
    %3161 = vmatprep.subr.mxu0 0.0
    %3162 = vmatpush2.msra.mxu0 0.0
    %3163 = vmatprep.subr.mxu0 0.0
    %3164 = vmatpush2.msra.mxu0 0.0
    %3165 = vmatprep.subr.mxu0 0.0
    %3166 = vmatpush2.msra.mxu0 0.0
    %3167 = vmatprep.subr.mxu0 0.0
    %3168 = vmatpush2.msra.mxu0 0.0
    %3169 = vmatprep.subr.mxu0 0.0
    %3170 = vmatpush2.msra.mxu0 0.0
    %3171 = vmatprep.subr.mxu0 0.0
    %3172 = vmatpush2.msra.mxu0 0.0
    %3173 = vmatprep.subr.mxu0 0.0
    %3174 = vmatpush2.msra.mxu0 0.0
    %3175 = vmatprep.subr.mxu0 0.0
    %3176 = vmatpush2.msra.mxu0 0.0
    %3177 = vmatprep.subr.mxu0 0.0
    %3178 = vmatpush2.msra.mxu0 0.0
    %3179 = vmatprep.subr.mxu0 0.0
    %3180 = vmatpush2.msra.mxu0 0.0
    %3181 = vmatprep.subr.mxu0 0.0
    %3182 = vmatpush2.msra.mxu0 0.0
    %3183 = vmatprep.subr.mxu0 0.0
    %3184 = vmatpush2.msra.mxu0 0.0
    %3185 = vmatprep.subr.mxu0 0.0
    %3186 = vmatpush2.msra.mxu0 0.0
    %3187 = vmatprep.subr.mxu0 0.0
    %3188 = vmatpush2.msra.mxu0 0.0
    %3189 = vmatprep.subr.mxu0 0.0
    %3190 = vmatpush2.msra.mxu0 0.0
    %3191 = vmatprep.subr.mxu0 0.0
    %3192 = vmatpush2.msra.mxu0 0.0
    %3193 = vmatprep.mubr.f32.mxu0 0.0
    %3194 = vmatmul.mubr.f32.gmra.mxu0 %v2564
    %v3195 = vpop.f32.mrf.mxu0
    %v3196 = vadd.f32 0.0, %v3195
    %v3197 = vpop.f32.mrf.mxu0
    %v3198 = vadd.f32 0.0, %v3197
    %3199 = vdwg.mxu0
    %v3200 = vadd.f32 %v719, %v3125
    %v3201 = vadd.f32 %v723, %v3127
    %v3202 = vadd.f32 %v727, %v3196
    %v3203 = vadd.f32 %v731, %v3198
    %3204 = vmatprep.subr.mxu0 %v217
    %3205 = vmatpush1.msra.mxu0 %v216
    %3206 = vmatprep.subr.mxu0 %v213
    %3207 = vmatpush1.msra.mxu0 %v212
    %3208 = vmatprep.subr.mxu0 %v209
    %3209 = vmatpush1.msra.mxu0 %v208
    %3210 = vmatprep.subr.mxu0 %v205
    %3211 = vmatpush1.msra.mxu0 %v204
    %3212 = vmatprep.subr.mxu0 %v201
    %3213 = vmatpush1.msra.mxu0 %v200
    %3214 = vmatprep.subr.mxu0 %v197
    %3215 = vmatpush1.msra.mxu0 %v196
    %3216 = vmatprep.subr.mxu0 %v193
    %3217 = vmatpush1.msra.mxu0 %v192
    %3218 = vmatprep.subr.mxu0 %v189
    %3219 = vmatpush1.msra.mxu0 %v188
    %3220 = vmatprep.subr.mxu0 %v185
    %3221 = vmatpush1.msra.mxu0 %v184
    %3222 = vmatprep.subr.mxu0 %v181
    %3223 = vmatpush1.msra.mxu0 %v180
    %3224 = vmatprep.subr.mxu0 %v177
    %3225 = vmatpush1.msra.mxu0 %v176
    %3226 = vmatprep.subr.mxu0 %v173
    %3227 = vmatpush1.msra.mxu0 %v172
    %3228 = vmatprep.subr.mxu0 %v169
    %3229 = vmatpush1.msra.mxu0 %v168
    %3230 = vmatprep.subr.mxu0 %v165
    %3231 = vmatpush1.msra.mxu0 %v164
    %3232 = vmatprep.subr.mxu0 %v161
    %3233 = vmatpush1.msra.mxu0 %v160
    %3234 = vmatprep.subr.mxu0 %v157
    %3235 = vmatpush1.msra.mxu0 %v156
    %3236 = vmatprep.subr.mxu0 0.0
    %3237 = vmatpush2.msra.mxu0 0.0
    %3238 = vmatprep.subr.mxu0 0.0
    %3239 = vmatpush2.msra.mxu0 0.0
    %3240 = vmatprep.subr.mxu0 0.0
    %3241 = vmatpush2.msra.mxu0 0.0
    %3242 = vmatprep.subr.mxu0 0.0
    %3243 = vmatpush2.msra.mxu0 0.0
    %3244 = vmatprep.subr.mxu0 0.0
    %3245 = vmatpush2.msra.mxu0 0.0
    %3246 = vmatprep.subr.mxu0 0.0
    %3247 = vmatpush2.msra.mxu0 0.0
    %3248 = vmatprep.subr.mxu0 0.0
    %3249 = vmatpush2.msra.mxu0 0.0
    %3250 = vmatprep.subr.mxu0 0.0
    %3251 = vmatpush2.msra.mxu0 0.0
    %3252 = vmatprep.subr.mxu0 0.0
    %3253 = vmatpush2.msra.mxu0 0.0
    %3254 = vmatprep.subr.mxu0 0.0
    %3255 = vmatpush2.msra.mxu0 0.0
    %3256 = vmatprep.subr.mxu0 0.0
    %3257 = vmatpush2.msra.mxu0 0.0
    %3258 = vmatprep.subr.mxu0 0.0
    %3259 = vmatpush2.msra.mxu0 0.0
    %3260 = vmatprep.subr.mxu0 0.0
    %3261 = vmatpush2.msra.mxu0 0.0
    %3262 = vmatprep.subr.mxu0 0.0
    %3263 = vmatpush2.msra.mxu0 0.0
    %3264 = vmatprep.subr.mxu0 0.0
    %3265 = vmatpush2.msra.mxu0 0.0
    %3266 = vmatprep.subr.mxu0 0.0
    %3267 = vmatpush2.msra.mxu0 0.0
    %3268 = vmatprep.mubr.f32.mxu0 0.0
    %3269 = vmatmul.mubr.f32.gmra.mxu0 %v2880
    %v3270 = vpop.f32.mrf.mxu0
    %v3271 = vadd.f32 0.0, %v3270
    %v3272 = vpop.f32.mrf.mxu0
    %v3273 = vadd.f32 0.0, %v3272
    %3274 = vdwg.mxu0
    %3275 = vmatprep.subr.mxu0 %v219
    %3276 = vmatpush1.msra.mxu0 %v218
    %3277 = vmatprep.subr.mxu0 %v215
    %3278 = vmatpush1.msra.mxu0 %v214
    %3279 = vmatprep.subr.mxu0 %v211
    %3280 = vmatpush1.msra.mxu0 %v210
    %3281 = vmatprep.subr.mxu0 %v207
    %3282 = vmatpush1.msra.mxu0 %v206
    %3283 = vmatprep.subr.mxu0 %v203
    %3284 = vmatpush1.msra.mxu0 %v202
    %3285 = vmatprep.subr.mxu0 %v199
    %3286 = vmatpush1.msra.mxu0 %v198
    %3287 = vmatprep.subr.mxu0 %v195
    %3288 = vmatpush1.msra.mxu0 %v194
    %3289 = vmatprep.subr.mxu0 %v191
    %3290 = vmatpush1.msra.mxu0 %v190
    %3291 = vmatprep.subr.mxu0 %v187
    %3292 = vmatpush1.msra.mxu0 %v186
    %3293 = vmatprep.subr.mxu0 %v183
    %3294 = vmatpush1.msra.mxu0 %v182
    %3295 = vmatprep.subr.mxu0 %v179
    %3296 = vmatpush1.msra.mxu0 %v178
    %3297 = vmatprep.subr.mxu0 %v175
    %3298 = vmatpush1.msra.mxu0 %v174
    %3299 = vmatprep.subr.mxu0 %v171
    %3300 = vmatpush1.msra.mxu0 %v170
    %3301 = vmatprep.subr.mxu0 %v167
    %3302 = vmatpush1.msra.mxu0 %v166
    %3303 = vmatprep.subr.mxu0 %v163
    %3304 = vmatpush1.msra.mxu0 %v162
    %3305 = vmatprep.subr.mxu0 %v159
    %3306 = vmatpush1.msra.mxu0 %v158
    %3307 = vmatprep.subr.mxu0 0.0
    %3308 = vmatpush2.msra.mxu0 0.0
    %3309 = vmatprep.subr.mxu0 0.0
    %3310 = vmatpush2.msra.mxu0 0.0
    %3311 = vmatprep.subr.mxu0 0.0
    %3312 = vmatpush2.msra.mxu0 0.0
    %3313 = vmatprep.subr.mxu0 0.0
    %3314 = vmatpush2.msra.mxu0 0.0
    %3315 = vmatprep.subr.mxu0 0.0
    %3316 = vmatpush2.msra.mxu0 0.0
    %3317 = vmatprep.subr.mxu0 0.0
    %3318 = vmatpush2.msra.mxu0 0.0
    %3319 = vmatprep.subr.mxu0 0.0
    %3320 = vmatpush2.msra.mxu0 0.0
    %3321 = vmatprep.subr.mxu0 0.0
    %3322 = vmatpush2.msra.mxu0 0.0
    %3323 = vmatprep.subr.mxu0 0.0
    %3324 = vmatpush2.msra.mxu0 0.0
    %3325 = vmatprep.subr.mxu0 0.0
    %3326 = vmatpush2.msra.mxu0 0.0
    %3327 = vmatprep.subr.mxu0 0.0
    %3328 = vmatpush2.msra.mxu0 0.0
    %3329 = vmatprep.subr.mxu0 0.0
    %3330 = vmatpush2.msra.mxu0 0.0
    %3331 = vmatprep.subr.mxu0 0.0
    %3332 = vmatpush2.msra.mxu0 0.0
    %3333 = vmatprep.subr.mxu0 0.0
    %3334 = vmatpush2.msra.mxu0 0.0
    %3335 = vmatprep.subr.mxu0 0.0
    %3336 = vmatpush2.msra.mxu0 0.0
    %3337 = vmatprep.subr.mxu0 0.0
    %3338 = vmatpush2.msra.mxu0 0.0
    %3339 = vmatprep.mubr.f32.mxu0 0.0
    %3340 = vmatmul.mubr.f32.gmra.mxu0 %v2880
    %v3341 = vpop.f32.mrf.mxu0
    %v3342 = vadd.f32 0.0, %v3341
    %v3343 = vpop.f32.mrf.mxu0
    %v3344 = vadd.f32 0.0, %v3343
    %3345 = vdwg.mxu0
    %v3346 = vadd.f32 %v3200, %v3271
    %v3347 = vadd.f32 %v3201, %v3273
    %v3348 = vadd.f32 %v3202, %v3342
    %v3349 = vadd.f32 %v3203, %v3344
    %v3350 = vxor.u32 %v3346, 2147483648
    %v3351 = vmul.f32 %v3350, 1.442695
    %v3352 = vpow.pop %v3351
    %v3353 = vadd.f32 %v3352, 1.0
    %v3354 = vrcp.pop %v3353
    %v3355 = vmul.f32 1.0, %v3354
    %v3356 = vxor.u32 %v3347, 2147483648
    %v3357 = vmul.f32 %v3356, 1.442695
    %v3358 = vpow.pop %v3357
    %v3359 = vadd.f32 %v3358, 1.0
    %v3360 = vrcp.pop %v3359
    %v3361 = vmul.f32 1.0, %v3360
    %v3362 = vtanh.pop %v3348
    %v3363 = vxor.u32 %v3349, 2147483648
    %v3364 = vmul.f32 %v3363, 1.442695
    %v3365 = vpow.pop %v3364
    %v3366 = vadd.f32 %v3365, 1.0
    %v3367 = vrcp.pop %v3366
    %v3368 = vmul.f32 1.0, %v3367
    %v3369 = vmul.f32 %v3361, %v2878
    %v3370 = vmul.f32 %v3355, %v3362
    %v3371 = vadd.f32 %v3369, %v3370
    %v3372 = vtanh.pop %v3371
    %v3373 = vmul.f32 %v3368, %v3372
    %s3374 = scalar_lea.vmem [#allocation2], 40
    %3375 = vst [vmem:[%s3374] sm:$0xff] %v3373
    %s3376 = scalar_lea.vmem %s0, 224
    %v3377 = vld [vmem:[%s3376] sm:$0xff]
    %v3378 = vld [vmem:[%s3376 + $0x8] sm:$0xff]
    %v3379 = vld [vmem:[%s3376 + $0x10] sm:$0xff]
    %v3380 = vld [vmem:[%s3376 + $0x18] sm:$0xff]
    %3381 = vmatprep.subr.mxu0 %v89
    %3382 = vmatpush1.msra.mxu0 %v88
    %3383 = vmatprep.subr.mxu0 %v85
    %3384 = vmatpush1.msra.mxu0 %v84
    %3385 = vmatprep.subr.mxu0 %v81
    %3386 = vmatpush1.msra.mxu0 %v80
    %3387 = vmatprep.subr.mxu0 %v77
    %3388 = vmatpush1.msra.mxu0 %v76
    %3389 = vmatprep.subr.mxu0 %v73
    %3390 = vmatpush1.msra.mxu0 %v72
    %3391 = vmatprep.subr.mxu0 %v69
    %3392 = vmatpush1.msra.mxu0 %v68
    %3393 = vmatprep.subr.mxu0 %v65
    %3394 = vmatpush1.msra.mxu0 %v64
    %3395 = vmatprep.subr.mxu0 %v61
    %3396 = vmatpush1.msra.mxu0 %v60
    %3397 = vmatprep.subr.mxu0 %v57
    %3398 = vmatpush1.msra.mxu0 %v56
    %3399 = vmatprep.subr.mxu0 %v53
    %3400 = vmatpush1.msra.mxu0 %v52
    %3401 = vmatprep.subr.mxu0 %v49
    %3402 = vmatpush1.msra.mxu0 %v48
    %3403 = vmatprep.subr.mxu0 %v45
    %3404 = vmatpush1.msra.mxu0 %v44
    %3405 = vmatprep.subr.mxu0 %v41
    %3406 = vmatpush1.msra.mxu0 %v40
    %3407 = vmatprep.subr.mxu0 %v37
    %3408 = vmatpush1.msra.mxu0 %v36
    %3409 = vmatprep.subr.mxu0 %v33
    %3410 = vmatpush1.msra.mxu0 %v32
    %3411 = vmatprep.subr.mxu0 %v29
    %3412 = vmatpush1.msra.mxu0 %v28
    %3413 = vmatprep.subr.mxu0 0.0
    %3414 = vmatpush2.msra.mxu0 0.0
    %3415 = vmatprep.subr.mxu0 0.0
    %3416 = vmatpush2.msra.mxu0 0.0
    %3417 = vmatprep.subr.mxu0 0.0
    %3418 = vmatpush2.msra.mxu0 0.0
    %3419 = vmatprep.subr.mxu0 0.0
    %3420 = vmatpush2.msra.mxu0 0.0
    %3421 = vmatprep.subr.mxu0 0.0
    %3422 = vmatpush2.msra.mxu0 0.0
    %3423 = vmatprep.subr.mxu0 0.0
    %3424 = vmatpush2.msra.mxu0 0.0
    %3425 = vmatprep.subr.mxu0 0.0
    %3426 = vmatpush2.msra.mxu0 0.0
    %3427 = vmatprep.subr.mxu0 0.0
    %3428 = vmatpush2.msra.mxu0 0.0
    %3429 = vmatprep.subr.mxu0 0.0
    %3430 = vmatpush2.msra.mxu0 0.0
    %3431 = vmatprep.subr.mxu0 0.0
    %3432 = vmatpush2.msra.mxu0 0.0
    %3433 = vmatprep.subr.mxu0 0.0
    %3434 = vmatpush2.msra.mxu0 0.0
    %3435 = vmatprep.subr.mxu0 0.0
    %3436 = vmatpush2.msra.mxu0 0.0
    %3437 = vmatprep.subr.mxu0 0.0
    %3438 = vmatpush2.msra.mxu0 0.0
    %3439 = vmatprep.subr.mxu0 0.0
    %3440 = vmatpush2.msra.mxu0 0.0
    %3441 = vmatprep.subr.mxu0 0.0
    %3442 = vmatpush2.msra.mxu0 0.0
    %3443 = vmatprep.subr.mxu0 0.0
    %3444 = vmatpush2.msra.mxu0 0.0
    %3445 = vmatprep.mubr.f32.mxu0 0.0
    %3446 = vmatmul.mubr.f32.gmra.mxu0 %v3057
    %v3447 = vpop.f32.mrf.mxu0
    %v3448 = vadd.f32 0.0, %v3447
    %v3449 = vpop.f32.mrf.mxu0
    %v3450 = vadd.f32 0.0, %v3449
    %3451 = vdwg.mxu0
    %3452 = vmatprep.subr.mxu0 %v91
    %3453 = vmatpush1.msra.mxu0 %v90
    %3454 = vmatprep.subr.mxu0 %v87
    %3455 = vmatpush1.msra.mxu0 %v86
    %3456 = vmatprep.subr.mxu0 %v83
    %3457 = vmatpush1.msra.mxu0 %v82
    %3458 = vmatprep.subr.mxu0 %v79
    %3459 = vmatpush1.msra.mxu0 %v78
    %3460 = vmatprep.subr.mxu0 %v75
    %3461 = vmatpush1.msra.mxu0 %v74
    %3462 = vmatprep.subr.mxu0 %v71
    %3463 = vmatpush1.msra.mxu0 %v70
    %3464 = vmatprep.subr.mxu0 %v67
    %3465 = vmatpush1.msra.mxu0 %v66
    %3466 = vmatprep.subr.mxu0 %v63
    %3467 = vmatpush1.msra.mxu0 %v62
    %3468 = vmatprep.subr.mxu0 %v59
    %3469 = vmatpush1.msra.mxu0 %v58
    %3470 = vmatprep.subr.mxu0 %v55
    %3471 = vmatpush1.msra.mxu0 %v54
    %3472 = vmatprep.subr.mxu0 %v51
    %3473 = vmatpush1.msra.mxu0 %v50
    %3474 = vmatprep.subr.mxu0 %v47
    %3475 = vmatpush1.msra.mxu0 %v46
    %3476 = vmatprep.subr.mxu0 %v43
    %3477 = vmatpush1.msra.mxu0 %v42
    %3478 = vmatprep.subr.mxu0 %v39
    %3479 = vmatpush1.msra.mxu0 %v38
    %3480 = vmatprep.subr.mxu0 %v35
    %3481 = vmatpush1.msra.mxu0 %v34
    %3482 = vmatprep.subr.mxu0 %v31
    %3483 = vmatpush1.msra.mxu0 %v30
    %3484 = vmatprep.subr.mxu0 0.0
    %3485 = vmatpush2.msra.mxu0 0.0
    %3486 = vmatprep.subr.mxu0 0.0
    %3487 = vmatpush2.msra.mxu0 0.0
    %3488 = vmatprep.subr.mxu0 0.0
    %3489 = vmatpush2.msra.mxu0 0.0
    %3490 = vmatprep.subr.mxu0 0.0
    %3491 = vmatpush2.msra.mxu0 0.0
    %3492 = vmatprep.subr.mxu0 0.0
    %3493 = vmatpush2.msra.mxu0 0.0
    %3494 = vmatprep.subr.mxu0 0.0
    %3495 = vmatpush2.msra.mxu0 0.0
    %3496 = vmatprep.subr.mxu0 0.0
    %3497 = vmatpush2.msra.mxu0 0.0
    %3498 = vmatprep.subr.mxu0 0.0
    %3499 = vmatpush2.msra.mxu0 0.0
    %3500 = vmatprep.subr.mxu0 0.0
    %3501 = vmatpush2.msra.mxu0 0.0
    %3502 = vmatprep.subr.mxu0 0.0
    %3503 = vmatpush2.msra.mxu0 0.0
    %3504 = vmatprep.subr.mxu0 0.0
    %3505 = vmatpush2.msra.mxu0 0.0
    %3506 = vmatprep.subr.mxu0 0.0
    %3507 = vmatpush2.msra.mxu0 0.0
    %3508 = vmatprep.subr.mxu0 0.0
    %3509 = vmatpush2.msra.mxu0 0.0
    %3510 = vmatprep.subr.mxu0 0.0
    %3511 = vmatpush2.msra.mxu0 0.0
    %3512 = vmatprep.subr.mxu0 0.0
    %3513 = vmatpush2.msra.mxu0 0.0
    %3514 = vmatprep.subr.mxu0 0.0
    %3515 = vmatpush2.msra.mxu0 0.0
    %3516 = vmatprep.mubr.f32.mxu0 0.0
    %3517 = vmatmul.mubr.f32.gmra.mxu0 %v3057
    %v3518 = vpop.f32.mrf.mxu0
    %v3519 = vadd.f32 0.0, %v3518
    %v3520 = vpop.f32.mrf.mxu0
    %v3521 = vadd.f32 0.0, %v3520
    %3522 = vdwg.mxu0
    %v3523 = vadd.f32 %v3377, %v3448
    %v3524 = vadd.f32 %v3378, %v3450
    %v3525 = vadd.f32 %v3379, %v3519
    %v3526 = vadd.f32 %v3380, %v3521
    %v3527 = vxor.u32 %v3523, 2147483648
    %v3528 = vmul.f32 %v3527, 1.442695
    %v3529 = vpow.pop %v3528
    %v3530 = vadd.f32 %v3529, 1.0
    %v3531 = vrcp.pop %v3530
    %v3532 = vmul.f32 1.0, %v3531
    %v3533 = vxor.u32 %v3524, 2147483648
    %v3534 = vmul.f32 %v3533, 1.442695
    %v3535 = vpow.pop %v3534
    %v3536 = vadd.f32 %v3535, 1.0
    %v3537 = vrcp.pop %v3536
    %v3538 = vmul.f32 1.0, %v3537
    %v3539 = vtanh.pop %v3525
    %v3540 = vxor.u32 %v3526, 2147483648
    %v3541 = vmul.f32 %v3540, 1.442695
    %v3542 = vpow.pop %v3541
    %v3543 = vadd.f32 %v3542, 1.0
    %v3544 = vrcp.pop %v3543
    %v3545 = vmul.f32 1.0, %v3544
    %v3546 = vmul.f32 %v3538, %v3055
    %v3547 = vmul.f32 %v3532, %v3539
    %v3548 = vadd.f32 %v3546, %v3547
    %v3549 = vtanh.pop %v3548
    %v3550 = vmul.f32 %v3545, %v3549
    %3551 = vmatprep.subr.mxu0 %v153
    %3552 = vmatpush1.msra.mxu0 %v152
    %3553 = vmatprep.subr.mxu0 %v149
    %3554 = vmatpush1.msra.mxu0 %v148
    %3555 = vmatprep.subr.mxu0 %v145
    %3556 = vmatpush1.msra.mxu0 %v144
    %3557 = vmatprep.subr.mxu0 %v141
    %3558 = vmatpush1.msra.mxu0 %v140
    %3559 = vmatprep.subr.mxu0 %v137
    %3560 = vmatpush1.msra.mxu0 %v136
    %3561 = vmatprep.subr.mxu0 %v133
    %3562 = vmatpush1.msra.mxu0 %v132
    %3563 = vmatprep.subr.mxu0 %v129
    %3564 = vmatpush1.msra.mxu0 %v128
    %3565 = vmatprep.subr.mxu0 %v125
    %3566 = vmatpush1.msra.mxu0 %v124
    %3567 = vmatprep.subr.mxu0 %v121
    %3568 = vmatpush1.msra.mxu0 %v120
    %3569 = vmatprep.subr.mxu0 %v117
    %3570 = vmatpush1.msra.mxu0 %v116
    %3571 = vmatprep.subr.mxu0 %v113
    %3572 = vmatpush1.msra.mxu0 %v112
    %3573 = vmatprep.subr.mxu0 %v109
    %3574 = vmatpush1.msra.mxu0 %v108
    %3575 = vmatprep.subr.mxu0 %v105
    %3576 = vmatpush1.msra.mxu0 %v104
    %3577 = vmatprep.subr.mxu0 %v101
    %3578 = vmatpush1.msra.mxu0 %v100
    %3579 = vmatprep.subr.mxu0 %v97
    %3580 = vmatpush1.msra.mxu0 %v96
    %3581 = vmatprep.subr.mxu0 %v93
    %3582 = vmatpush1.msra.mxu0 %v92
    %3583 = vmatprep.subr.mxu0 0.0
    %3584 = vmatpush2.msra.mxu0 0.0
    %3585 = vmatprep.subr.mxu0 0.0
    %3586 = vmatpush2.msra.mxu0 0.0
    %3587 = vmatprep.subr.mxu0 0.0
    %3588 = vmatpush2.msra.mxu0 0.0
    %3589 = vmatprep.subr.mxu0 0.0
    %3590 = vmatpush2.msra.mxu0 0.0
    %3591 = vmatprep.subr.mxu0 0.0
    %3592 = vmatpush2.msra.mxu0 0.0
    %3593 = vmatprep.subr.mxu0 0.0
    %3594 = vmatpush2.msra.mxu0 0.0
    %3595 = vmatprep.subr.mxu0 0.0
    %3596 = vmatpush2.msra.mxu0 0.0
    %3597 = vmatprep.subr.mxu0 0.0
    %3598 = vmatpush2.msra.mxu0 0.0
    %3599 = vmatprep.subr.mxu0 0.0
    %3600 = vmatpush2.msra.mxu0 0.0
    %3601 = vmatprep.subr.mxu0 0.0
    %3602 = vmatpush2.msra.mxu0 0.0
    %3603 = vmatprep.subr.mxu0 0.0
    %3604 = vmatpush2.msra.mxu0 0.0
    %3605 = vmatprep.subr.mxu0 0.0
    %3606 = vmatpush2.msra.mxu0 0.0
    %3607 = vmatprep.subr.mxu0 0.0
    %3608 = vmatpush2.msra.mxu0 0.0
    %3609 = vmatprep.subr.mxu0 0.0
    %3610 = vmatpush2.msra.mxu0 0.0
    %3611 = vmatprep.subr.mxu0 0.0
    %3612 = vmatpush2.msra.mxu0 0.0
    %3613 = vmatprep.subr.mxu0 0.0
    %3614 = vmatpush2.msra.mxu0 0.0
    %3615 = vmatprep.mubr.f32.mxu0 0.0
    %3616 = vmatmul.mubr.f32.gmra.mxu0 %v3057
    %v3617 = vpop.f32.mrf.mxu0
    %v3618 = vadd.f32 0.0, %v3617
    %v3619 = vpop.f32.mrf.mxu0
    %v3620 = vadd.f32 0.0, %v3619
    %3621 = vdwg.mxu0
    %3622 = vmatprep.subr.mxu0 %v155
    %3623 = vmatpush1.msra.mxu0 %v154
    %3624 = vmatprep.subr.mxu0 %v151
    %3625 = vmatpush1.msra.mxu0 %v150
    %3626 = vmatprep.subr.mxu0 %v147
    %3627 = vmatpush1.msra.mxu0 %v146
    %3628 = vmatprep.subr.mxu0 %v143
    %3629 = vmatpush1.msra.mxu0 %v142
    %3630 = vmatprep.subr.mxu0 %v139
    %3631 = vmatpush1.msra.mxu0 %v138
    %3632 = vmatprep.subr.mxu0 %v135
    %3633 = vmatpush1.msra.mxu0 %v134
    %3634 = vmatprep.subr.mxu0 %v131
    %3635 = vmatpush1.msra.mxu0 %v130
    %3636 = vmatprep.subr.mxu0 %v127
    %3637 = vmatpush1.msra.mxu0 %v126
    %3638 = vmatprep.subr.mxu0 %v123
    %3639 = vmatpush1.msra.mxu0 %v122
    %3640 = vmatprep.subr.mxu0 %v119
    %3641 = vmatpush1.msra.mxu0 %v118
    %3642 = vmatprep.subr.mxu0 %v115
    %3643 = vmatpush1.msra.mxu0 %v114
    %3644 = vmatprep.subr.mxu0 %v111
    %3645 = vmatpush1.msra.mxu0 %v110
    %3646 = vmatprep.subr.mxu0 %v107
    %3647 = vmatpush1.msra.mxu0 %v106
    %3648 = vmatprep.subr.mxu0 %v103
    %3649 = vmatpush1.msra.mxu0 %v102
    %3650 = vmatprep.subr.mxu0 %v99
    %3651 = vmatpush1.msra.mxu0 %v98
    %3652 = vmatprep.subr.mxu0 %v95
    %3653 = vmatpush1.msra.mxu0 %v94
    %3654 = vmatprep.subr.mxu0 0.0
    %3655 = vmatpush2.msra.mxu0 0.0
    %3656 = vmatprep.subr.mxu0 0.0
    %3657 = vmatpush2.msra.mxu0 0.0
    %3658 = vmatprep.subr.mxu0 0.0
    %3659 = vmatpush2.msra.mxu0 0.0
    %3660 = vmatprep.subr.mxu0 0.0
    %3661 = vmatpush2.msra.mxu0 0.0
    %3662 = vmatprep.subr.mxu0 0.0
    %3663 = vmatpush2.msra.mxu0 0.0
    %3664 = vmatprep.subr.mxu0 0.0
    %3665 = vmatpush2.msra.mxu0 0.0
    %3666 = vmatprep.subr.mxu0 0.0
    %3667 = vmatpush2.msra.mxu0 0.0
    %3668 = vmatprep.subr.mxu0 0.0
    %3669 = vmatpush2.msra.mxu0 0.0
    %3670 = vmatprep.subr.mxu0 0.0
    %3671 = vmatpush2.msra.mxu0 0.0
    %3672 = vmatprep.subr.mxu0 0.0
    %3673 = vmatpush2.msra.mxu0 0.0
    %3674 = vmatprep.subr.mxu0 0.0
    %3675 = vmatpush2.msra.mxu0 0.0
    %3676 = vmatprep.subr.mxu0 0.0
    %3677 = vmatpush2.msra.mxu0 0.0
    %3678 = vmatprep.subr.mxu0 0.0
    %3679 = vmatpush2.msra.mxu0 0.0
    %3680 = vmatprep.subr.mxu0 0.0
    %3681 = vmatpush2.msra.mxu0 0.0
    %3682 = vmatprep.subr.mxu0 0.0
    %3683 = vmatpush2.msra.mxu0 0.0
    %3684 = vmatprep.subr.mxu0 0.0
    %3685 = vmatpush2.msra.mxu0 0.0
    %3686 = vmatprep.mubr.f32.mxu0 0.0
    %3687 = vmatmul.mubr.f32.gmra.mxu0 %v3057
    %v3688 = vpop.f32.mrf.mxu0
    %v3689 = vadd.f32 0.0, %v3688
    %v3690 = vpop.f32.mrf.mxu0
    %v3691 = vadd.f32 0.0, %v3690
    %3692 = vdwg.mxu0
    %v3693 = vadd.f32 %v719, %v3618
    %v3694 = vadd.f32 %v723, %v3620
    %v3695 = vadd.f32 %v727, %v3689
    %v3696 = vadd.f32 %v731, %v3691
    %3697 = vmatprep.subr.mxu0 %v217
    %3698 = vmatpush1.msra.mxu0 %v216
    %3699 = vmatprep.subr.mxu0 %v213
    %3700 = vmatpush1.msra.mxu0 %v212
    %3701 = vmatprep.subr.mxu0 %v209
    %3702 = vmatpush1.msra.mxu0 %v208
    %3703 = vmatprep.subr.mxu0 %v205
    %3704 = vmatpush1.msra.mxu0 %v204
    %3705 = vmatprep.subr.mxu0 %v201
    %3706 = vmatpush1.msra.mxu0 %v200
    %3707 = vmatprep.subr.mxu0 %v197
    %3708 = vmatpush1.msra.mxu0 %v196
    %3709 = vmatprep.subr.mxu0 %v193
    %3710 = vmatpush1.msra.mxu0 %v192
    %3711 = vmatprep.subr.mxu0 %v189
    %3712 = vmatpush1.msra.mxu0 %v188
    %3713 = vmatprep.subr.mxu0 %v185
    %3714 = vmatpush1.msra.mxu0 %v184
    %3715 = vmatprep.subr.mxu0 %v181
    %3716 = vmatpush1.msra.mxu0 %v180
    %3717 = vmatprep.subr.mxu0 %v177
    %3718 = vmatpush1.msra.mxu0 %v176
    %3719 = vmatprep.subr.mxu0 %v173
    %3720 = vmatpush1.msra.mxu0 %v172
    %3721 = vmatprep.subr.mxu0 %v169
    %3722 = vmatpush1.msra.mxu0 %v168
    %3723 = vmatprep.subr.mxu0 %v165
    %3724 = vmatpush1.msra.mxu0 %v164
    %3725 = vmatprep.subr.mxu0 %v161
    %3726 = vmatpush1.msra.mxu0 %v160
    %3727 = vmatprep.subr.mxu0 %v157
    %3728 = vmatpush1.msra.mxu0 %v156
    %3729 = vmatprep.subr.mxu0 0.0
    %3730 = vmatpush2.msra.mxu0 0.0
    %3731 = vmatprep.subr.mxu0 0.0
    %3732 = vmatpush2.msra.mxu0 0.0
    %3733 = vmatprep.subr.mxu0 0.0
    %3734 = vmatpush2.msra.mxu0 0.0
    %3735 = vmatprep.subr.mxu0 0.0
    %3736 = vmatpush2.msra.mxu0 0.0
    %3737 = vmatprep.subr.mxu0 0.0
    %3738 = vmatpush2.msra.mxu0 0.0
    %3739 = vmatprep.subr.mxu0 0.0
    %3740 = vmatpush2.msra.mxu0 0.0
    %3741 = vmatprep.subr.mxu0 0.0
    %3742 = vmatpush2.msra.mxu0 0.0
    %3743 = vmatprep.subr.mxu0 0.0
    %3744 = vmatpush2.msra.mxu0 0.0
    %3745 = vmatprep.subr.mxu0 0.0
    %3746 = vmatpush2.msra.mxu0 0.0
    %3747 = vmatprep.subr.mxu0 0.0
    %3748 = vmatpush2.msra.mxu0 0.0
    %3749 = vmatprep.subr.mxu0 0.0
    %3750 = vmatpush2.msra.mxu0 0.0
    %3751 = vmatprep.subr.mxu0 0.0
    %3752 = vmatpush2.msra.mxu0 0.0
    %3753 = vmatprep.subr.mxu0 0.0
    %3754 = vmatpush2.msra.mxu0 0.0
    %3755 = vmatprep.subr.mxu0 0.0
    %3756 = vmatpush2.msra.mxu0 0.0
    %3757 = vmatprep.subr.mxu0 0.0
    %3758 = vmatpush2.msra.mxu0 0.0
    %3759 = vmatprep.subr.mxu0 0.0
    %3760 = vmatpush2.msra.mxu0 0.0
    %3761 = vmatprep.mubr.f32.mxu0 0.0
    %3762 = vmatmul.mubr.f32.gmra.mxu0 %v3373
    %v3763 = vpop.f32.mrf.mxu0
    %v3764 = vadd.f32 0.0, %v3763
    %v3765 = vpop.f32.mrf.mxu0
    %v3766 = vadd.f32 0.0, %v3765
    %3767 = vdwg.mxu0
    %3768 = vmatprep.subr.mxu0 %v219
    %3769 = vmatpush1.msra.mxu0 %v218
    %3770 = vmatprep.subr.mxu0 %v215
    %3771 = vmatpush1.msra.mxu0 %v214
    %3772 = vmatprep.subr.mxu0 %v211
    %3773 = vmatpush1.msra.mxu0 %v210
    %3774 = vmatprep.subr.mxu0 %v207
    %3775 = vmatpush1.msra.mxu0 %v206
    %3776 = vmatprep.subr.mxu0 %v203
    %3777 = vmatpush1.msra.mxu0 %v202
    %3778 = vmatprep.subr.mxu0 %v199
    %3779 = vmatpush1.msra.mxu0 %v198
    %3780 = vmatprep.subr.mxu0 %v195
    %3781 = vmatpush1.msra.mxu0 %v194
    %3782 = vmatprep.subr.mxu0 %v191
    %3783 = vmatpush1.msra.mxu0 %v190
    %3784 = vmatprep.subr.mxu0 %v187
    %3785 = vmatpush1.msra.mxu0 %v186
    %3786 = vmatprep.subr.mxu0 %v183
    %3787 = vmatpush1.msra.mxu0 %v182
    %3788 = vmatprep.subr.mxu0 %v179
    %3789 = vmatpush1.msra.mxu0 %v178
    %3790 = vmatprep.subr.mxu0 %v175
    %3791 = vmatpush1.msra.mxu0 %v174
    %3792 = vmatprep.subr.mxu0 %v171
    %3793 = vmatpush1.msra.mxu0 %v170
    %3794 = vmatprep.subr.mxu0 %v167
    %3795 = vmatpush1.msra.mxu0 %v166
    %3796 = vmatprep.subr.mxu0 %v163
    %3797 = vmatpush1.msra.mxu0 %v162
    %3798 = vmatprep.subr.mxu0 %v159
    %3799 = vmatpush1.msra.mxu0 %v158
    %3800 = vmatprep.subr.mxu0 0.0
    %3801 = vmatpush2.msra.mxu0 0.0
    %3802 = vmatprep.subr.mxu0 0.0
    %3803 = vmatpush2.msra.mxu0 0.0
    %3804 = vmatprep.subr.mxu0 0.0
    %3805 = vmatpush2.msra.mxu0 0.0
    %3806 = vmatprep.subr.mxu0 0.0
    %3807 = vmatpush2.msra.mxu0 0.0
    %3808 = vmatprep.subr.mxu0 0.0
    %3809 = vmatpush2.msra.mxu0 0.0
    %3810 = vmatprep.subr.mxu0 0.0
    %3811 = vmatpush2.msra.mxu0 0.0
    %3812 = vmatprep.subr.mxu0 0.0
    %3813 = vmatpush2.msra.mxu0 0.0
    %3814 = vmatprep.subr.mxu0 0.0
    %3815 = vmatpush2.msra.mxu0 0.0
    %3816 = vmatprep.subr.mxu0 0.0
    %3817 = vmatpush2.msra.mxu0 0.0
    %3818 = vmatprep.subr.mxu0 0.0
    %3819 = vmatpush2.msra.mxu0 0.0
    %3820 = vmatprep.subr.mxu0 0.0
    %3821 = vmatpush2.msra.mxu0 0.0
    %3822 = vmatprep.subr.mxu0 0.0
    %3823 = vmatpush2.msra.mxu0 0.0
    %3824 = vmatprep.subr.mxu0 0.0
    %3825 = vmatpush2.msra.mxu0 0.0
    %3826 = vmatprep.subr.mxu0 0.0
    %3827 = vmatpush2.msra.mxu0 0.0
    %3828 = vmatprep.subr.mxu0 0.0
    %3829 = vmatpush2.msra.mxu0 0.0
    %3830 = vmatprep.subr.mxu0 0.0
    %3831 = vmatpush2.msra.mxu0 0.0
    %3832 = vmatprep.mubr.f32.mxu0 0.0
    %3833 = vmatmul.mubr.f32.gmra.mxu0 %v3373
    %v3834 = vpop.f32.mrf.mxu0
    %v3835 = vadd.f32 0.0, %v3834
    %v3836 = vpop.f32.mrf.mxu0
    %v3837 = vadd.f32 0.0, %v3836
    %3838 = vdwg.mxu0
    %v3839 = vadd.f32 %v3693, %v3764
    %v3840 = vadd.f32 %v3694, %v3766
    %v3841 = vadd.f32 %v3695, %v3835
    %v3842 = vadd.f32 %v3696, %v3837
    %v3843 = vxor.u32 %v3839, 2147483648
    %v3844 = vmul.f32 %v3843, 1.442695
    %v3845 = vpow.pop %v3844
    %v3846 = vadd.f32 %v3845, 1.0
    %v3847 = vrcp.pop %v3846
    %v3848 = vmul.f32 1.0, %v3847
    %v3849 = vxor.u32 %v3840, 2147483648
    %v3850 = vmul.f32 %v3849, 1.442695
    %v3851 = vpow.pop %v3850
    %v3852 = vadd.f32 %v3851, 1.0
    %v3853 = vrcp.pop %v3852
    %v3854 = vmul.f32 1.0, %v3853
    %v3855 = vtanh.pop %v3841
    %v3856 = vxor.u32 %v3842, 2147483648
    %v3857 = vmul.f32 %v3856, 1.442695
    %v3858 = vpow.pop %v3857
    %v3859 = vadd.f32 %v3858, 1.0
    %v3860 = vrcp.pop %v3859
    %v3861 = vmul.f32 1.0, %v3860
    %v3862 = vmul.f32 %v3854, %v3371
    %v3863 = vmul.f32 %v3848, %v3855
    %v3864 = vadd.f32 %v3862, %v3863
    %v3865 = vtanh.pop %v3864
    %v3866 = vmul.f32 %v3861, %v3865
    %s3867 = scalar_lea.vmem [#allocation2], 48
    %3868 = vst [vmem:[%s3867] sm:$0xff] %v3866
    %3869 = vst [vmem:[#allocation4] sm:$0xff] %v3550
    %3870 = vst [vmem:[#allocation6] sm:$0xff] %v3548
    %3871 = vmatprep.subr.mxu0 %v153
    %3872 = vmatpush1.msra.mxu0 %v152
    %3873 = vmatprep.subr.mxu0 %v149
    %3874 = vmatpush1.msra.mxu0 %v148
    %3875 = vmatprep.subr.mxu0 %v145
    %3876 = vmatpush1.msra.mxu0 %v144
    %3877 = vmatprep.subr.mxu0 %v141
    %3878 = vmatpush1.msra.mxu0 %v140
    %3879 = vmatprep.subr.mxu0 %v137
    %3880 = vmatpush1.msra.mxu0 %v136
    %3881 = vmatprep.subr.mxu0 %v133
    %3882 = vmatpush1.msra.mxu0 %v132
    %3883 = vmatprep.subr.mxu0 %v129
    %3884 = vmatpush1.msra.mxu0 %v128
    %3885 = vmatprep.subr.mxu0 %v125
    %3886 = vmatpush1.msra.mxu0 %v124
    %3887 = vmatprep.subr.mxu0 %v121
    %3888 = vmatpush1.msra.mxu0 %v120
    %3889 = vmatprep.subr.mxu0 %v117
    %3890 = vmatpush1.msra.mxu0 %v116
    %3891 = vmatprep.subr.mxu0 %v113
    %3892 = vmatpush1.msra.mxu0 %v112
    %3893 = vmatprep.subr.mxu0 %v109
    %3894 = vmatpush1.msra.mxu0 %v108
    %3895 = vmatprep.subr.mxu0 %v105
    %3896 = vmatpush1.msra.mxu0 %v104
    %3897 = vmatprep.subr.mxu0 %v101
    %3898 = vmatpush1.msra.mxu0 %v100
    %3899 = vmatprep.subr.mxu0 %v97
    %3900 = vmatpush1.msra.mxu0 %v96
    %3901 = vmatprep.subr.mxu0 %v93
    %3902 = vmatpush1.msra.mxu0 %v92
    %3903 = vmatprep.subr.mxu0 0.0
    %3904 = vmatpush2.msra.mxu0 0.0
    %3905 = vmatprep.subr.mxu0 0.0
    %3906 = vmatpush2.msra.mxu0 0.0
    %3907 = vmatprep.subr.mxu0 0.0
    %3908 = vmatpush2.msra.mxu0 0.0
    %3909 = vmatprep.subr.mxu0 0.0
    %3910 = vmatpush2.msra.mxu0 0.0
    %3911 = vmatprep.subr.mxu0 0.0
    %3912 = vmatpush2.msra.mxu0 0.0
    %3913 = vmatprep.subr.mxu0 0.0
    %3914 = vmatpush2.msra.mxu0 0.0
    %3915 = vmatprep.subr.mxu0 0.0
    %3916 = vmatpush2.msra.mxu0 0.0
    %3917 = vmatprep.subr.mxu0 0.0
    %3918 = vmatpush2.msra.mxu0 0.0
    %3919 = vmatprep.subr.mxu0 0.0
    %3920 = vmatpush2.msra.mxu0 0.0
    %3921 = vmatprep.subr.mxu0 0.0
    %3922 = vmatpush2.msra.mxu0 0.0
    %3923 = vmatprep.subr.mxu0 0.0
    %3924 = vmatpush2.msra.mxu0 0.0
    %3925 = vmatprep.subr.mxu0 0.0
    %3926 = vmatpush2.msra.mxu0 0.0
    %3927 = vmatprep.subr.mxu0 0.0
    %3928 = vmatpush2.msra.mxu0 0.0
    %3929 = vmatprep.subr.mxu0 0.0
    %3930 = vmatpush2.msra.mxu0 0.0
    %3931 = vmatprep.subr.mxu0 0.0
    %3932 = vmatpush2.msra.mxu0 0.0
    %3933 = vmatprep.subr.mxu0 0.0
    %3934 = vmatpush2.msra.mxu0 0.0
    %3935 = vmatprep.mubr.f32.mxu0 0.0
    %3936 = vmatmul.mubr.f32.gmra.mxu0 %v3550
    %v3937 = vpop.f32.mrf.mxu0
    %v3938 = vadd.f32 0.0, %v3937
    %v3939 = vpop.f32.mrf.mxu0
    %v3940 = vadd.f32 0.0, %v3939
    %3941 = vdwg.mxu0
    %3942 = vmatprep.subr.mxu0 %v155
    %3943 = vmatpush1.msra.mxu0 %v154
    %3944 = vmatprep.subr.mxu0 %v151
    %3945 = vmatpush1.msra.mxu0 %v150
    %3946 = vmatprep.subr.mxu0 %v147
    %3947 = vmatpush1.msra.mxu0 %v146
    %3948 = vmatprep.subr.mxu0 %v143
    %3949 = vmatpush1.msra.mxu0 %v142
    %3950 = vmatprep.subr.mxu0 %v139
    %3951 = vmatpush1.msra.mxu0 %v138
    %3952 = vmatprep.subr.mxu0 %v135
    %3953 = vmatpush1.msra.mxu0 %v134
    %3954 = vmatprep.subr.mxu0 %v131
    %3955 = vmatpush1.msra.mxu0 %v130
    %3956 = vmatprep.subr.mxu0 %v127
    %3957 = vmatpush1.msra.mxu0 %v126
    %3958 = vmatprep.subr.mxu0 %v123
    %3959 = vmatpush1.msra.mxu0 %v122
    %3960 = vmatprep.subr.mxu0 %v119
    %3961 = vmatpush1.msra.mxu0 %v118
    %3962 = vmatprep.subr.mxu0 %v115
    %3963 = vmatpush1.msra.mxu0 %v114
    %3964 = vmatprep.subr.mxu0 %v111
    %3965 = vmatpush1.msra.mxu0 %v110
    %3966 = vmatprep.subr.mxu0 %v107
    %3967 = vmatpush1.msra.mxu0 %v106
    %3968 = vmatprep.subr.mxu0 %v103
    %3969 = vmatpush1.msra.mxu0 %v102
    %3970 = vmatprep.subr.mxu0 %v99
    %3971 = vmatpush1.msra.mxu0 %v98
    %3972 = vmatprep.subr.mxu0 %v95
    %3973 = vmatpush1.msra.mxu0 %v94
    %3974 = vmatprep.subr.mxu0 0.0
    %3975 = vmatpush2.msra.mxu0 0.0
    %3976 = vmatprep.subr.mxu0 0.0
    %3977 = vmatpush2.msra.mxu0 0.0
    %3978 = vmatprep.subr.mxu0 0.0
    %3979 = vmatpush2.msra.mxu0 0.0
    %3980 = vmatprep.subr.mxu0 0.0
    %3981 = vmatpush2.msra.mxu0 0.0
    %3982 = vmatprep.subr.mxu0 0.0
    %3983 = vmatpush2.msra.mxu0 0.0
    %3984 = vmatprep.subr.mxu0 0.0
    %3985 = vmatpush2.msra.mxu0 0.0
    %3986 = vmatprep.subr.mxu0 0.0
    %3987 = vmatpush2.msra.mxu0 0.0
    %3988 = vmatprep.subr.mxu0 0.0
    %3989 = vmatpush2.msra.mxu0 0.0
    %3990 = vmatprep.subr.mxu0 0.0
    %3991 = vmatpush2.msra.mxu0 0.0
    %3992 = vmatprep.subr.mxu0 0.0
    %3993 = vmatpush2.msra.mxu0 0.0
    %3994 = vmatprep.subr.mxu0 0.0
    %3995 = vmatpush2.msra.mxu0 0.0
    %3996 = vmatprep.subr.mxu0 0.0
    %3997 = vmatpush2.msra.mxu0 0.0
    %3998 = vmatprep.subr.mxu0 0.0
    %3999 = vmatpush2.msra.mxu0 0.0
    %4000 = vmatprep.subr.mxu0 0.0
    %4001 = vmatpush2.msra.mxu0 0.0
    %4002 = vmatprep.subr.mxu0 0.0
    %4003 = vmatpush2.msra.mxu0 0.0
    %4004 = vmatprep.subr.mxu0 0.0
    %4005 = vmatpush2.msra.mxu0 0.0
    %4006 = vmatprep.mubr.f32.mxu0 0.0
    %4007 = vmatmul.mubr.f32.gmra.mxu0 %v3550
    %v4008 = vpop.f32.mrf.mxu0
    %v4009 = vadd.f32 0.0, %v4008
    %v4010 = vpop.f32.mrf.mxu0
    %v4011 = vadd.f32 0.0, %v4010
    %4012 = vdwg.mxu0
    %v4013 = vadd.f32 %v719, %v3938
    %v4014 = vadd.f32 %v723, %v3940
    %v4015 = vadd.f32 %v727, %v4009
    %v4016 = vadd.f32 %v731, %v4011
    %4017 = vmatprep.subr.mxu0 %v217
    %4018 = vmatpush1.msra.mxu0 %v216
    %4019 = vmatprep.subr.mxu0 %v213
    %4020 = vmatpush1.msra.mxu0 %v212
    %4021 = vmatprep.subr.mxu0 %v209
    %4022 = vmatpush1.msra.mxu0 %v208
    %4023 = vmatprep.subr.mxu0 %v205
    %4024 = vmatpush1.msra.mxu0 %v204
    %4025 = vmatprep.subr.mxu0 %v201
    %4026 = vmatpush1.msra.mxu0 %v200
    %4027 = vmatprep.subr.mxu0 %v197
    %4028 = vmatpush1.msra.mxu0 %v196
    %4029 = vmatprep.subr.mxu0 %v193
    %4030 = vmatpush1.msra.mxu0 %v192
    %4031 = vmatprep.subr.mxu0 %v189
    %4032 = vmatpush1.msra.mxu0 %v188
    %4033 = vmatprep.subr.mxu0 %v185
    %4034 = vmatpush1.msra.mxu0 %v184
    %4035 = vmatprep.subr.mxu0 %v181
    %4036 = vmatpush1.msra.mxu0 %v180
    %4037 = vmatprep.subr.mxu0 %v177
    %4038 = vmatpush1.msra.mxu0 %v176
    %4039 = vmatprep.subr.mxu0 %v173
    %4040 = vmatpush1.msra.mxu0 %v172
    %4041 = vmatprep.subr.mxu0 %v169
    %4042 = vmatpush1.msra.mxu0 %v168
    %4043 = vmatprep.subr.mxu0 %v165
    %4044 = vmatpush1.msra.mxu0 %v164
    %4045 = vmatprep.subr.mxu0 %v161
    %4046 = vmatpush1.msra.mxu0 %v160
    %4047 = vmatprep.subr.mxu0 %v157
    %4048 = vmatpush1.msra.mxu0 %v156
    %4049 = vmatprep.subr.mxu0 0.0
    %4050 = vmatpush2.msra.mxu0 0.0
    %4051 = vmatprep.subr.mxu0 0.0
    %4052 = vmatpush2.msra.mxu0 0.0
    %4053 = vmatprep.subr.mxu0 0.0
    %4054 = vmatpush2.msra.mxu0 0.0
    %4055 = vmatprep.subr.mxu0 0.0
    %4056 = vmatpush2.msra.mxu0 0.0
    %4057 = vmatprep.subr.mxu0 0.0
    %4058 = vmatpush2.msra.mxu0 0.0
    %4059 = vmatprep.subr.mxu0 0.0
    %4060 = vmatpush2.msra.mxu0 0.0
    %4061 = vmatprep.subr.mxu0 0.0
    %4062 = vmatpush2.msra.mxu0 0.0
    %4063 = vmatprep.subr.mxu0 0.0
    %4064 = vmatpush2.msra.mxu0 0.0
    %4065 = vmatprep.subr.mxu0 0.0
    %4066 = vmatpush2.msra.mxu0 0.0
    %4067 = vmatprep.subr.mxu0 0.0
    %4068 = vmatpush2.msra.mxu0 0.0
    %4069 = vmatprep.subr.mxu0 0.0
    %4070 = vmatpush2.msra.mxu0 0.0
    %4071 = vmatprep.subr.mxu0 0.0
    %4072 = vmatpush2.msra.mxu0 0.0
    %4073 = vmatprep.subr.mxu0 0.0
    %4074 = vmatpush2.msra.mxu0 0.0
    %4075 = vmatprep.subr.mxu0 0.0
    %4076 = vmatpush2.msra.mxu0 0.0
    %4077 = vmatprep.subr.mxu0 0.0
    %4078 = vmatpush2.msra.mxu0 0.0
    %4079 = vmatprep.subr.mxu0 0.0
    %4080 = vmatpush2.msra.mxu0 0.0
    %4081 = vmatprep.mubr.f32.mxu0 0.0
    %4082 = vmatmul.mubr.f32.gmra.mxu0 %v3866
    %v4083 = vpop.f32.mrf.mxu0
    %v4084 = vadd.f32 0.0, %v4083
    %v4085 = vpop.f32.mrf.mxu0
    %v4086 = vadd.f32 0.0, %v4085
    %4087 = vdwg.mxu0
    %4088 = vmatprep.subr.mxu0 %v219
    %4089 = vmatpush1.msra.mxu0 %v218
    %4090 = vmatprep.subr.mxu0 %v215
    %4091 = vmatpush1.msra.mxu0 %v214
    %4092 = vmatprep.subr.mxu0 %v211
    %4093 = vmatpush1.msra.mxu0 %v210
    %4094 = vmatprep.subr.mxu0 %v207
    %4095 = vmatpush1.msra.mxu0 %v206
    %4096 = vmatprep.subr.mxu0 %v203
    %4097 = vmatpush1.msra.mxu0 %v202
    %4098 = vmatprep.subr.mxu0 %v199
    %4099 = vmatpush1.msra.mxu0 %v198
    %4100 = vmatprep.subr.mxu0 %v195
    %4101 = vmatpush1.msra.mxu0 %v194
    %4102 = vmatprep.subr.mxu0 %v191
    %4103 = vmatpush1.msra.mxu0 %v190
    %4104 = vmatprep.subr.mxu0 %v187
    %4105 = vmatpush1.msra.mxu0 %v186
    %4106 = vmatprep.subr.mxu0 %v183
    %4107 = vmatpush1.msra.mxu0 %v182
    %4108 = vmatprep.subr.mxu0 %v179
    %4109 = vmatpush1.msra.mxu0 %v178
    %4110 = vmatprep.subr.mxu0 %v175
    %4111 = vmatpush1.msra.mxu0 %v174
    %4112 = vmatprep.subr.mxu0 %v171
    %4113 = vmatpush1.msra.mxu0 %v170
    %4114 = vmatprep.subr.mxu0 %v167
    %4115 = vmatpush1.msra.mxu0 %v166
    %4116 = vmatprep.subr.mxu0 %v163
    %4117 = vmatpush1.msra.mxu0 %v162
    %4118 = vmatprep.subr.mxu0 %v159
    %4119 = vmatpush1.msra.mxu0 %v158
    %4120 = vmatprep.subr.mxu0 0.0
    %4121 = vmatpush2.msra.mxu0 0.0
    %4122 = vmatprep.subr.mxu0 0.0
    %4123 = vmatpush2.msra.mxu0 0.0
    %4124 = vmatprep.subr.mxu0 0.0
    %4125 = vmatpush2.msra.mxu0 0.0
    %4126 = vmatprep.subr.mxu0 0.0
    %4127 = vmatpush2.msra.mxu0 0.0
    %4128 = vmatprep.subr.mxu0 0.0
    %4129 = vmatpush2.msra.mxu0 0.0
    %4130 = vmatprep.subr.mxu0 0.0
    %4131 = vmatpush2.msra.mxu0 0.0
    %4132 = vmatprep.subr.mxu0 0.0
    %4133 = vmatpush2.msra.mxu0 0.0
    %4134 = vmatprep.subr.mxu0 0.0
    %4135 = vmatpush2.msra.mxu0 0.0
    %4136 = vmatprep.subr.mxu0 0.0
    %4137 = vmatpush2.msra.mxu0 0.0
    %4138 = vmatprep.subr.mxu0 0.0
    %4139 = vmatpush2.msra.mxu0 0.0
    %4140 = vmatprep.subr.mxu0 0.0
    %4141 = vmatpush2.msra.mxu0 0.0
    %4142 = vmatprep.subr.mxu0 0.0
    %4143 = vmatpush2.msra.mxu0 0.0
    %4144 = vmatprep.subr.mxu0 0.0
    %4145 = vmatpush2.msra.mxu0 0.0
    %4146 = vmatprep.subr.mxu0 0.0
    %4147 = vmatpush2.msra.mxu0 0.0
    %4148 = vmatprep.subr.mxu0 0.0
    %4149 = vmatpush2.msra.mxu0 0.0
    %4150 = vmatprep.subr.mxu0 0.0
    %4151 = vmatpush2.msra.mxu0 0.0
    %4152 = vmatprep.mubr.f32.mxu0 0.0
    %4153 = vmatmul.mubr.f32.gmra.mxu0 %v3866
    %v4154 = vpop.f32.mrf.mxu0
    %v4155 = vadd.f32 0.0, %v4154
    %v4156 = vpop.f32.mrf.mxu0
    %v4157 = vadd.f32 0.0, %v4156
    %4158 = vdwg.mxu0
    %v4159 = vadd.f32 %v4013, %v4084
    %v4160 = vadd.f32 %v4014, %v4086
    %v4161 = vadd.f32 %v4015, %v4155
    %v4162 = vadd.f32 %v4016, %v4157
    %v4163 = vxor.u32 %v4159, 2147483648
    %v4164 = vmul.f32 %v4163, 1.442695
    %v4165 = vpow.pop %v4164
    %v4166 = vadd.f32 %v4165, 1.0
    %v4167 = vrcp.pop %v4166
    %v4168 = vmul.f32 1.0, %v4167
    %v4169 = vxor.u32 %v4160, 2147483648
    %v4170 = vmul.f32 %v4169, 1.442695
    %v4171 = vpow.pop %v4170
    %v4172 = vadd.f32 %v4171, 1.0
    %v4173 = vrcp.pop %v4172
    %v4174 = vmul.f32 1.0, %v4173
    %v4175 = vtanh.pop %v4161
    %v4176 = vxor.u32 %v4162, 2147483648
    %v4177 = vmul.f32 %v4176, 1.442695
    %v4178 = vpow.pop %v4177
    %v4179 = vadd.f32 %v4178, 1.0
    %v4180 = vrcp.pop %v4179
    %v4181 = vmul.f32 1.0, %v4180
    %v4182 = vmul.f32 %v4174, %v3864
    %v4183 = vmul.f32 %v4168, %v4175
    %v4184 = vadd.f32 %v4182, %v4183
    %v4185 = vtanh.pop %v4184
    %v4186 = vmul.f32 %v4181, %v4185
    %s4187 = scalar_lea.vmem [#allocation2], 56
    %4188 = vst [vmem:[%s4187] sm:$0xff] %v4186
    %s4189 = scalar_lea.vmem [#allocation4], 8
    %4190 = vst [vmem:[%s4189] sm:$0xff] %v4186
    %s4191 = scalar_lea.vmem [#allocation6], 8
    %4192 = vst [vmem:[%s4191] sm:$0xff] %v4184
    // Predicated region
    $region26: #{network_forward.1} parent=1 // pred_check
      _
    $region27: #{network_forward.1} parent=1 // pred_check_branch
      %4194 = sbr.rel (0) target = $region29
    $region28: #{network_forward.1} parent=1 // pred_region
      %s4196 = ssub.s32 1024, 1024
      %4197 = vsyncadd [#allocation3], %s4196
      %s4198 = sshll.u32 [#allocation2], 4
      %s4199 = int_to_ptr.vmem [resolvable:$true] %s4198
      %4204 = dma.vmem_to_hbm [thread:$0]  %s4199, 1024, %s6, [#allocation3], 128, 128, 8
    $region29: #{network_forward.1} parent=1 // pred_fallthru
      _
    // Predicated region
    $region30: #{network_forward.1} parent=1 // pred_check
      _
    $region31: #{network_forward.1} parent=1 // pred_check_branch
      %4206 = sbr.rel (0) target = $region33
    $region32: #{network_forward.1} parent=1 // pred_region
      %s4208 = ssub.s32 256, 256
      %4209 = vsyncadd [#allocation5], %s4208
      %s4210 = sshll.u32 [#allocation4], 4
      %s4211 = int_to_ptr.vmem [resolvable:$true] %s4210
      %4216 = dma.vmem_to_hbm [thread:$0]  %s4211, 256, %s7, [#allocation5], 128, 128, 8
    $region33: #{network_forward.1} parent=1 // pred_fallthru
      _
    // Predicated region
    $region34: #{network_forward.1} parent=1 // pred_check
      _
    $region35: #{network_forward.1} parent=1 // pred_check_branch
      %4218 = sbr.rel (0) target = $region37
    $region36: #{network_forward.1} parent=1 // pred_region
      %s4220 = ssub.s32 256, 256
      %4221 = vsyncadd [#allocation5], %s4220
      %s4222 = sshll.u32 [#allocation6], 4
      %s4223 = int_to_ptr.vmem [resolvable:$true] %s4222
      %4228 = dma.vmem_to_hbm [thread:$0]  %s4223, 256, %s8, [#allocation5], 128, 128, 8
    $region37: #{network_forward.1} parent=1 // pred_fallthru
      _
    // Predicated region
    $region38: #{network_forward.1} parent=1 // pred_check
      _
    $region39: #{network_forward.1} parent=1 // pred_check_branch
      %4230 = sbr.rel (0) target = $region41
    $region40: #{network_forward.1} parent=1 // pred_region
      %4231 = dma.done [#allocation3], 1024
    $region41: #{network_forward.1} parent=1 // pred_fallthru
      _
    // Predicated region
    $region42: #{network_forward.1} parent=1 // pred_check
      _
    $region43: #{network_forward.1} parent=1 // pred_check_branch
      %4233 = sbr.rel (0) target = $region45
    $region44: #{network_forward.1} parent=1 // pred_region
      %4234 = dma.done [#allocation5], 256
    $region45: #{network_forward.1} parent=1 // pred_fallthru
      _
    // Predicated region
    $region46: #{network_forward.1} parent=1 // pred_check
      _
    $region47: #{network_forward.1} parent=1 // pred_check_branch
      %4236 = sbr.rel (0) target = $region49
    $region48: #{network_forward.1} parent=1 // pred_region
      %4237 = dma.done [#allocation5], 256
    $region49: #{network_forward.1} parent=1 // pred_fallthru
      _
    %4238 = vsyncpa [#allocation3], 1
    %4239 = vsyncpa [#allocation5], 1

</llo_original>
